<compile_context>
chip_gen: v5e
topology: v5e:2x2
jax: 0.10.0
libtpu: 0.0.40
codegen_flags: <defaults>
</compile_context>

<pallas_src>
import functools

import jax
import jax.numpy as jnp
from jax.experimental import pallas as pl
from jax.experimental.pallas import tpu as pltpu

BN_EPS = 1e-5
NEG_SLOPE = 0.01  # F.leaky_relu default
_HIGHEST = jax.lax.Precision.HIGHEST


def _leaky(y):
    return jnp.where(y >= 0, y, NEG_SLOPE * y)


def _sds(start, size, stride):
    """Static window slice, strided when stride > 1."""
    return pl.ds(start, size) if stride == 1 else pl.ds(start, size, stride=stride)


def _round_up(x, m):
    return (x + m - 1) // m * m


def _pick_batch_block(N, OH, OW, target_rows=256, max_rows=2048):
    """Largest divisor of N whose Nb*OH*OW reaches ~target MXU rows."""
    best = 1
    for d in range(1, N + 1):
        if N % d != 0:
            continue
        rows = d * OH * OW
        if rows > max_rows:
            break
        best = d
        if rows >= target_rows:
            break
    return best


# ----------------------------- fused Pallas kernel -----------------------------

def _bottleneck_kernel(*refs, H, W, OH, OW, stride, has_shortcut):
    if has_shortcut:
        (x_ref, wred_ref, sred_ref, bred_ref,
         wtap_ref, sbn_ref, bbn_ref,
         wexp_ref, sexp_ref, bexp_ref,
         wsc_ref, ssc_ref, bsc_ref,
         o_ref, h1pad_ref) = refs
    else:
        (x_ref, wred_ref, sred_ref, bred_ref,
         wtap_ref, sbn_ref, bbn_ref,
         wexp_ref, sexp_ref, bexp_ref,
         o_ref, h1pad_ref) = refs

    Nb, _, _, Cin = x_ref.shape
    Dp = wred_ref.shape[1]       # padded bottleneck width (multiple of 128)
    Cp = wexp_ref.shape[1]       # padded output channels (multiple of 128)
    Xin = Nb * H * W
    X = Nb * OH * OW
    f32, bf16 = jnp.float32, jnp.bfloat16

    # ---- conv_reduce (1x1) + bn_reduce + leaky_relu (bf16 MXU, f32 acc) ----
    x2 = x_ref[...].reshape(Xin, Cin)
    h1 = jnp.dot(x2.astype(bf16), wred_ref[...], preferred_element_type=f32)
    h1 = _leaky(h1 * sred_ref[...] + bred_ref[...])              # (Xin, Dp) f32

    # ---- refresh only the 1-wide zero halo ring (interior fully overwritten) ----
    zrow = jnp.zeros((Nb, 1, W + 2, Dp), f32)
    h1pad_ref[:, 0:1, :, :] = zrow
    h1pad_ref[:, H + 1:H + 2, :, :] = zrow
    zcol = jnp.zeros((Nb, H, 1, Dp), f32)
    h1pad_ref[:, 1:H + 1, 0:1, :] = zcol
    h1pad_ref[:, 1:H + 1, W + 1:W + 2, :] = zcol
    # TODO(synk): interior store starts at sublane offset 1 along W (masked
    # stores); a shifted scratch layout or in-register roll path would avoid it.
    h1pad_ref[:, 1:H + 1, 1:W + 1, :] = h1.reshape(Nb, H, W, Dp)

    # ---- conv_conv (3x3 grouped, stride-aware) as 9 per-tap block-diagonal
    # (Dp, Dp) matmuls; each strided window consumed immediately. ----
    h2 = jnp.zeros((X, Dp), f32)
    for kh in range(3):
        for kw in range(3):
            win = h1pad_ref[:, _sds(kh, OH, stride), _sds(kw, OW, stride), :]
            h2 = h2 + jnp.dot(win.reshape(X, Dp).astype(bf16),
                              wtap_ref[kh * 3 + kw],
                              preferred_element_type=f32)
    h2 = _leaky(h2 * sbn_ref[...] + bbn_ref[...])                # (X, Dp) f32

    # ---- shortcut / residual (x_ref re-read here, after the conv loop) ----
    if has_shortcut:
        xs = x_ref[:, _sds(0, OH, stride), _sds(0, OW, stride), :].reshape(X, Cin)
        res = jnp.dot(xs.astype(bf16), wsc_ref[...], preferred_element_type=f32)
        res = res * ssc_ref[...] + bsc_ref[...]
    else:
        # identity shortcut (module guarantees stride == 1, Cin == Cout)
        res = x_ref[...].reshape(X, Cin)                          # f32, exact
        if Cp > Cin:
            res = jnp.concatenate([res, jnp.zeros((X, Cp - Cin), f32)], axis=-1)

    # ---- conv_expand (1x1) + bn_expand + residual add + leaky_relu ----
    # Cp is a multiple of 128 -> lane-dense, unmasked output stores.
    y = jnp.dot(h2.astype(bf16), wexp_ref[...], preferred_element_type=f32)
    y = _leaky(y * sexp_ref[...] + bexp_ref[...] + res)
    o_ref[...] = y.reshape(Nb, OH, OW, Cp)


# ----------------------------- module forward -----------------------------

def fold_bn(bn_params, cpad, eps=BN_EPS):
    # TODO(synk): training-mode BatchNorm (batch statistics + running-stat
    # updates) not implemented; inference-mode BN folded into scale/bias.
    gamma, beta, mean, var = bn_params
    s = gamma / jnp.sqrt(var + eps)
    b = beta - mean * s
    pad = cpad - s.shape[0]
    s = jnp.pad(s, (0, pad)).astype(jnp.float32).reshape(1, -1)
    b = jnp.pad(b, (0, pad)).astype(jnp.float32).reshape(1, -1)
    return s, b


def resnext_bottleneck_forward(x_nchw, params, *, stride, cardinality):
    N, Cin, H, W = x_nchw.shape
    D = params["w_reduce"].shape[0]
    Cout = params["w_expand"].shape[0]
    G = cardinality
    gs = D // G
    OH = (H - 1) // stride + 1    # = floor((H + 2 - 3) / stride) + 1
    OW = (W - 1) // stride + 1
    Dp = _round_up(D, 128)
    Cp = _round_up(Cout, 128)
    has_shortcut = params["w_shortcut"] is not None
    if not has_shortcut:
        assert stride == 1 and Cin == Cout, "identity shortcut needs stride=1, Cin==Cout"

    Nb = _pick_batch_block(N, OH, OW)

    # Channels-last activations so channels land on the 128-wide lane dim.
    # (Input kept f32; it is cast to bf16 in-register before feeding the MXU.)
    x = jnp.transpose(x_nchw, (0, 2, 3, 1)).astype(jnp.float32)           # NHWC

    def pad2(w, rows, cols):
        return jnp.pad(w, ((0, rows - w.shape[0]), (0, cols - w.shape[1])))

    w_red = pad2(jnp.transpose(params["w_reduce"][:, :, 0, 0]), Cin, Dp).astype(jnp.bfloat16)
    s_red, b_red = fold_bn(params["bn_reduce"], Dp)

    # Grouped 3x3 -> 9 per-tap block-diagonal dense (Dp, Dp) bf16 weights.
    wc = params["w_conv"]                                                  # (D, gs, 3, 3)
    wt = jnp.zeros((3, 3, Dp, Dp), jnp.float32)
    for g in range(G):
        blk = jnp.transpose(wc[g * gs:(g + 1) * gs], (2, 3, 1, 0))         # (kh, kw, ic, oc)
        wt = wt.at[:, :, g * gs:(g + 1) * gs, g * gs:(g + 1) * gs].set(blk)
    w_taps = wt.reshape(9, Dp, Dp).astype(jnp.bfloat16)
    s_bn, b_bn = fold_bn(params["bn"], Dp)

    w_exp = pad2(jnp.transpose(params["w_expand"][:, :, 0, 0]), Dp, Cp).astype(jnp.bfloat16)
    s_exp, b_exp = fold_bn(params["bn_expand"], Cp)

    def full(shape):
        nd = len(shape)
        return pl.BlockSpec(shape, lambda n, nd=nd: (0,) * nd)

    in_specs = [
        pl.BlockSpec((Nb, H, W, Cin), lambda n: (n, 0, 0, 0)),
        full((Cin, Dp)), full((1, Dp)), full((1, Dp)),
        full((9, Dp, Dp)), full((1, Dp)), full((1, Dp)),
        full((Dp, Cp)), full((1, Cp)), full((1, Cp)),
    ]
    args = [x, w_red, s_red, b_red, w_taps, s_bn, b_bn, w_exp, s_exp, b_exp]
    if has_shortcut:
        w_sc = pad2(jnp.transpose(params["w_shortcut"][:, :, 0, 0]), Cin, Cp).astype(jnp.bfloat16)
        s_sc, b_sc = fold_bn(params["bn_shortcut"], Cp)
        in_specs += [full((Cin, Cp)), full((1, Cp)), full((1, Cp))]
        args += [w_sc, s_sc, b_sc]

    kernel = functools.partial(
        _bottleneck_kernel, H=H, W=W, OH=OH, OW=OW,
        stride=stride, has_shortcut=has_shortcut)

    out = pl.pallas_call(
        kernel,
        out_shape=jax.ShapeDtypeStruct((N, OH, OW, Cp), jnp.float32),
        grid=(N // Nb,),
        in_specs=in_specs,
        out_specs=pl.BlockSpec((Nb, OH, OW, Cp), lambda n: (n, 0, 0, 0)),
        # TODO(synk): for production stages (e.g. 56x56, D>=256) add a row-tile
        # grid axis (halo rows via pl.ANY + manual DMA) and set vmem_limit_bytes
        # so whole-image blocks fit v7x's 64 MiB VMEM.
        scratch_shapes=[pltpu.VMEM((Nb, H + 2, W + 2, Dp), jnp.float32)],
        compiler_params=pltpu.CompilerParams(
            dimension_semantics=("parallel",)),   # v7x: 2 TCs split the batch axis
    )(*args)

    out = out[..., :Cout]                          # drop Cp padding lanes
    return jnp.transpose(out, (0, 3, 1, 2))        # NCHW


# ----------------------------- reference + init -----------------------------

def reference_forward(x, p, stride, cardinality):
    def conv(x, w, s, pad, groups=1):
        return jax.lax.conv_general_dilated(
            x, w, window_strides=(s, s), padding=pad,
            dimension_numbers=("NCHW", "OIHW", "NCHW"),
            feature_group_count=groups, precision=_HIGHEST)

    def bn(x, g, b, m, v):
        s = g / jnp.sqrt(v + BN_EPS)
        return x * s[None, :, None, None] + (b - m * s)[None, :, None, None]

    if p["w_shortcut"] is not None:
        res = bn(conv(x, p["w_shortcut"], stride, ((0, 0), (0, 0))),
                 *p["bn_shortcut"])
    else:
        res = x
    h = _leaky(bn(conv(x, p["w_reduce"], 1, ((0, 0), (0, 0))), *p["bn_reduce"]))
    h = _leaky(bn(conv(h, p["w_conv"], stride, ((1, 1), (1, 1)),
                       groups=cardinality), *p["bn"]))
    h = bn(conv(h, p["w_expand"], 1, ((0, 0), (0, 0))), *p["bn_expand"])
    return _leaky(h + res)


def init_params(key, in_channels, out_channels, stride, cardinality,
                base_width, widen_factor):
    width_ratio = out_channels / (widen_factor * 64.0)
    D = cardinality * int(base_width * width_ratio)
    ks = jax.random.split(key, 8)

    def w(k, shape):
        return 0.1 * jax.random.normal(k, shape, jnp.float32)

    def bn(k, c):
        k1, k2, k3, k4 = jax.random.split(k, 4)
        return (jax.random.uniform(k1, (c,), jnp.float32, 0.5, 1.5),
                0.1 * jax.random.normal(k2, (c,), jnp.float32),
                0.1 * jax.random.normal(k3, (c,), jnp.float32),
                jax.random.uniform(k4, (c,), jnp.float32, 0.5, 1.5))

    p = {
        "w_reduce": w(ks[0], (D, in_channels, 1, 1)),
        "bn_reduce": bn(ks[1], D),
        "w_conv": w(ks[2], (D, D // cardinality, 3, 3)),
        "bn": bn(ks[3], D),
        "w_expand": w(ks[4], (out_channels, D, 1, 1)),
        "bn_expand": bn(ks[5], out_channels),
        "w_shortcut": None,
        "bn_shortcut": None,
    }
    if in_channels != out_channels or stride != 1:
        p["w_shortcut"] = w(ks[6], (out_channels, in_channels, 1, 1))
        p["bn_shortcut"] = bn(ks[7], out_channels)
    return p, D


if __name__ == "__main__":
    key = jax.random.PRNGKey(0)
    cardinality, base_width, widen_factor = 8, 4, 1
    cases = [
        # (in_channels, out_channels, stride, N, H, W)
        (32, 64, 2, 2, 16, 16),   # projection shortcut, stride 2
        (64, 64, 1, 2, 8, 8),     # identity shortcut, stride 1
    ]
    for idx, (cin, cout, stride, N, H, W) in enumerate(cases):
        kx, kp = jax.random.split(jax.random.fold_in(key, idx))
        x = jax.random.normal(kx, (N, cin, H, W), jnp.float32)   # NCHW
        params, D = init_params(kp, cin, cout, stride, cardinality,
                                base_width, widen_factor)

        fwd = jax.jit(functools.partial(resnext_bottleneck_forward,
                                        stride=stride, cardinality=cardinality))
        out = jax.block_until_ready(fwd(x, params))

        ref = reference_forward(x, params, stride, cardinality)
        err = float(jnp.max(jnp.abs(out - ref)))
        scale = float(jnp.max(jnp.abs(ref)))
        assert out.shape == ref.shape, (out.shape, ref.shape)
        # NOTE: tolerance reflects bf16 MXU operands vs an f32 reference.
        assert err <= 5e-2 * scale + 1e-4, f"case {idx}: max|diff|={err}, scale={scale}"
    print("KERNEL_OK")
</pallas_src>

<mosaic_0001>
module attributes {stable_mosaic.version = 11 : i64} {
  func.func @_bottleneck_kernel(%arg0: i32, %arg1: memref<2x16x16x32xf32, #tpu.memory_space<vmem>>, %arg2: memref<32x128xbf16, #tpu.memory_space<vmem>>, %arg3: memref<1x128xf32, #tpu.memory_space<vmem>>, %arg4: memref<1x128xf32, #tpu.memory_space<vmem>>, %arg5: memref<9x128x128xbf16, #tpu.memory_space<vmem>>, %arg6: memref<1x128xf32, #tpu.memory_space<vmem>>, %arg7: memref<1x128xf32, #tpu.memory_space<vmem>>, %arg8: memref<128x128xbf16, #tpu.memory_space<vmem>>, %arg9: memref<1x128xf32, #tpu.memory_space<vmem>>, %arg10: memref<1x128xf32, #tpu.memory_space<vmem>>, %arg11: memref<32x128xbf16, #tpu.memory_space<vmem>>, %arg12: memref<1x128xf32, #tpu.memory_space<vmem>>, %arg13: memref<1x128xf32, #tpu.memory_space<vmem>>, %arg14: memref<2x8x8x128xf32, #tpu.memory_space<vmem>>, %arg15: memref<2x18x18x128xf32, #tpu.memory_space<vmem>>) attributes {dimension_semantics = [#tpu.dimension_semantics<parallel>], iteration_bounds = array<i64: 1>, scalar_prefetch = 0 : i64, scratch_operands = 1 : i64, tpu.core_type = #tpu.core_type<tc>, window_params = [{transform_indices = @transform_0, window_bounds = array<i64: 2, 16, 16, 32>}, {pipeline_mode = #tpu.pipeline_mode<synchronous>, transform_indices = @transform_1, window_bounds = array<i64: 32, 128>}, {pipeline_mode = #tpu.pipeline_mode<synchronous>, transform_indices = @transform_2, window_bounds = array<i64: 1, 128>}, {pipeline_mode = #tpu.pipeline_mode<synchronous>, transform_indices = @transform_3, window_bounds = array<i64: 1, 128>}, {pipeline_mode = #tpu.pipeline_mode<synchronous>, transform_indices = @transform_4, window_bounds = array<i64: 9, 128, 128>}, {pipeline_mode = #tpu.pipeline_mode<synchronous>, transform_indices = @transform_5, window_bounds = array<i64: 1, 128>}, {pipeline_mode = #tpu.pipeline_mode<synchronous>, transform_indices = @transform_6, window_bounds = array<i64: 1, 128>}, {pipeline_mode = #tpu.pipeline_mode<synchronous>, transform_indices = @transform_7, window_bounds = array<i64: 128, 128>}, {pipeline_mode = #tpu.pipeline_mode<synchronous>, transform_indices = @transform_8, window_bounds = array<i64: 1, 128>}, {pipeline_mode = #tpu.pipeline_mode<synchronous>, transform_indices = @transform_9, window_bounds = array<i64: 1, 128>}, {pipeline_mode = #tpu.pipeline_mode<synchronous>, transform_indices = @transform_10, window_bounds = array<i64: 32, 128>}, {pipeline_mode = #tpu.pipeline_mode<synchronous>, transform_indices = @transform_11, window_bounds = array<i64: 1, 128>}, {pipeline_mode = #tpu.pipeline_mode<synchronous>, transform_indices = @transform_12, window_bounds = array<i64: 1, 128>}, {transform_indices = @transform_13, window_bounds = array<i64: 2, 8, 8, 128>}]} {
    %c0 = arith.constant 0 : index
    %c0_0 = arith.constant 0 : index
    %c0_1 = arith.constant 0 : index
    %c0_2 = arith.constant 0 : index
    %0 = vector.load %arg1[%c0, %c0_0, %c0_1, %c0_2] : memref<2x16x16x32xf32, #tpu.memory_space<vmem>>, vector<2x16x16x32xf32>
    %1 = vector.shape_cast %0 : vector<2x16x16x32xf32> to vector<512x32xf32>
    %2 = arith.truncf %1 : vector<512x32xf32> to vector<512x32xbf16>
    %c0_3 = arith.constant 0 : index
    %c0_4 = arith.constant 0 : index
    %3 = vector.load %arg2[%c0_3, %c0_4] : memref<32x128xbf16, #tpu.memory_space<vmem>>, vector<32x128xbf16>
    %cst = arith.constant dense<0.000000e+00> : vector<512x128xf32>
    %4 = tpu.matmul %2, %3, %cst {dimension_numbers = #tpu.dot_dimension_numbers<[1], [0], [0], [1], [0, 0, 1, 1], [], []>} : vector<512x32xbf16>, vector<32x128xbf16>, vector<512x128xf32> -> vector<512x128xf32>
    %c0_5 = arith.constant 0 : index
    %c0_6 = arith.constant 0 : index
    %5 = vector.load %arg3[%c0_5, %c0_6] : memref<1x128xf32, #tpu.memory_space<vmem>>, vector<1x128xf32>
    %6 = vector.broadcast %5 : vector<1x128xf32> to vector<512x128xf32>
    %7 = arith.mulf %4, %6 : vector<512x128xf32>
    %c0_7 = arith.constant 0 : index
    %c0_8 = arith.constant 0 : index
    %8 = vector.load %arg4[%c0_7, %c0_8] : memref<1x128xf32, #tpu.memory_space<vmem>>, vector<1x128xf32>
    %9 = vector.broadcast %8 : vector<1x128xf32> to vector<512x128xf32>
    %10 = arith.addf %7, %9 : vector<512x128xf32>
    %cst_9 = arith.constant 0.000000e+00 : f32
    %11 = vector.broadcast %cst_9 : f32 to vector<512x128xf32>
    %12 = arith.cmpf oge, %10, %11 : vector<512x128xf32>
    %cst_10 = arith.constant 0.00999999977 : f32
    %13 = vector.broadcast %cst_10 : f32 to vector<512x128xf32>
    %14 = arith.mulf %13, %10 : vector<512x128xf32>
    %15 = arith.select %12, %10, %14 : vector<512x128xi1>, vector<512x128xf32>
    %cst_11 = arith.constant 0.000000e+00 : f32
    %16 = vector.broadcast %cst_11 : f32 to vector<2x1x18x128xf32>
    %c0_12 = arith.constant 0 : index
    %c0_13 = arith.constant 0 : index
    %c0_14 = arith.constant 0 : index
    %c0_15 = arith.constant 0 : index
    %17 = vector.load %arg15[%c0_12, %c0_13, %c0_14, %c0_15] : memref<2x18x18x128xf32, #tpu.memory_space<vmem>>, vector<2x1x18x128xf32>
    tpu.vector_store %arg15[%c0_12, %c0_13, %c0_14, %c0_15], %16 {strides = array<i32>} : memref<2x18x18x128xf32, #tpu.memory_space<vmem>>, vector<2x1x18x128xf32>,
    %c0_16 = arith.constant 0 : index
    %c17 = arith.constant 17 : index
    %c0_17 = arith.constant 0 : index
    %c0_18 = arith.constant 0 : index
    %18 = vector.load %arg15[%c0_16, %c17, %c0_17, %c0_18] : memref<2x18x18x128xf32, #tpu.memory_space<vmem>>, vector<2x1x18x128xf32>
    tpu.vector_store %arg15[%c0_16, %c17, %c0_17, %c0_18], %16 {strides = array<i32>} : memref<2x18x18x128xf32, #tpu.memory_space<vmem>>, vector<2x1x18x128xf32>,
    %cst_19 = arith.constant 0.000000e+00 : f32
    %19 = vector.broadcast %cst_19 : f32 to vector<2x16x1x128xf32>
    %c0_20 = arith.constant 0 : index
    %c1 = arith.constant 1 : index
    %c0_21 = arith.constant 0 : index
    %c0_22 = arith.constant 0 : index
    %20 = vector.load %arg15[%c0_20, %c1, %c0_21, %c0_22] : memref<2x18x18x128xf32, #tpu.memory_space<vmem>>, vector<2x16x1x128xf32>
    tpu.vector_store %arg15[%c0_20, %c1, %c0_21, %c0_22], %19 {strides = array<i32>} : memref<2x18x18x128xf32, #tpu.memory_space<vmem>>, vector<2x16x1x128xf32>,
    %c0_23 = arith.constant 0 : index
    %c1_24 = arith.constant 1 : index
    %c17_25 = arith.constant 17 : index
    %c0_26 = arith.constant 0 : index
    %21 = vector.load %arg15[%c0_23, %c1_24, %c17_25, %c0_26] : memref<2x18x18x128xf32, #tpu.memory_space<vmem>>, vector<2x16x1x128xf32>
    tpu.vector_store %arg15[%c0_23, %c1_24, %c17_25, %c0_26], %19 {strides = array<i32>} : memref<2x18x18x128xf32, #tpu.memory_space<vmem>>, vector<2x16x1x128xf32>,
    %22 = vector.shape_cast %15 : vector<512x128xf32> to vector<2x16x16x128xf32>
    %c0_27 = arith.constant 0 : index
    %c1_28 = arith.constant 1 : index
    %c1_29 = arith.constant 1 : index
    %c0_30 = arith.constant 0 : index
    %23 = vector.load %arg15[%c0_27, %c1_28, %c1_29, %c0_30] : memref<2x18x18x128xf32, #tpu.memory_space<vmem>>, vector<2x16x16x128xf32>
    tpu.vector_store %arg15[%c0_27, %c1_28, %c1_29, %c0_30], %22 {strides = array<i32>} : memref<2x18x18x128xf32, #tpu.memory_space<vmem>>, vector<2x16x16x128xf32>,
    %cst_31 = arith.constant 0.000000e+00 : f32
    %24 = vector.broadcast %cst_31 : f32 to vector<128x128xf32>
    %c0_32 = arith.constant 0 : index
    %c0_33 = arith.constant 0 : index
    %c0_34 = arith.constant 0 : index
    %c0_35 = arith.constant 0 : index
    %25 = tpu.strided_load %arg15[%c0_32, %c0_33, %c0_34, %c0_35] {strides = array<i32: 1, 2, 2, 1>} : memref<2x18x18x128xf32, #tpu.memory_space<vmem>>, vector<2x8x8x128xf32>
    %26 = vector.shape_cast %25 : vector<2x8x8x128xf32> to vector<128x128xf32>
    %27 = arith.truncf %26 : vector<128x128xf32> to vector<128x128xbf16>
    %c0_36 = arith.constant 0 : index
    %c0_37 = arith.constant 0 : index
    %c0_38 = arith.constant 0 : index
    %28 = vector.load %arg5[%c0_36, %c0_37, %c0_38] : memref<9x128x128xbf16, #tpu.memory_space<vmem>>, vector<1x128x128xbf16>
    %29 = vector.shape_cast %28 : vector<1x128x128xbf16> to vector<128x128xbf16>
    %cst_39 = arith.constant dense<0.000000e+00> : vector<128x128xf32>
    %30 = tpu.matmul %27, %29, %cst_39 {dimension_numbers = #tpu.dot_dimension_numbers<[1], [0], [0], [1], [0, 0, 1, 1], [], []>} : vector<128x128xbf16>, vector<128x128xbf16>, vector<128x128xf32> -> vector<128x128xf32>
    %31 = arith.addf %24, %30 : vector<128x128xf32>
    %c0_40 = arith.constant 0 : index
    %c0_41 = arith.constant 0 : index
    %c1_42 = arith.constant 1 : index
    %c0_43 = arith.constant 0 : index
    %32 = tpu.strided_load %arg15[%c0_40, %c0_41, %c1_42, %c0_43] {strides = array<i32: 1, 2, 2, 1>} : memref<2x18x18x128xf32, #tpu.memory_space<vmem>>, vector<2x8x8x128xf32>
    %33 = vector.shape_cast %32 : vector<2x8x8x128xf32> to vector<128x128xf32>
    %34 = arith.truncf %33 : vector<128x128xf32> to vector<128x128xbf16>
    %c1_44 = arith.constant 1 : index
    %c0_45 = arith.constant 0 : index
    %c0_46 = arith.constant 0 : index
    %35 = vector.load %arg5[%c1_44, %c0_45, %c0_46] : memref<9x128x128xbf16, #tpu.memory_space<vmem>>, vector<1x128x128xbf16>
    %36 = vector.shape_cast %35 : vector<1x128x128xbf16> to vector<128x128xbf16>
    %cst_47 = arith.constant dense<0.000000e+00> : vector<128x128xf32>
    %37 = tpu.matmul %34, %36, %cst_47 {dimension_numbers = #tpu.dot_dimension_numbers<[1], [0], [0], [1], [0, 0, 1, 1], [], []>} : vector<128x128xbf16>, vector<128x128xbf16>, vector<128x128xf32> -> vector<128x128xf32>
    %38 = arith.addf %31, %37 : vector<128x128xf32>
    %c0_48 = arith.constant 0 : index
    %c0_49 = arith.constant 0 : index
    %c2 = arith.constant 2 : index
    %c0_50 = arith.constant 0 : index
    %39 = tpu.strided_load %arg15[%c0_48, %c0_49, %c2, %c0_50] {strides = array<i32: 1, 2, 2, 1>} : memref<2x18x18x128xf32, #tpu.memory_space<vmem>>, vector<2x8x8x128xf32>
    %40 = vector.shape_cast %39 : vector<2x8x8x128xf32> to vector<128x128xf32>
    %41 = arith.truncf %40 : vector<128x128xf32> to vector<128x128xbf16>
    %c2_51 = arith.constant 2 : index
    %c0_52 = arith.constant 0 : index
    %c0_53 = arith.constant 0 : index
    %42 = vector.load %arg5[%c2_51, %c0_52, %c0_53] : memref<9x128x128xbf16, #tpu.memory_space<vmem>>, vector<1x128x128xbf16>
    %43 = vector.shape_cast %42 : vector<1x128x128xbf16> to vector<128x128xbf16>
    %cst_54 = arith.constant dense<0.000000e+00> : vector<128x128xf32>
    %44 = tpu.matmul %41, %43, %cst_54 {dimension_numbers = #tpu.dot_dimension_numbers<[1], [0], [0], [1], [0, 0, 1, 1], [], []>} : vector<128x128xbf16>, vector<128x128xbf16>, vector<128x128xf32> -> vector<128x128xf32>
    %45 = arith.addf %38, %44 : vector<128x128xf32>
    %c0_55 = arith.constant 0 : index
    %c1_56 = arith.constant 1 : index
    %c0_57 = arith.constant 0 : index
    %c0_58 = arith.constant 0 : index
    %46 = tpu.strided_load %arg15[%c0_55, %c1_56, %c0_57, %c0_58] {strides = array<i32: 1, 2, 2, 1>} : memref<2x18x18x128xf32, #tpu.memory_space<vmem>>, vector<2x8x8x128xf32>
    %47 = vector.shape_cast %46 : vector<2x8x8x128xf32> to vector<128x128xf32>
    %48 = arith.truncf %47 : vector<128x128xf32> to vector<128x128xbf16>
    %c3 = arith.constant 3 : index
    %c0_59 = arith.constant 0 : index
    %c0_60 = arith.constant 0 : index
    %49 = vector.load %arg5[%c3, %c0_59, %c0_60] : memref<9x128x128xbf16, #tpu.memory_space<vmem>>, vector<1x128x128xbf16>
    %50 = vector.shape_cast %49 : vector<1x128x128xbf16> to vector<128x128xbf16>
    %cst_61 = arith.constant dense<0.000000e+00> : vector<128x128xf32>
    %51 = tpu.matmul %48, %50, %cst_61 {dimension_numbers = #tpu.dot_dimension_numbers<[1], [0], [0], [1], [0, 0, 1, 1], [], []>} : vector<128x128xbf16>, vector<128x128xbf16>, vector<128x128xf32> -> vector<128x128xf32>
    %52 = arith.addf %45, %51 : vector<128x128xf32>
    %c0_62 = arith.constant 0 : index
    %c1_63 = arith.constant 1 : index
    %c1_64 = arith.constant 1 : index
    %c0_65 = arith.constant 0 : index
    %53 = tpu.strided_load %arg15[%c0_62, %c1_63, %c1_64, %c0_65] {strides = array<i32: 1, 2, 2, 1>} : memref<2x18x18x128xf32, #tpu.memory_space<vmem>>, vector<2x8x8x128xf32>
    %54 = vector.shape_cast %53 : vector<2x8x8x128xf32> to vector<128x128xf32>
    %55 = arith.truncf %54 : vector<128x128xf32> to vector<128x128xbf16>
    %c4 = arith.constant 4 : index
    %c0_66 = arith.constant 0 : index
    %c0_67 = arith.constant 0 : index
    %56 = vector.load %arg5[%c4, %c0_66, %c0_67] : memref<9x128x128xbf16, #tpu.memory_space<vmem>>, vector<1x128x128xbf16>
    %57 = vector.shape_cast %56 : vector<1x128x128xbf16> to vector<128x128xbf16>
    %cst_68 = arith.constant dense<0.000000e+00> : vector<128x128xf32>
    %58 = tpu.matmul %55, %57, %cst_68 {dimension_numbers = #tpu.dot_dimension_numbers<[1], [0], [0], [1], [0, 0, 1, 1], [], []>} : vector<128x128xbf16>, vector<128x128xbf16>, vector<128x128xf32> -> vector<128x128xf32>
    %59 = arith.addf %52, %58 : vector<128x128xf32>
    %c0_69 = arith.constant 0 : index
    %c1_70 = arith.constant 1 : index
    %c2_71 = arith.constant 2 : index
    %c0_72 = arith.constant 0 : index
    %60 = tpu.strided_load %arg15[%c0_69, %c1_70, %c2_71, %c0_72] {strides = array<i32: 1, 2, 2, 1>} : memref<2x18x18x128xf32, #tpu.memory_space<vmem>>, vector<2x8x8x128xf32>
    %61 = vector.shape_cast %60 : vector<2x8x8x128xf32> to vector<128x128xf32>
    %62 = arith.truncf %61 : vector<128x128xf32> to vector<128x128xbf16>
    %c5 = arith.constant 5 : index
    %c0_73 = arith.constant 0 : index
    %c0_74 = arith.constant 0 : index
    %63 = vector.load %arg5[%c5, %c0_73, %c0_74] : memref<9x128x128xbf16, #tpu.memory_space<vmem>>, vector<1x128x128xbf16>
    %64 = vector.shape_cast %63 : vector<1x128x128xbf16> to vector<128x128xbf16>
    %cst_75 = arith.constant dense<0.000000e+00> : vector<128x128xf32>
    %65 = tpu.matmul %62, %64, %cst_75 {dimension_numbers = #tpu.dot_dimension_numbers<[1], [0], [0], [1], [0, 0, 1, 1], [], []>} : vector<128x128xbf16>, vector<128x128xbf16>, vector<128x128xf32> -> vector<128x128xf32>
    %66 = arith.addf %59, %65 : vector<128x128xf32>
    %c0_76 = arith.constant 0 : index
    %c2_77 = arith.constant 2 : index
    %c0_78 = arith.constant 0 : index
    %c0_79 = arith.constant 0 : index
    %67 = tpu.strided_load %arg15[%c0_76, %c2_77, %c0_78, %c0_79] {strides = array<i32: 1, 2, 2, 1>} : memref<2x18x18x128xf32, #tpu.memory_space<vmem>>, vector<2x8x8x128xf32>
    %68 = vector.shape_cast %67 : vector<2x8x8x128xf32> to vector<128x128xf32>
    %69 = arith.truncf %68 : vector<128x128xf32> to vector<128x128xbf16>
    %c6 = arith.constant 6 : index
    %c0_80 = arith.constant 0 : index
    %c0_81 = arith.constant 0 : index
    %70 = vector.load %arg5[%c6, %c0_80, %c0_81] : memref<9x128x128xbf16, #tpu.memory_space<vmem>>, vector<1x128x128xbf16>
    %71 = vector.shape_cast %70 : vector<1x128x128xbf16> to vector<128x128xbf16>
    %cst_82 = arith.constant dense<0.000000e+00> : vector<128x128xf32>
    %72 = tpu.matmul %69, %71, %cst_82 {dimension_numbers = #tpu.dot_dimension_numbers<[1], [0], [0], [1], [0, 0, 1, 1], [], []>} : vector<128x128xbf16>, vector<128x128xbf16>, vector<128x128xf32> -> vector<128x128xf32>
    %73 = arith.addf %66, %72 : vector<128x128xf32>
    %c0_83 = arith.constant 0 : index
    %c2_84 = arith.constant 2 : index
    %c1_85 = arith.constant 1 : index
    %c0_86 = arith.constant 0 : index
    %74 = tpu.strided_load %arg15[%c0_83, %c2_84, %c1_85, %c0_86] {strides = array<i32: 1, 2, 2, 1>} : memref<2x18x18x128xf32, #tpu.memory_space<vmem>>, vector<2x8x8x128xf32>
    %75 = vector.shape_cast %74 : vector<2x8x8x128xf32> to vector<128x128xf32>
    %76 = arith.truncf %75 : vector<128x128xf32> to vector<128x128xbf16>
    %c7 = arith.constant 7 : index
    %c0_87 = arith.constant 0 : index
    %c0_88 = arith.constant 0 : index
    %77 = vector.load %arg5[%c7, %c0_87, %c0_88] : memref<9x128x128xbf16, #tpu.memory_space<vmem>>, vector<1x128x128xbf16>
    %78 = vector.shape_cast %77 : vector<1x128x128xbf16> to vector<128x128xbf16>
    %cst_89 = arith.constant dense<0.000000e+00> : vector<128x128xf32>
    %79 = tpu.matmul %76, %78, %cst_89 {dimension_numbers = #tpu.dot_dimension_numbers<[1], [0], [0], [1], [0, 0, 1, 1], [], []>} : vector<128x128xbf16>, vector<128x128xbf16>, vector<128x128xf32> -> vector<128x128xf32>
    %80 = arith.addf %73, %79 : vector<128x128xf32>
    %c0_90 = arith.constant 0 : index
    %c2_91 = arith.constant 2 : index
    %c2_92 = arith.constant 2 : index
    %c0_93 = arith.constant 0 : index
    %81 = tpu.strided_load %arg15[%c0_90, %c2_91, %c2_92, %c0_93] {strides = array<i32: 1, 2, 2, 1>} : memref<2x18x18x128xf32, #tpu.memory_space<vmem>>, vector<2x8x8x128xf32>
    %82 = vector.shape_cast %81 : vector<2x8x8x128xf32> to vector<128x128xf32>
    %83 = arith.truncf %82 : vector<128x128xf32> to vector<128x128xbf16>
    %c8 = arith.constant 8 : index
    %c0_94 = arith.constant 0 : index
    %c0_95 = arith.constant 0 : index
    %84 = vector.load %arg5[%c8, %c0_94, %c0_95] : memref<9x128x128xbf16, #tpu.memory_space<vmem>>, vector<1x128x128xbf16>
    %85 = vector.shape_cast %84 : vector<1x128x128xbf16> to vector<128x128xbf16>
    %cst_96 = arith.constant dense<0.000000e+00> : vector<128x128xf32>
    %86 = tpu.matmul %83, %85, %cst_96 {dimension_numbers = #tpu.dot_dimension_numbers<[1], [0], [0], [1], [0, 0, 1, 1], [], []>} : vector<128x128xbf16>, vector<128x128xbf16>, vector<128x128xf32> -> vector<128x128xf32>
    %87 = arith.addf %80, %86 : vector<128x128xf32>
    %c0_97 = arith.constant 0 : index
    %c0_98 = arith.constant 0 : index
    %88 = vector.load %arg6[%c0_97, %c0_98] : memref<1x128xf32, #tpu.memory_space<vmem>>, vector<1x128xf32>
    %89 = vector.broadcast %88 : vector<1x128xf32> to vector<128x128xf32>
    %90 = arith.mulf %87, %89 : vector<128x128xf32>
    %c0_99 = arith.constant 0 : index
    %c0_100 = arith.constant 0 : index
    %91 = vector.load %arg7[%c0_99, %c0_100] : memref<1x128xf32, #tpu.memory_space<vmem>>, vector<1x128xf32>
    %92 = vector.broadcast %91 : vector<1x128xf32> to vector<128x128xf32>
    %93 = arith.addf %90, %92 : vector<128x128xf32>
    %cst_101 = arith.constant 0.000000e+00 : f32
    %94 = vector.broadcast %cst_101 : f32 to vector<128x128xf32>
    %95 = arith.cmpf oge, %93, %94 : vector<128x128xf32>
    %cst_102 = arith.constant 0.00999999977 : f32
    %96 = vector.broadcast %cst_102 : f32 to vector<128x128xf32>
    %97 = arith.mulf %96, %93 : vector<128x128xf32>
    %98 = arith.select %95, %93, %97 : vector<128x128xi1>, vector<128x128xf32>
    %c0_103 = arith.constant 0 : index
    %c0_104 = arith.constant 0 : index
    %c0_105 = arith.constant 0 : index
    %c0_106 = arith.constant 0 : index
    %99 = tpu.strided_load %arg1[%c0_103, %c0_104, %c0_105, %c0_106] {strides = array<i32: 1, 2, 2, 1>} : memref<2x16x16x32xf32, #tpu.memory_space<vmem>>, vector<2x8x8x32xf32>
    %100 = vector.shape_cast %99 : vector<2x8x8x32xf32> to vector<128x32xf32>
    %101 = arith.truncf %100 : vector<128x32xf32> to vector<128x32xbf16>
    %c0_107 = arith.constant 0 : index
    %c0_108 = arith.constant 0 : index
    %102 = vector.load %arg11[%c0_107, %c0_108] : memref<32x128xbf16, #tpu.memory_space<vmem>>, vector<32x128xbf16>
    %cst_109 = arith.constant dense<0.000000e+00> : vector<128x128xf32>
    %103 = tpu.matmul %101, %102, %cst_109 {dimension_numbers = #tpu.dot_dimension_numbers<[1], [0], [0], [1], [0, 0, 1, 1], [], []>} : vector<128x32xbf16>, vector<32x128xbf16>, vector<128x128xf32> -> vector<128x128xf32>
    %c0_110 = arith.constant 0 : index
    %c0_111 = arith.constant 0 : index
    %104 = vector.load %arg12[%c0_110, %c0_111] : memref<1x128xf32, #tpu.memory_space<vmem>>, vector<1x128xf32>
    %105 = vector.broadcast %104 : vector<1x128xf32> to vector<128x128xf32>
    %106 = arith.mulf %103, %105 : vector<128x128xf32>
    %c0_112 = arith.constant 0 : index
    %c0_113 = arith.constant 0 : index
    %107 = vector.load %arg13[%c0_112, %c0_113] : memref<1x128xf32, #tpu.memory_space<vmem>>, vector<1x128xf32>
    %108 = vector.broadcast %107 : vector<1x128xf32> to vector<128x128xf32>
    %109 = arith.addf %106, %108 : vector<128x128xf32>
    %110 = arith.truncf %98 : vector<128x128xf32> to vector<128x128xbf16>
    %c0_114 = arith.constant 0 : index
    %c0_115 = arith.constant 0 : index
    %111 = vector.load %arg8[%c0_114, %c0_115] : memref<128x128xbf16, #tpu.memory_space<vmem>>, vector<128x128xbf16>
    %cst_116 = arith.constant dense<0.000000e+00> : vector<128x128xf32>
    %112 = tpu.matmul %110, %111, %cst_116 {dimension_numbers = #tpu.dot_dimension_numbers<[1], [0], [0], [1], [0, 0, 1, 1], [], []>} : vector<128x128xbf16>, vector<128x128xbf16>, vector<128x128xf32> -> vector<128x128xf32>
    %c0_117 = arith.constant 0 : index
    %c0_118 = arith.constant 0 : index
    %113 = vector.load %arg9[%c0_117, %c0_118] : memref<1x128xf32, #tpu.memory_space<vmem>>, vector<1x128xf32>
    %114 = vector.broadcast %113 : vector<1x128xf32> to vector<128x128xf32>
    %115 = arith.mulf %112, %114 : vector<128x128xf32>
    %c0_119 = arith.constant 0 : index
    %c0_120 = arith.constant 0 : index
    %116 = vector.load %arg10[%c0_119, %c0_120] : memref<1x128xf32, #tpu.memory_space<vmem>>, vector<1x128xf32>
    %117 = vector.broadcast %116 : vector<1x128xf32> to vector<128x128xf32>
    %118 = arith.addf %115, %117 : vector<128x128xf32>
    %119 = arith.addf %118, %109 : vector<128x128xf32>
    %cst_121 = arith.constant 0.000000e+00 : f32
    %120 = vector.broadcast %cst_121 : f32 to vector<128x128xf32>
    %121 = arith.cmpf oge, %119, %120 : vector<128x128xf32>
    %cst_122 = arith.constant 0.00999999977 : f32
    %122 = vector.broadcast %cst_122 : f32 to vector<128x128xf32>
    %123 = arith.mulf %122, %119 : vector<128x128xf32>
    %124 = arith.select %121, %119, %123 : vector<128x128xi1>, vector<128x128xf32>
    %125 = vector.shape_cast %124 : vector<128x128xf32> to vector<2x8x8x128xf32>
    %c0_123 = arith.constant 0 : index
    %c0_124 = arith.constant 0 : index
    %c0_125 = arith.constant 0 : index
    %c0_126 = arith.constant 0 : index
    %126 = vector.load %arg14[%c0_123, %c0_124, %c0_125, %c0_126] : memref<2x8x8x128xf32, #tpu.memory_space<vmem>>, vector<2x8x8x128xf32>
    tpu.vector_store %arg14[%c0_123, %c0_124, %c0_125, %c0_126], %125 {strides = array<i32>} : memref<2x8x8x128xf32, #tpu.memory_space<vmem>>, vector<2x8x8x128xf32>,
    return
  }
  func.func @transform_0(%arg0: i32) -> (i32, i32, i32, i32) {
    %c0_i32 = arith.constant 0 : i32
    %c0_i32_0 = arith.constant 0 : i32
    %c0_i32_1 = arith.constant 0 : i32
    %c0_i32_2 = arith.constant 0 : i32
    return %arg0, %c0_i32, %c0_i32_0, %c0_i32_1 : i32, i32, i32, i32
  }
  func.func @transform_1(%arg0: i32) -> (i32, i32) {
    %c0_i32 = arith.constant 0 : i32
    %c0_i32_0 = arith.constant 0 : i32
    %c0_i32_1 = arith.constant 0 : i32
    return %c0_i32, %c0_i32_0 : i32, i32
  }
  func.func @transform_2(%arg0: i32) -> (i32, i32) {
    %c0_i32 = arith.constant 0 : i32
    %c0_i32_0 = arith.constant 0 : i32
    %c0_i32_1 = arith.constant 0 : i32
    return %c0_i32, %c0_i32_0 : i32, i32
  }
  func.func @transform_3(%arg0: i32) -> (i32, i32) {
    %c0_i32 = arith.constant 0 : i32
    %c0_i32_0 = arith.constant 0 : i32
    %c0_i32_1 = arith.constant 0 : i32
    return %c0_i32, %c0_i32_0 : i32, i32
  }
  func.func @transform_4(%arg0: i32) -> (i32, i32, i32) {
    %c0_i32 = arith.constant 0 : i32
    %c0_i32_0 = arith.constant 0 : i32
    %c0_i32_1 = arith.constant 0 : i32
    %c0_i32_2 = arith.constant 0 : i32
    return %c0_i32, %c0_i32_0, %c0_i32_1 : i32, i32, i32
  }
  func.func @transform_5(%arg0: i32) -> (i32, i32) {
    %c0_i32 = arith.constant 0 : i32
    %c0_i32_0 = arith.constant 0 : i32
    %c0_i32_1 = arith.constant 0 : i32
    return %c0_i32, %c0_i32_0 : i32, i32
  }
  func.func @transform_6(%arg0: i32) -> (i32, i32) {
    %c0_i32 = arith.constant 0 : i32
    %c0_i32_0 = arith.constant 0 : i32
    %c0_i32_1 = arith.constant 0 : i32
    return %c0_i32, %c0_i32_0 : i32, i32
  }
  func.func @transform_7(%arg0: i32) -> (i32, i32) {
    %c0_i32 = arith.constant 0 : i32
    %c0_i32_0 = arith.constant 0 : i32
    %c0_i32_1 = arith.constant 0 : i32
    return %c0_i32, %c0_i32_0 : i32, i32
  }
  func.func @transform_8(%arg0: i32) -> (i32, i32) {
    %c0_i32 = arith.constant 0 : i32
    %c0_i32_0 = arith.constant 0 : i32
    %c0_i32_1 = arith.constant 0 : i32
    return %c0_i32, %c0_i32_0 : i32, i32
  }
  func.func @transform_9(%arg0: i32) -> (i32, i32) {
    %c0_i32 = arith.constant 0 : i32
    %c0_i32_0 = arith.constant 0 : i32
    %c0_i32_1 = arith.constant 0 : i32
    return %c0_i32, %c0_i32_0 : i32, i32
  }
  func.func @transform_10(%arg0: i32) -> (i32, i32) {
    %c0_i32 = arith.constant 0 : i32
    %c0_i32_0 = arith.constant 0 : i32
    %c0_i32_1 = arith.constant 0 : i32
    return %c0_i32, %c0_i32_0 : i32, i32
  }
  func.func @transform_11(%arg0: i32) -> (i32, i32) {
    %c0_i32 = arith.constant 0 : i32
    %c0_i32_0 = arith.constant 0 : i32
    %c0_i32_1 = arith.constant 0 : i32
    return %c0_i32, %c0_i32_0 : i32, i32
  }
  func.func @transform_12(%arg0: i32) -> (i32, i32) {
    %c0_i32 = arith.constant 0 : i32
    %c0_i32_0 = arith.constant 0 : i32
    %c0_i32_1 = arith.constant 0 : i32
    return %c0_i32, %c0_i32_0 : i32, i32
  }
  func.func @transform_13(%arg0: i32) -> (i32, i32, i32, i32) {
    %c0_i32 = arith.constant 0 : i32
    %c0_i32_0 = arith.constant 0 : i32
    %c0_i32_1 = arith.constant 0 : i32
    %c0_i32_2 = arith.constant 0 : i32
    return %arg0, %c0_i32, %c0_i32_0, %c0_i32_1 : i32, i32, i32, i32
  }
}

</mosaic_0001>

<llo_original>
// kernel: resnext_bottleneck_forward.1
$region0: #{resnext_bottleneck_forward.1}
  #allocation0 [shape = 'u32[]', space=smem, size = 0x4, offset = 0x4, fixed_abs, tag = 'smem constant byte address 0x4 - core index']
  #allocation1 [shape = 'u32[72,128]{1,0:T(1,128)}', space=vmem, size = 0x9000, scoped, tag = 'internal scratch']
  #allocation2 [shape = 'f32[2,18,18,128]{3,2,1,0:T(8,128)}', space=vmem, size = 0x6c000, scoped, tag = 'scratch operand']
  %s0 = inlined_call_operand.vmem [shape: f32[2,16,16,32], index: 0, kind: input, shape index: {}]
  %s1 = inlined_call_operand.vmem [shape: bf16[32,128], index: 1, kind: input, shape index: {}]
  %s2 = inlined_call_operand.vmem [shape: f32[1,128], index: 2, kind: input, shape index: {}]
  %s3 = inlined_call_operand.vmem [shape: f32[1,128], index: 3, kind: input, shape index: {}]
  %s4 = inlined_call_operand.vmem [shape: bf16[9,128,128], index: 4, kind: input, shape index: {}]
  %s5 = inlined_call_operand.vmem [shape: f32[1,128], index: 5, kind: input, shape index: {}]
  %s6 = inlined_call_operand.vmem [shape: f32[1,128], index: 6, kind: input, shape index: {}]
  %s7 = inlined_call_operand.vmem [shape: bf16[128,128], index: 7, kind: input, shape index: {}]
  %s8 = inlined_call_operand.vmem [shape: f32[1,128], index: 8, kind: input, shape index: {}]
  %s9 = inlined_call_operand.vmem [shape: f32[1,128], index: 9, kind: input, shape index: {}]
  %s10 = inlined_call_operand.vmem [shape: bf16[32,128], index: 10, kind: input, shape index: {}]
  %s11 = inlined_call_operand.vmem [shape: f32[1,128], index: 11, kind: input, shape index: {}]
  %s12 = inlined_call_operand.vmem [shape: f32[1,128], index: 12, kind: input, shape index: {}]
  %s13 = inlined_call_operand.vmem [shape: f32[2,8,8,128], index: 13, kind: output, shape index: {}]
  %s14 = sld [smem:[#allocation0]]
  $region62: #{resnext_bottleneck_forward.1} parent=0
    _
  %s16 = ssub.s32 1, %s14
  %s17 = scalar_select 0, %s16, %s14
  // Predicated region
  $region2: #{resnext_bottleneck_forward.1} parent=0 // pred_check
    _
  $region3: #{resnext_bottleneck_forward.1} parent=0 // pred_check_branch
    %19 = sbr.rel (0) target = $region5
  $region4: #{resnext_bottleneck_forward.1} parent=0 // pred_region
    _
  $region5: #{resnext_bottleneck_forward.1} parent=0 // pred_fallthru
    _
  // Predicated region
  $region6: #{resnext_bottleneck_forward.1} parent=0 // pred_check
    _
  $region7: #{resnext_bottleneck_forward.1} parent=0 // pred_check_branch
    %21 = sbr.rel (0) target = $region9
  $region8: #{resnext_bottleneck_forward.1} parent=0 // pred_region
    _
  $region9: #{resnext_bottleneck_forward.1} parent=0 // pred_fallthru
    _
  // Predicated region
  $region10: #{resnext_bottleneck_forward.1} parent=0 // pred_check
    _
  $region11: #{resnext_bottleneck_forward.1} parent=0 // pred_check_branch
    %23 = sbr.rel (0) target = $region13
  $region12: #{resnext_bottleneck_forward.1} parent=0 // pred_region
    _
  $region13: #{resnext_bottleneck_forward.1} parent=0 // pred_fallthru
    _
  // Predicated region
  $region14: #{resnext_bottleneck_forward.1} parent=0 // pred_check
    _
  $region15: #{resnext_bottleneck_forward.1} parent=0 // pred_check_branch
    %25 = sbr.rel (0) target = $region17
  $region16: #{resnext_bottleneck_forward.1} parent=0 // pred_region
    _
  $region17: #{resnext_bottleneck_forward.1} parent=0 // pred_fallthru
    _
  // Predicated region
  $region18: #{resnext_bottleneck_forward.1} parent=0 // pred_check
    _
  $region19: #{resnext_bottleneck_forward.1} parent=0 // pred_check_branch
    %27 = sbr.rel (0) target = $region21
  $region20: #{resnext_bottleneck_forward.1} parent=0 // pred_region
    _
  $region21: #{resnext_bottleneck_forward.1} parent=0 // pred_fallthru
    _
  // Predicated region
  $region22: #{resnext_bottleneck_forward.1} parent=0 // pred_check
    _
  $region23: #{resnext_bottleneck_forward.1} parent=0 // pred_check_branch
    %29 = sbr.rel (0) target = $region25
  $region24: #{resnext_bottleneck_forward.1} parent=0 // pred_region
    _
  $region25: #{resnext_bottleneck_forward.1} parent=0 // pred_fallthru
    _
  // Predicated region
  $region26: #{resnext_bottleneck_forward.1} parent=0 // pred_check
    _
  $region27: #{resnext_bottleneck_forward.1} parent=0 // pred_check_branch
    %31 = sbr.rel (0) target = $region29
  $region28: #{resnext_bottleneck_forward.1} parent=0 // pred_region
    _
  $region29: #{resnext_bottleneck_forward.1} parent=0 // pred_fallthru
    _
  // Predicated region
  $region30: #{resnext_bottleneck_forward.1} parent=0 // pred_check
    _
  $region31: #{resnext_bottleneck_forward.1} parent=0 // pred_check_branch
    %33 = sbr.rel (0) target = $region33
  $region32: #{resnext_bottleneck_forward.1} parent=0 // pred_region
    _
  $region33: #{resnext_bottleneck_forward.1} parent=0 // pred_fallthru
    _
  // Predicated region
  $region34: #{resnext_bottleneck_forward.1} parent=0 // pred_check
    _
  $region35: #{resnext_bottleneck_forward.1} parent=0 // pred_check_branch
    %35 = sbr.rel (0) target = $region37
  $region36: #{resnext_bottleneck_forward.1} parent=0 // pred_region
    _
  $region37: #{resnext_bottleneck_forward.1} parent=0 // pred_fallthru
    _
  // Predicated region
  $region38: #{resnext_bottleneck_forward.1} parent=0 // pred_check
    _
  $region39: #{resnext_bottleneck_forward.1} parent=0 // pred_check_branch
    %37 = sbr.rel (0) target = $region41
  $region40: #{resnext_bottleneck_forward.1} parent=0 // pred_region
    _
  $region41: #{resnext_bottleneck_forward.1} parent=0 // pred_fallthru
    _
  // Predicated region
  $region42: #{resnext_bottleneck_forward.1} parent=0 // pred_check
    _
  $region43: #{resnext_bottleneck_forward.1} parent=0 // pred_check_branch
    %39 = sbr.rel (0) target = $region45
  $region44: #{resnext_bottleneck_forward.1} parent=0 // pred_region
    _
  $region45: #{resnext_bottleneck_forward.1} parent=0 // pred_fallthru
    _
  // Predicated region
  $region46: #{resnext_bottleneck_forward.1} parent=0 // pred_check
    _
  $region47: #{resnext_bottleneck_forward.1} parent=0 // pred_check_branch
    %41 = sbr.rel (0) target = $region49
  $region48: #{resnext_bottleneck_forward.1} parent=0 // pred_region
    _
  $region49: #{resnext_bottleneck_forward.1} parent=0 // pred_fallthru
    _
  // Predicated region
  $region50: #{resnext_bottleneck_forward.1} parent=0 // pred_check
    _
  $region51: #{resnext_bottleneck_forward.1} parent=0 // pred_check_branch
    %43 = sbr.rel (0) target = $region53
  $region52: #{resnext_bottleneck_forward.1} parent=0 // pred_region
    _
  $region53: #{resnext_bottleneck_forward.1} parent=0 // pred_fallthru
    _
  %v45 = vld [vmem:[%s0] sm:$0xff]
  %v46 = vld [vmem:[%s0 + $0x8] sm:$0xff]
  %v47 = vld [vmem:[%s0 + $0x10] sm:$0xff]
  %v48 = vld [vmem:[%s0 + $0x18] sm:$0xff]
  %v49 = vld [vmem:[%s0 + $0x20] sm:$0xff]
  %v50 = vld [vmem:[%s0 + $0x28] sm:$0xff]
  %v51 = vld [vmem:[%s0 + $0x30] sm:$0xff]
  %v52 = vld [vmem:[%s0 + $0x38] sm:$0xff]
  %v53 = vld [vmem:[%s0 + $0x40] sm:$0xff]
  %v54 = vld [vmem:[%s0 + $0x48] sm:$0xff]
  %v55 = vld [vmem:[%s0 + $0x50] sm:$0xff]
  %v56 = vld [vmem:[%s0 + $0x58] sm:$0xff]
  %v57 = vld [vmem:[%s0 + $0x60] sm:$0xff]
  %v58 = vld [vmem:[%s0 + $0x68] sm:$0xff]
  %v59 = vld [vmem:[%s0 + $0x70] sm:$0xff]
  %v60 = vld [vmem:[%s0 + $0x78] sm:$0xff]
  %v61 = vld [vmem:[%s0 + $0x80] sm:$0xff]
  %v62 = vld [vmem:[%s0 + $0x88] sm:$0xff]
  %v63 = vld [vmem:[%s0 + $0x90] sm:$0xff]
  %v64 = vld [vmem:[%s0 + $0x98] sm:$0xff]
  %v65 = vld [vmem:[%s0 + $0xa0] sm:$0xff]
  %v66 = vld [vmem:[%s0 + $0xa8] sm:$0xff]
  %v67 = vld [vmem:[%s0 + $0xb0] sm:$0xff]
  %v68 = vld [vmem:[%s0 + $0xb8] sm:$0xff]
  %v69 = vld [vmem:[%s0 + $0xc0] sm:$0xff]
  %v70 = vld [vmem:[%s0 + $0xc8] sm:$0xff]
  %v71 = vld [vmem:[%s0 + $0xd0] sm:$0xff]
  %v72 = vld [vmem:[%s0 + $0xd8] sm:$0xff]
  %v73 = vld [vmem:[%s0 + $0xe0] sm:$0xff]
  %v74 = vld [vmem:[%s0 + $0xe8] sm:$0xff]
  %v75 = vld [vmem:[%s0 + $0xf0] sm:$0xff]
  %v76 = vld [vmem:[%s0 + $0xf8] sm:$0xff]
  %v77 = vld [vmem:[%s0 + $0x100] sm:$0xff]
  %v78 = vld [vmem:[%s0 + $0x108] sm:$0xff]
  %v79 = vld [vmem:[%s0 + $0x110] sm:$0xff]
  %v80 = vld [vmem:[%s0 + $0x118] sm:$0xff]
  %v81 = vld [vmem:[%s0 + $0x120] sm:$0xff]
  %v82 = vld [vmem:[%s0 + $0x128] sm:$0xff]
  %v83 = vld [vmem:[%s0 + $0x130] sm:$0xff]
  %v84 = vld [vmem:[%s0 + $0x138] sm:$0xff]
  %v85 = vld [vmem:[%s0 + $0x140] sm:$0xff]
  %v86 = vld [vmem:[%s0 + $0x148] sm:$0xff]
  %v87 = vld [vmem:[%s0 + $0x150] sm:$0xff]
  %v88 = vld [vmem:[%s0 + $0x158] sm:$0xff]
  %v89 = vld [vmem:[%s0 + $0x160] sm:$0xff]
  %v90 = vld [vmem:[%s0 + $0x168] sm:$0xff]
  %v91 = vld [vmem:[%s0 + $0x170] sm:$0xff]
  %v92 = vld [vmem:[%s0 + $0x178] sm:$0xff]
  %v93 = vld [vmem:[%s0 + $0x180] sm:$0xff]
  %v94 = vld [vmem:[%s0 + $0x188] sm:$0xff]
  %v95 = vld [vmem:[%s0 + $0x190] sm:$0xff]
  %v96 = vld [vmem:[%s0 + $0x198] sm:$0xff]
  %v97 = vld [vmem:[%s0 + $0x1a0] sm:$0xff]
  %v98 = vld [vmem:[%s0 + $0x1a8] sm:$0xff]
  %v99 = vld [vmem:[%s0 + $0x1b0] sm:$0xff]
  %v100 = vld [vmem:[%s0 + $0x1b8] sm:$0xff]
  %v101 = vld [vmem:[%s0 + $0x1c0] sm:$0xff]
  %v102 = vld [vmem:[%s0 + $0x1c8] sm:$0xff]
  %v103 = vld [vmem:[%s0 + $0x1d0] sm:$0xff]
  %v104 = vld [vmem:[%s0 + $0x1d8] sm:$0xff]
  %v105 = vld [vmem:[%s0 + $0x1e0] sm:$0xff]
  %v106 = vld [vmem:[%s0 + $0x1e8] sm:$0xff]
  %v107 = vld [vmem:[%s0 + $0x1f0] sm:$0xff]
  %v108 = vld [vmem:[%s0 + $0x1f8] sm:$0xff]
  %v109 = vpack.c.bf16 %v46, %v45
  %v110 = vpack.c.bf16 %v48, %v47
  %v111 = vpack.c.bf16 %v50, %v49
  %v112 = vpack.c.bf16 %v52, %v51
  %v113 = vpack.c.bf16 %v54, %v53
  %v114 = vpack.c.bf16 %v56, %v55
  %v115 = vpack.c.bf16 %v58, %v57
  %v116 = vpack.c.bf16 %v60, %v59
  %v117 = vpack.c.bf16 %v62, %v61
  %v118 = vpack.c.bf16 %v64, %v63
  %v119 = vpack.c.bf16 %v66, %v65
  %v120 = vpack.c.bf16 %v68, %v67
  %v121 = vpack.c.bf16 %v70, %v69
  %v122 = vpack.c.bf16 %v72, %v71
  %v123 = vpack.c.bf16 %v74, %v73
  %v124 = vpack.c.bf16 %v76, %v75
  %v125 = vpack.c.bf16 %v78, %v77
  %v126 = vpack.c.bf16 %v80, %v79
  %v127 = vpack.c.bf16 %v82, %v81
  %v128 = vpack.c.bf16 %v84, %v83
  %v129 = vpack.c.bf16 %v86, %v85
  %v130 = vpack.c.bf16 %v88, %v87
  %v131 = vpack.c.bf16 %v90, %v89
  %v132 = vpack.c.bf16 %v92, %v91
  %v133 = vpack.c.bf16 %v94, %v93
  %v134 = vpack.c.bf16 %v96, %v95
  %v135 = vpack.c.bf16 %v98, %v97
  %v136 = vpack.c.bf16 %v100, %v99
  %v137 = vpack.c.bf16 %v102, %v101
  %v138 = vpack.c.bf16 %v104, %v103
  %v139 = vpack.c.bf16 %v106, %v105
  %v140 = vpack.c.bf16 %v108, %v107
  %v141 = vld [vmem:[%s1] sm:$0xf]
  %v142 = vld [vmem:[%s1 + $0x4] sm:$0xf]
  %v143 = vld [vmem:[%s1 + $0x8] sm:$0xf]
  %v144 = vld [vmem:[%s1 + $0xc] sm:$0xf]
  %v149 = vunpack.c.l.b16 %v141
  %v150 = vunpack.c.l.b16 %v142
  %v151 = vunpack.c.l.b16 %v143
  %v152 = vunpack.c.l.b16 %v144
  %v153 = vpack.c.b16 %v150, %v149
  %v154 = vpack.c.b16 %v152, %v151
  %vm157 = vcmask 261120
  %v159 = vsel %vm157, %v109, 0
  %v162 = vsel %vm157, %v110, 0
  %v165 = vsel %vm157, %v111, 0
  %v168 = vsel %vm157, %v112, 0
  %v171 = vsel %vm157, %v113, 0
  %v174 = vsel %vm157, %v114, 0
  %v177 = vsel %vm157, %v115, 0
  %v180 = vsel %vm157, %v116, 0
  %v183 = vsel %vm157, %v117, 0
  %v186 = vsel %vm157, %v118, 0
  %v189 = vsel %vm157, %v119, 0
  %v192 = vsel %vm157, %v120, 0
  %v195 = vsel %vm157, %v121, 0
  %v198 = vsel %vm157, %v122, 0
  %v201 = vsel %vm157, %v123, 0
  %v204 = vsel %vm157, %v124, 0
  %v207 = vsel %vm157, %v125, 0
  %v210 = vsel %vm157, %v126, 0
  %v213 = vsel %vm157, %v127, 0
  %v216 = vsel %vm157, %v128, 0
  %v219 = vsel %vm157, %v129, 0
  %v222 = vsel %vm157, %v130, 0
  %v225 = vsel %vm157, %v131, 0
  %v228 = vsel %vm157, %v132, 0
  %v231 = vsel %vm157, %v133, 0
  %v234 = vsel %vm157, %v134, 0
  %v237 = vsel %vm157, %v135, 0
  %v240 = vsel %vm157, %v136, 0
  %v243 = vsel %vm157, %v137, 0
  %v246 = vsel %vm157, %v138, 0
  %v249 = vsel %vm157, %v139, 0
  %v252 = vsel %vm157, %v140, 0
  %254 = vmatpush.bf16.msra.mxu0 0
  %255 = vmatpush.bf16.msra.mxu0 0
  %256 = vmatpush.bf16.msra.mxu0 0
  %257 = vmatpush.bf16.msra.mxu0 0
  %258 = vmatpush.bf16.msra.mxu0 0
  %259 = vmatpush.bf16.msra.mxu0 0
  %260 = vmatpush.bf16.msra.mxu0 %v154
  %261 = vmatpush.bf16.msra.mxu0 %v153
  %262 = vmatmul.bf16.gmra.mxu0 %v159
  %v263 = vpop.f32.mrf.mxu0
  %v264 = vadd.f32 0.0, %v263
  %v265 = vpop.f32.mrf.mxu0
  %v266 = vadd.f32 0.0, %v265
  %267 = vmatmul.bf16.gmra.mxu0 %v162
  %v268 = vpop.f32.mrf.mxu0
  %v269 = vadd.f32 0.0, %v268
  %v270 = vpop.f32.mrf.mxu0
  %v271 = vadd.f32 0.0, %v270
  %272 = vmatmul.bf16.gmra.mxu0 %v165
  %v273 = vpop.f32.mrf.mxu0
  %v274 = vadd.f32 0.0, %v273
  %v275 = vpop.f32.mrf.mxu0
  %v276 = vadd.f32 0.0, %v275
  %277 = vmatmul.bf16.gmra.mxu0 %v168
  %v278 = vpop.f32.mrf.mxu0
  %v279 = vadd.f32 0.0, %v278
  %v280 = vpop.f32.mrf.mxu0
  %v281 = vadd.f32 0.0, %v280
  %282 = vmatmul.bf16.gmra.mxu0 %v171
  %v283 = vpop.f32.mrf.mxu0
  %v284 = vadd.f32 0.0, %v283
  %v285 = vpop.f32.mrf.mxu0
  %v286 = vadd.f32 0.0, %v285
  %287 = vmatmul.bf16.gmra.mxu0 %v174
  %v288 = vpop.f32.mrf.mxu0
  %v289 = vadd.f32 0.0, %v288
  %v290 = vpop.f32.mrf.mxu0
  %v291 = vadd.f32 0.0, %v290
  %292 = vmatmul.bf16.gmra.mxu0 %v177
  %v293 = vpop.f32.mrf.mxu0
  %v294 = vadd.f32 0.0, %v293
  %v295 = vpop.f32.mrf.mxu0
  %v296 = vadd.f32 0.0, %v295
  %297 = vmatmul.bf16.gmra.mxu0 %v180
  %v298 = vpop.f32.mrf.mxu0
  %v299 = vadd.f32 0.0, %v298
  %v300 = vpop.f32.mrf.mxu0
  %v301 = vadd.f32 0.0, %v300
  %302 = vmatmul.bf16.gmra.mxu0 %v183
  %v303 = vpop.f32.mrf.mxu0
  %v304 = vadd.f32 0.0, %v303
  %v305 = vpop.f32.mrf.mxu0
  %v306 = vadd.f32 0.0, %v305
  %307 = vmatmul.bf16.gmra.mxu0 %v186
  %v308 = vpop.f32.mrf.mxu0
  %v309 = vadd.f32 0.0, %v308
  %v310 = vpop.f32.mrf.mxu0
  %v311 = vadd.f32 0.0, %v310
  %312 = vmatmul.bf16.gmra.mxu0 %v189
  %v313 = vpop.f32.mrf.mxu0
  %v314 = vadd.f32 0.0, %v313
  %v315 = vpop.f32.mrf.mxu0
  %v316 = vadd.f32 0.0, %v315
  %317 = vmatmul.bf16.gmra.mxu0 %v192
  %v318 = vpop.f32.mrf.mxu0
  %v319 = vadd.f32 0.0, %v318
  %v320 = vpop.f32.mrf.mxu0
  %v321 = vadd.f32 0.0, %v320
  %322 = vmatmul.bf16.gmra.mxu0 %v195
  %v323 = vpop.f32.mrf.mxu0
  %v324 = vadd.f32 0.0, %v323
  %v325 = vpop.f32.mrf.mxu0
  %v326 = vadd.f32 0.0, %v325
  %327 = vmatmul.bf16.gmra.mxu0 %v198
  %v328 = vpop.f32.mrf.mxu0
  %v329 = vadd.f32 0.0, %v328
  %v330 = vpop.f32.mrf.mxu0
  %v331 = vadd.f32 0.0, %v330
  %332 = vmatmul.bf16.gmra.mxu0 %v201
  %v333 = vpop.f32.mrf.mxu0
  %v334 = vadd.f32 0.0, %v333
  %v335 = vpop.f32.mrf.mxu0
  %v336 = vadd.f32 0.0, %v335
  %337 = vmatmul.bf16.gmra.mxu0 %v204
  %v338 = vpop.f32.mrf.mxu0
  %v339 = vadd.f32 0.0, %v338
  %v340 = vpop.f32.mrf.mxu0
  %v341 = vadd.f32 0.0, %v340
  %342 = vmatmul.bf16.gmra.mxu0 %v207
  %v343 = vpop.f32.mrf.mxu0
  %v344 = vadd.f32 0.0, %v343
  %v345 = vpop.f32.mrf.mxu0
  %v346 = vadd.f32 0.0, %v345
  %347 = vmatmul.bf16.gmra.mxu0 %v210
  %v348 = vpop.f32.mrf.mxu0
  %v349 = vadd.f32 0.0, %v348
  %v350 = vpop.f32.mrf.mxu0
  %v351 = vadd.f32 0.0, %v350
  %352 = vmatmul.bf16.gmra.mxu0 %v213
  %v353 = vpop.f32.mrf.mxu0
  %v354 = vadd.f32 0.0, %v353
  %v355 = vpop.f32.mrf.mxu0
  %v356 = vadd.f32 0.0, %v355
  %357 = vmatmul.bf16.gmra.mxu0 %v216
  %v358 = vpop.f32.mrf.mxu0
  %v359 = vadd.f32 0.0, %v358
  %v360 = vpop.f32.mrf.mxu0
  %v361 = vadd.f32 0.0, %v360
  %362 = vmatmul.bf16.gmra.mxu0 %v219
  %v363 = vpop.f32.mrf.mxu0
  %v364 = vadd.f32 0.0, %v363
  %v365 = vpop.f32.mrf.mxu0
  %v366 = vadd.f32 0.0, %v365
  %367 = vmatmul.bf16.gmra.mxu0 %v222
  %v368 = vpop.f32.mrf.mxu0
  %v369 = vadd.f32 0.0, %v368
  %v370 = vpop.f32.mrf.mxu0
  %v371 = vadd.f32 0.0, %v370
  %372 = vmatmul.bf16.gmra.mxu0 %v225
  %v373 = vpop.f32.mrf.mxu0
  %v374 = vadd.f32 0.0, %v373
  %v375 = vpop.f32.mrf.mxu0
  %v376 = vadd.f32 0.0, %v375
  %377 = vmatmul.bf16.gmra.mxu0 %v228
  %v378 = vpop.f32.mrf.mxu0
  %v379 = vadd.f32 0.0, %v378
  %v380 = vpop.f32.mrf.mxu0
  %v381 = vadd.f32 0.0, %v380
  %382 = vmatmul.bf16.gmra.mxu0 %v231
  %v383 = vpop.f32.mrf.mxu0
  %v384 = vadd.f32 0.0, %v383
  %v385 = vpop.f32.mrf.mxu0
  %v386 = vadd.f32 0.0, %v385
  %387 = vmatmul.bf16.gmra.mxu0 %v234
  %v388 = vpop.f32.mrf.mxu0
  %v389 = vadd.f32 0.0, %v388
  %v390 = vpop.f32.mrf.mxu0
  %v391 = vadd.f32 0.0, %v390
  %392 = vmatmul.bf16.gmra.mxu0 %v237
  %v393 = vpop.f32.mrf.mxu0
  %v394 = vadd.f32 0.0, %v393
  %v395 = vpop.f32.mrf.mxu0
  %v396 = vadd.f32 0.0, %v395
  %397 = vmatmul.bf16.gmra.mxu0 %v240
  %v398 = vpop.f32.mrf.mxu0
  %v399 = vadd.f32 0.0, %v398
  %v400 = vpop.f32.mrf.mxu0
  %v401 = vadd.f32 0.0, %v400
  %402 = vmatmul.bf16.gmra.mxu0 %v243
  %v403 = vpop.f32.mrf.mxu0
  %v404 = vadd.f32 0.0, %v403
  %v405 = vpop.f32.mrf.mxu0
  %v406 = vadd.f32 0.0, %v405
  %407 = vmatmul.bf16.gmra.mxu0 %v246
  %v408 = vpop.f32.mrf.mxu0
  %v409 = vadd.f32 0.0, %v408
  %v410 = vpop.f32.mrf.mxu0
  %v411 = vadd.f32 0.0, %v410
  %412 = vmatmul.bf16.gmra.mxu0 %v249
  %v413 = vpop.f32.mrf.mxu0
  %v414 = vadd.f32 0.0, %v413
  %v415 = vpop.f32.mrf.mxu0
  %v416 = vadd.f32 0.0, %v415
  %417 = vmatmul.bf16.gmra.mxu0 %v252
  %v418 = vpop.f32.mrf.mxu0
  %v419 = vadd.f32 0.0, %v418
  %v420 = vpop.f32.mrf.mxu0
  %v421 = vadd.f32 0.0, %v420
  %422 = vdwg.mxu0
  %v423 = vld [vmem:[%s2] sm:$0x1]
  %v425 = vperm.slane %v423, 0
  %v427 = vmul.f32 %v264, %v425
  %v428 = vmul.f32 %v266, %v425
  %v429 = vmul.f32 %v269, %v425
  %v430 = vmul.f32 %v271, %v425
  %v431 = vmul.f32 %v274, %v425
  %v432 = vmul.f32 %v276, %v425
  %v433 = vmul.f32 %v279, %v425
  %v434 = vmul.f32 %v281, %v425
  %v435 = vmul.f32 %v284, %v425
  %v436 = vmul.f32 %v286, %v425
  %v437 = vmul.f32 %v289, %v425
  %v438 = vmul.f32 %v291, %v425
  %v439 = vmul.f32 %v294, %v425
  %v440 = vmul.f32 %v296, %v425
  %v441 = vmul.f32 %v299, %v425
  %v442 = vmul.f32 %v301, %v425
  %v443 = vmul.f32 %v304, %v425
  %v444 = vmul.f32 %v306, %v425
  %v445 = vmul.f32 %v309, %v425
  %v446 = vmul.f32 %v311, %v425
  %v447 = vmul.f32 %v314, %v425
  %v448 = vmul.f32 %v316, %v425
  %v449 = vmul.f32 %v319, %v425
  %v450 = vmul.f32 %v321, %v425
  %v451 = vmul.f32 %v324, %v425
  %v452 = vmul.f32 %v326, %v425
  %v453 = vmul.f32 %v329, %v425
  %v454 = vmul.f32 %v331, %v425
  %v455 = vmul.f32 %v334, %v425
  %v456 = vmul.f32 %v336, %v425
  %v457 = vmul.f32 %v339, %v425
  %v458 = vmul.f32 %v341, %v425
  %v459 = vmul.f32 %v344, %v425
  %v460 = vmul.f32 %v346, %v425
  %v461 = vmul.f32 %v349, %v425
  %v462 = vmul.f32 %v351, %v425
  %v463 = vmul.f32 %v354, %v425
  %v464 = vmul.f32 %v356, %v425
  %v465 = vmul.f32 %v359, %v425
  %v466 = vmul.f32 %v361, %v425
  %v467 = vmul.f32 %v364, %v425
  %v468 = vmul.f32 %v366, %v425
  %v469 = vmul.f32 %v369, %v425
  %v470 = vmul.f32 %v371, %v425
  %v471 = vmul.f32 %v374, %v425
  %v472 = vmul.f32 %v376, %v425
  %v473 = vmul.f32 %v379, %v425
  %v474 = vmul.f32 %v381, %v425
  %v475 = vmul.f32 %v384, %v425
  %v476 = vmul.f32 %v386, %v425
  %v477 = vmul.f32 %v389, %v425
  %v478 = vmul.f32 %v391, %v425
  %v479 = vmul.f32 %v394, %v425
  %v480 = vmul.f32 %v396, %v425
  %v481 = vmul.f32 %v399, %v425
  %v482 = vmul.f32 %v401, %v425
  %v483 = vmul.f32 %v404, %v425
  %v484 = vmul.f32 %v406, %v425
  %v485 = vmul.f32 %v409, %v425
  %v486 = vmul.f32 %v411, %v425
  %v487 = vmul.f32 %v414, %v425
  %v488 = vmul.f32 %v416, %v425
  %v489 = vmul.f32 %v419, %v425
  %v490 = vmul.f32 %v421, %v425
  %v491 = vld [vmem:[%s3] sm:$0x1]
  %v493 = vperm.slane %v491, 0
  %v495 = vadd.f32 %v427, %v493
  %v496 = vadd.f32 %v428, %v493
  %v497 = vadd.f32 %v429, %v493
  %v498 = vadd.f32 %v430, %v493
  %v499 = vadd.f32 %v431, %v493
  %v500 = vadd.f32 %v432, %v493
  %v501 = vadd.f32 %v433, %v493
  %v502 = vadd.f32 %v434, %v493
  %v503 = vadd.f32 %v435, %v493
  %v504 = vadd.f32 %v436, %v493
  %v505 = vadd.f32 %v437, %v493
  %v506 = vadd.f32 %v438, %v493
  %v507 = vadd.f32 %v439, %v493
  %v508 = vadd.f32 %v440, %v493
  %v509 = vadd.f32 %v441, %v493
  %v510 = vadd.f32 %v442, %v493
  %v511 = vadd.f32 %v443, %v493
  %v512 = vadd.f32 %v444, %v493
  %v513 = vadd.f32 %v445, %v493
  %v514 = vadd.f32 %v446, %v493
  %v515 = vadd.f32 %v447, %v493
  %v516 = vadd.f32 %v448, %v493
  %v517 = vadd.f32 %v449, %v493
  %v518 = vadd.f32 %v450, %v493
  %v519 = vadd.f32 %v451, %v493
  %v520 = vadd.f32 %v452, %v493
  %v521 = vadd.f32 %v453, %v493
  %v522 = vadd.f32 %v454, %v493
  %v523 = vadd.f32 %v455, %v493
  %v524 = vadd.f32 %v456, %v493
  %v525 = vadd.f32 %v457, %v493
  %v526 = vadd.f32 %v458, %v493
  %v527 = vadd.f32 %v459, %v493
  %v528 = vadd.f32 %v460, %v493
  %v529 = vadd.f32 %v461, %v493
  %v530 = vadd.f32 %v462, %v493
  %v531 = vadd.f32 %v463, %v493
  %v532 = vadd.f32 %v464, %v493
  %v533 = vadd.f32 %v465, %v493
  %v534 = vadd.f32 %v466, %v493
  %v535 = vadd.f32 %v467, %v493
  %v536 = vadd.f32 %v468, %v493
  %v537 = vadd.f32 %v469, %v493
  %v538 = vadd.f32 %v470, %v493
  %v539 = vadd.f32 %v471, %v493
  %v540 = vadd.f32 %v472, %v493
  %v541 = vadd.f32 %v473, %v493
  %v542 = vadd.f32 %v474, %v493
  %v543 = vadd.f32 %v475, %v493
  %v544 = vadd.f32 %v476, %v493
  %v545 = vadd.f32 %v477, %v493
  %v546 = vadd.f32 %v478, %v493
  %v547 = vadd.f32 %v479, %v493
  %v548 = vadd.f32 %v480, %v493
  %v549 = vadd.f32 %v481, %v493
  %v550 = vadd.f32 %v482, %v493
  %v551 = vadd.f32 %v483, %v493
  %v552 = vadd.f32 %v484, %v493
  %v553 = vadd.f32 %v485, %v493
  %v554 = vadd.f32 %v486, %v493
  %v555 = vadd.f32 %v487, %v493
  %v556 = vadd.f32 %v488, %v493
  %v557 = vadd.f32 %v489, %v493
  %v558 = vadd.f32 %v490, %v493
  %vm559 = vcmp.ge.f32.partialorder %v495, 0.0
  %vm560 = vcmp.ge.f32.partialorder %v496, 0.0
  %vm561 = vcmp.ge.f32.partialorder %v497, 0.0
  %vm562 = vcmp.ge.f32.partialorder %v498, 0.0
  %vm563 = vcmp.ge.f32.partialorder %v499, 0.0
  %vm564 = vcmp.ge.f32.partialorder %v500, 0.0
  %vm565 = vcmp.ge.f32.partialorder %v501, 0.0
  %vm566 = vcmp.ge.f32.partialorder %v502, 0.0
  %vm567 = vcmp.ge.f32.partialorder %v503, 0.0
  %vm568 = vcmp.ge.f32.partialorder %v504, 0.0
  %vm569 = vcmp.ge.f32.partialorder %v505, 0.0
  %vm570 = vcmp.ge.f32.partialorder %v506, 0.0
  %vm571 = vcmp.ge.f32.partialorder %v507, 0.0
  %vm572 = vcmp.ge.f32.partialorder %v508, 0.0
  %vm573 = vcmp.ge.f32.partialorder %v509, 0.0
  %vm574 = vcmp.ge.f32.partialorder %v510, 0.0
  %vm575 = vcmp.ge.f32.partialorder %v511, 0.0
  %vm576 = vcmp.ge.f32.partialorder %v512, 0.0
  %vm577 = vcmp.ge.f32.partialorder %v513, 0.0
  %vm578 = vcmp.ge.f32.partialorder %v514, 0.0
  %vm579 = vcmp.ge.f32.partialorder %v515, 0.0
  %vm580 = vcmp.ge.f32.partialorder %v516, 0.0
  %vm581 = vcmp.ge.f32.partialorder %v517, 0.0
  %vm582 = vcmp.ge.f32.partialorder %v518, 0.0
  %vm583 = vcmp.ge.f32.partialorder %v519, 0.0
  %vm584 = vcmp.ge.f32.partialorder %v520, 0.0
  %vm585 = vcmp.ge.f32.partialorder %v521, 0.0
  %vm586 = vcmp.ge.f32.partialorder %v522, 0.0
  %vm587 = vcmp.ge.f32.partialorder %v523, 0.0
  %vm588 = vcmp.ge.f32.partialorder %v524, 0.0
  %vm589 = vcmp.ge.f32.partialorder %v525, 0.0
  %vm590 = vcmp.ge.f32.partialorder %v526, 0.0
  %vm591 = vcmp.ge.f32.partialorder %v527, 0.0
  %vm592 = vcmp.ge.f32.partialorder %v528, 0.0
  %vm593 = vcmp.ge.f32.partialorder %v529, 0.0
  %vm594 = vcmp.ge.f32.partialorder %v530, 0.0
  %vm595 = vcmp.ge.f32.partialorder %v531, 0.0
  %vm596 = vcmp.ge.f32.partialorder %v532, 0.0
  %vm597 = vcmp.ge.f32.partialorder %v533, 0.0
  %vm598 = vcmp.ge.f32.partialorder %v534, 0.0
  %vm599 = vcmp.ge.f32.partialorder %v535, 0.0
  %vm600 = vcmp.ge.f32.partialorder %v536, 0.0
  %vm601 = vcmp.ge.f32.partialorder %v537, 0.0
  %vm602 = vcmp.ge.f32.partialorder %v538, 0.0
  %vm603 = vcmp.ge.f32.partialorder %v539, 0.0
  %vm604 = vcmp.ge.f32.partialorder %v540, 0.0
  %vm605 = vcmp.ge.f32.partialorder %v541, 0.0
  %vm606 = vcmp.ge.f32.partialorder %v542, 0.0
  %vm607 = vcmp.ge.f32.partialorder %v543, 0.0
  %vm608 = vcmp.ge.f32.partialorder %v544, 0.0
  %vm609 = vcmp.ge.f32.partialorder %v545, 0.0
  %vm610 = vcmp.ge.f32.partialorder %v546, 0.0
  %vm611 = vcmp.ge.f32.partialorder %v547, 0.0
  %vm612 = vcmp.ge.f32.partialorder %v548, 0.0
  %vm613 = vcmp.ge.f32.partialorder %v549, 0.0
  %vm614 = vcmp.ge.f32.partialorder %v550, 0.0
  %vm615 = vcmp.ge.f32.partialorder %v551, 0.0
  %vm616 = vcmp.ge.f32.partialorder %v552, 0.0
  %vm617 = vcmp.ge.f32.partialorder %v553, 0.0
  %vm618 = vcmp.ge.f32.partialorder %v554, 0.0
  %vm619 = vcmp.ge.f32.partialorder %v555, 0.0
  %vm620 = vcmp.ge.f32.partialorder %v556, 0.0
  %vm621 = vcmp.ge.f32.partialorder %v557, 0.0
  %vm622 = vcmp.ge.f32.partialorder %v558, 0.0
  %v623 = vmul.f32 %v495, 0.01
  %v624 = vmul.f32 %v496, 0.01
  %v625 = vmul.f32 %v497, 0.01
  %v626 = vmul.f32 %v498, 0.01
  %v627 = vmul.f32 %v499, 0.01
  %v628 = vmul.f32 %v500, 0.01
  %v629 = vmul.f32 %v501, 0.01
  %v630 = vmul.f32 %v502, 0.01
  %v631 = vmul.f32 %v503, 0.01
  %v632 = vmul.f32 %v504, 0.01
  %v633 = vmul.f32 %v505, 0.01
  %v634 = vmul.f32 %v506, 0.01
  %v635 = vmul.f32 %v507, 0.01
  %v636 = vmul.f32 %v508, 0.01
  %v637 = vmul.f32 %v509, 0.01
  %v638 = vmul.f32 %v510, 0.01
  %v639 = vmul.f32 %v511, 0.01
  %v640 = vmul.f32 %v512, 0.01
  %v641 = vmul.f32 %v513, 0.01
  %v642 = vmul.f32 %v514, 0.01
  %v643 = vmul.f32 %v515, 0.01
  %v644 = vmul.f32 %v516, 0.01
  %v645 = vmul.f32 %v517, 0.01
  %v646 = vmul.f32 %v518, 0.01
  %v647 = vmul.f32 %v519, 0.01
  %v648 = vmul.f32 %v520, 0.01
  %v649 = vmul.f32 %v521, 0.01
  %v650 = vmul.f32 %v522, 0.01
  %v651 = vmul.f32 %v523, 0.01
  %v652 = vmul.f32 %v524, 0.01
  %v653 = vmul.f32 %v525, 0.01
  %v654 = vmul.f32 %v526, 0.01
  %v655 = vmul.f32 %v527, 0.01
  %v656 = vmul.f32 %v528, 0.01
  %v657 = vmul.f32 %v529, 0.01
  %v658 = vmul.f32 %v530, 0.01
  %v659 = vmul.f32 %v531, 0.01
  %v660 = vmul.f32 %v532, 0.01
  %v661 = vmul.f32 %v533, 0.01
  %v662 = vmul.f32 %v534, 0.01
  %v663 = vmul.f32 %v535, 0.01
  %v664 = vmul.f32 %v536, 0.01
  %v665 = vmul.f32 %v537, 0.01
  %v666 = vmul.f32 %v538, 0.01
  %v667 = vmul.f32 %v539, 0.01
  %v668 = vmul.f32 %v540, 0.01
  %v669 = vmul.f32 %v541, 0.01
  %v670 = vmul.f32 %v542, 0.01
  %v671 = vmul.f32 %v543, 0.01
  %v672 = vmul.f32 %v544, 0.01
  %v673 = vmul.f32 %v545, 0.01
  %v674 = vmul.f32 %v546, 0.01
  %v675 = vmul.f32 %v547, 0.01
  %v676 = vmul.f32 %v548, 0.01
  %v677 = vmul.f32 %v549, 0.01
  %v678 = vmul.f32 %v550, 0.01
  %v679 = vmul.f32 %v551, 0.01
  %v680 = vmul.f32 %v552, 0.01
  %v681 = vmul.f32 %v553, 0.01
  %v682 = vmul.f32 %v554, 0.01
  %v683 = vmul.f32 %v555, 0.01
  %v684 = vmul.f32 %v556, 0.01
  %v685 = vmul.f32 %v557, 0.01
  %v686 = vmul.f32 %v558, 0.01
  %v687 = vsel %vm559, %v495, %v623
  %v688 = vsel %vm560, %v496, %v624
  %v689 = vsel %vm561, %v497, %v625
  %v690 = vsel %vm562, %v498, %v626
  %v691 = vsel %vm563, %v499, %v627
  %v692 = vsel %vm564, %v500, %v628
  %v693 = vsel %vm565, %v501, %v629
  %v694 = vsel %vm566, %v502, %v630
  %v695 = vsel %vm567, %v503, %v631
  %v696 = vsel %vm568, %v504, %v632
  %v697 = vsel %vm569, %v505, %v633
  %v698 = vsel %vm570, %v506, %v634
  %v699 = vsel %vm571, %v507, %v635
  %v700 = vsel %vm572, %v508, %v636
  %v701 = vsel %vm573, %v509, %v637
  %v702 = vsel %vm574, %v510, %v638
  %v703 = vsel %vm575, %v511, %v639
  %v704 = vsel %vm576, %v512, %v640
  %v705 = vsel %vm577, %v513, %v641
  %v706 = vsel %vm578, %v514, %v642
  %v707 = vsel %vm579, %v515, %v643
  %v708 = vsel %vm580, %v516, %v644
  %v709 = vsel %vm581, %v517, %v645
  %v710 = vsel %vm582, %v518, %v646
  %v711 = vsel %vm583, %v519, %v647
  %v712 = vsel %vm584, %v520, %v648
  %v713 = vsel %vm585, %v521, %v649
  %v714 = vsel %vm586, %v522, %v650
  %v715 = vsel %vm587, %v523, %v651
  %v716 = vsel %vm588, %v524, %v652
  %v717 = vsel %vm589, %v525, %v653
  %v718 = vsel %vm590, %v526, %v654
  %v719 = vsel %vm591, %v527, %v655
  %v720 = vsel %vm592, %v528, %v656
  %v721 = vsel %vm593, %v529, %v657
  %v722 = vsel %vm594, %v530, %v658
  %v723 = vsel %vm595, %v531, %v659
  %v724 = vsel %vm596, %v532, %v660
  %v725 = vsel %vm597, %v533, %v661
  %v726 = vsel %vm598, %v534, %v662
  %v727 = vsel %vm599, %v535, %v663
  %v728 = vsel %vm600, %v536, %v664
  %v729 = vsel %vm601, %v537, %v665
  %v730 = vsel %vm602, %v538, %v666
  %v731 = vsel %vm603, %v539, %v667
  %v732 = vsel %vm604, %v540, %v668
  %v733 = vsel %vm605, %v541, %v669
  %v734 = vsel %vm606, %v542, %v670
  %v735 = vsel %vm607, %v543, %v671
  %v736 = vsel %vm608, %v544, %v672
  %v737 = vsel %vm609, %v545, %v673
  %v738 = vsel %vm610, %v546, %v674
  %v739 = vsel %vm611, %v547, %v675
  %v740 = vsel %vm612, %v548, %v676
  %v741 = vsel %vm613, %v549, %v677
  %v742 = vsel %vm614, %v550, %v678
  %v743 = vsel %vm615, %v551, %v679
  %v744 = vsel %vm616, %v552, %v680
  %v745 = vsel %vm617, %v553, %v681
  %v746 = vsel %vm618, %v554, %v682
  %v747 = vsel %vm619, %v555, %v683
  %v748 = vsel %vm620, %v556, %v684
  %v749 = vsel %vm621, %v557, %v685
  %v750 = vsel %vm622, %v558, %v686
  %751 = vst [vmem:[#allocation2] sm:$0xff] 0.0
  %752 = vst [vmem:[#allocation2 + $0x8] sm:$0xff] 0.0
  %753 = vst [vmem:[#allocation2 + $0x10] sm:$0x3] 0.0
  %754 = vst [vmem:[#allocation2 + $0x1b0] sm:$0xff] 0.0
  %755 = vst [vmem:[#allocation2 + $0x1b8] sm:$0xff] 0.0
  %756 = vst [vmem:[#allocation2 + $0x1c0] sm:$0x3] 0.0
  %s757 = scalar_lea.vmem [#allocation2], 408
  %758 = vst [vmem:[%s757] sm:$0xff] 0.0
  %759 = vst [vmem:[%s757 + $0x8] sm:$0xff] 0.0
  %760 = vst [vmem:[%s757 + $0x10] sm:$0x3] 0.0
  %761 = vst [vmem:[%s757 + $0x1b0] sm:$0xff] 0.0
  %762 = vst [vmem:[%s757 + $0x1b8] sm:$0xff] 0.0
  %763 = vst [vmem:[%s757 + $0x1c0] sm:$0x3] 0.0
  %s764 = scalar_lea.vmem [#allocation2], 24
  %765 = vst [vmem:[%s764] sm:$0x1] 0.0
  %766 = vst [vmem:[%s764 + $0x18] sm:$0x1] 0.0
  %767 = vst [vmem:[%s764 + $0x30] sm:$0x1] 0.0
  %768 = vst [vmem:[%s764 + $0x48] sm:$0x1] 0.0
  %769 = vst [vmem:[%s764 + $0x60] sm:$0x1] 0.0
  %770 = vst [vmem:[%s764 + $0x78] sm:$0x1] 0.0
  %771 = vst [vmem:[%s764 + $0x90] sm:$0x1] 0.0
  %772 = vst [vmem:[%s764 + $0xa8] sm:$0x1] 0.0
  %773 = vst [vmem:[%s764 + $0xc0] sm:$0x1] 0.0
  %774 = vst [vmem:[%s764 + $0xd8] sm:$0x1] 0.0
  %775 = vst [vmem:[%s764 + $0xf0] sm:$0x1] 0.0
  %776 = vst [vmem:[%s764 + $0x108] sm:$0x1] 0.0
  %777 = vst [vmem:[%s764 + $0x120] sm:$0x1] 0.0
  %778 = vst [vmem:[%s764 + $0x138] sm:$0x1] 0.0
  %779 = vst [vmem:[%s764 + $0x150] sm:$0x1] 0.0
  %780 = vst [vmem:[%s764 + $0x168] sm:$0x1] 0.0
  %781 = vst [vmem:[%s764 + $0x1b0] sm:$0x1] 0.0
  %782 = vst [vmem:[%s764 + $0x1c8] sm:$0x1] 0.0
  %783 = vst [vmem:[%s764 + $0x1e0] sm:$0x1] 0.0
  %784 = vst [vmem:[%s764 + $0x1f8] sm:$0x1] 0.0
  %785 = vst [vmem:[%s764 + $0x210] sm:$0x1] 0.0
  %786 = vst [vmem:[%s764 + $0x228] sm:$0x1] 0.0
  %787 = vst [vmem:[%s764 + $0x240] sm:$0x1] 0.0
  %788 = vst [vmem:[%s764 + $0x258] sm:$0x1] 0.0
  %789 = vst [vmem:[%s764 + $0x270] sm:$0x1] 0.0
  %790 = vst [vmem:[%s764 + $0x288] sm:$0x1] 0.0
  %791 = vst [vmem:[%s764 + $0x2a0] sm:$0x1] 0.0
  %792 = vst [vmem:[%s764 + $0x2b8] sm:$0x1] 0.0
  %793 = vst [vmem:[%s764 + $0x2d0] sm:$0x1] 0.0
  %794 = vst [vmem:[%s764 + $0x2e8] sm:$0x1] 0.0
  %795 = vst [vmem:[%s764 + $0x300] sm:$0x1] 0.0
  %796 = vst [vmem:[%s764 + $0x318] sm:$0x1] 0.0
  %797 = vst [vmem:[%s764 + $0x11] sm:$0x1] 0.0
  %798 = vst [vmem:[%s764 + $0x29] sm:$0x1] 0.0
  %799 = vst [vmem:[%s764 + $0x41] sm:$0x1] 0.0
  %800 = vst [vmem:[%s764 + $0x59] sm:$0x1] 0.0
  %801 = vst [vmem:[%s764 + $0x71] sm:$0x1] 0.0
  %802 = vst [vmem:[%s764 + $0x89] sm:$0x1] 0.0
  %803 = vst [vmem:[%s764 + $0xa1] sm:$0x1] 0.0
  %804 = vst [vmem:[%s764 + $0xb9] sm:$0x1] 0.0
  %805 = vst [vmem:[%s764 + $0xd1] sm:$0x1] 0.0
  %806 = vst [vmem:[%s764 + $0xe9] sm:$0x1] 0.0
  %807 = vst [vmem:[%s764 + $0x101] sm:$0x1] 0.0
  %808 = vst [vmem:[%s764 + $0x119] sm:$0x1] 0.0
  %809 = vst [vmem:[%s764 + $0x131] sm:$0x1] 0.0
  %810 = vst [vmem:[%s764 + $0x149] sm:$0x1] 0.0
  %811 = vst [vmem:[%s764 + $0x161] sm:$0x1] 0.0
  %812 = vst [vmem:[%s764 + $0x179] sm:$0x1] 0.0
  %813 = vst [vmem:[%s764 + $0x1c1] sm:$0x1] 0.0
  %814 = vst [vmem:[%s764 + $0x1d9] sm:$0x1] 0.0
  %815 = vst [vmem:[%s764 + $0x1f1] sm:$0x1] 0.0
  %816 = vst [vmem:[%s764 + $0x209] sm:$0x1] 0.0
  %817 = vst [vmem:[%s764 + $0x221] sm:$0x1] 0.0
  %818 = vst [vmem:[%s764 + $0x239] sm:$0x1] 0.0
  %819 = vst [vmem:[%s764 + $0x251] sm:$0x1] 0.0
  %820 = vst [vmem:[%s764 + $0x269] sm:$0x1] 0.0
  %821 = vst [vmem:[%s764 + $0x281] sm:$0x1] 0.0
  %822 = vst [vmem:[%s764 + $0x299] sm:$0x1] 0.0
  %823 = vst [vmem:[%s764 + $0x2b1] sm:$0x1] 0.0
  %824 = vst [vmem:[%s764 + $0x2c9] sm:$0x1] 0.0
  %825 = vst [vmem:[%s764 + $0x2e1] sm:$0x1] 0.0
  %826 = vst [vmem:[%s764 + $0x2f9] sm:$0x1] 0.0
  %827 = vst [vmem:[%s764 + $0x311] sm:$0x1] 0.0
  %828 = vst [vmem:[%s764 + $0x329] sm:$0x1] 0.0
  %829 = vst [vmem:[%s764 + $0x1] sm:$0xff] %v687
  %830 = vst [vmem:[%s764 + $0x9] sm:$0xff] %v688
  %831 = vst [vmem:[%s764 + $0x19] sm:$0xff] %v689
  %832 = vst [vmem:[%s764 + $0x21] sm:$0xff] %v690
  %833 = vst [vmem:[%s764 + $0x31] sm:$0xff] %v691
  %834 = vst [vmem:[%s764 + $0x39] sm:$0xff] %v692
  %835 = vst [vmem:[%s764 + $0x49] sm:$0xff] %v693
  %836 = vst [vmem:[%s764 + $0x51] sm:$0xff] %v694
  %837 = vst [vmem:[%s764 + $0x61] sm:$0xff] %v695
  %838 = vst [vmem:[%s764 + $0x69] sm:$0xff] %v696
  %839 = vst [vmem:[%s764 + $0x79] sm:$0xff] %v697
  %840 = vst [vmem:[%s764 + $0x81] sm:$0xff] %v698
  %841 = vst [vmem:[%s764 + $0x91] sm:$0xff] %v699
  %842 = vst [vmem:[%s764 + $0x99] sm:$0xff] %v700
  %843 = vst [vmem:[%s764 + $0xa9] sm:$0xff] %v701
  %844 = vst [vmem:[%s764 + $0xb1] sm:$0xff] %v702
  %845 = vst [vmem:[%s764 + $0xc1] sm:$0xff] %v703
  %846 = vst [vmem:[%s764 + $0xc9] sm:$0xff] %v704
  %847 = vst [vmem:[%s764 + $0xd9] sm:$0xff] %v705
  %848 = vst [vmem:[%s764 + $0xe1] sm:$0xff] %v706
  %849 = vst [vmem:[%s764 + $0xf1] sm:$0xff] %v707
  %850 = vst [vmem:[%s764 + $0xf9] sm:$0xff] %v708
  %851 = vst [vmem:[%s764 + $0x109] sm:$0xff] %v709
  %852 = vst [vmem:[%s764 + $0x111] sm:$0xff] %v710
  %853 = vst [vmem:[%s764 + $0x121] sm:$0xff] %v711
  %854 = vst [vmem:[%s764 + $0x129] sm:$0xff] %v712
  %855 = vst [vmem:[%s764 + $0x139] sm:$0xff] %v713
  %856 = vst [vmem:[%s764 + $0x141] sm:$0xff] %v714
  %857 = vst [vmem:[%s764 + $0x151] sm:$0xff] %v715
  %858 = vst [vmem:[%s764 + $0x159] sm:$0xff] %v716
  %859 = vst [vmem:[%s764 + $0x169] sm:$0xff] %v717
  %860 = vst [vmem:[%s764 + $0x171] sm:$0xff] %v718
  %861 = vst [vmem:[%s764 + $0x1b1] sm:$0xff] %v719
  %862 = vst [vmem:[%s764 + $0x1b9] sm:$0xff] %v720
  %863 = vst [vmem:[%s764 + $0x1c9] sm:$0xff] %v721
  %864 = vst [vmem:[%s764 + $0x1d1] sm:$0xff] %v722
  %865 = vst [vmem:[%s764 + $0x1e1] sm:$0xff] %v723
  %866 = vst [vmem:[%s764 + $0x1e9] sm:$0xff] %v724
  %867 = vst [vmem:[%s764 + $0x1f9] sm:$0xff] %v725
  %868 = vst [vmem:[%s764 + $0x201] sm:$0xff] %v726
  %869 = vst [vmem:[%s764 + $0x211] sm:$0xff] %v727
  %870 = vst [vmem:[%s764 + $0x219] sm:$0xff] %v728
  %871 = vst [vmem:[%s764 + $0x229] sm:$0xff] %v729
  %872 = vst [vmem:[%s764 + $0x231] sm:$0xff] %v730
  %873 = vst [vmem:[%s764 + $0x241] sm:$0xff] %v731
  %874 = vst [vmem:[%s764 + $0x249] sm:$0xff] %v732
  %875 = vst [vmem:[%s764 + $0x259] sm:$0xff] %v733
  %876 = vst [vmem:[%s764 + $0x261] sm:$0xff] %v734
  %877 = vst [vmem:[%s764 + $0x271] sm:$0xff] %v735
  %878 = vst [vmem:[%s764 + $0x279] sm:$0xff] %v736
  %879 = vst [vmem:[%s764 + $0x289] sm:$0xff] %v737
  %880 = vst [vmem:[%s764 + $0x291] sm:$0xff] %v738
  %881 = vst [vmem:[%s764 + $0x2a1] sm:$0xff] %v739
  %882 = vst [vmem:[%s764 + $0x2a9] sm:$0xff] %v740
  %883 = vst [vmem:[%s764 + $0x2b9] sm:$0xff] %v741
  %884 = vst [vmem:[%s764 + $0x2c1] sm:$0xff] %v742
  %885 = vst [vmem:[%s764 + $0x2d1] sm:$0xff] %v743
  %886 = vst [vmem:[%s764 + $0x2d9] sm:$0xff] %v744
  %887 = vst [vmem:[%s764 + $0x2e9] sm:$0xff] %v745
  %888 = vst [vmem:[%s764 + $0x2f1] sm:$0xff] %v746
  %889 = vst [vmem:[%s764 + $0x301] sm:$0xff] %v747
  %890 = vst [vmem:[%s764 + $0x309] sm:$0xff] %v748
  %891 = vst [vmem:[%s764 + $0x319] sm:$0xff] %v749
  %892 = vst [vmem:[%s764 + $0x321] sm:$0xff] %v750
  %v893 = vld [vmem:[#allocation2] ss:$2 sm:$0xff]
  %s894 = scalar_lea.vmem [#allocation2], 48
  %v895 = vld [vmem:[%s894] ss:$2 sm:$0xff]
  %s896 = scalar_lea.vmem [#allocation2], 96
  %v897 = vld [vmem:[%s896] ss:$2 sm:$0xff]
  %s898 = scalar_lea.vmem [#allocation2], 144
  %v899 = vld [vmem:[%s898] ss:$2 sm:$0xff]
  %s900 = scalar_lea.vmem [#allocation2], 192
  %v901 = vld [vmem:[%s900] ss:$2 sm:$0xff]
  %s902 = scalar_lea.vmem [#allocation2], 240
  %v903 = vld [vmem:[%s902] ss:$2 sm:$0xff]
  %s904 = scalar_lea.vmem [#allocation2], 288
  %v905 = vld [vmem:[%s904] ss:$2 sm:$0xff]
  %s906 = scalar_lea.vmem [#allocation2], 336
  %v907 = vld [vmem:[%s906] ss:$2 sm:$0xff]
  %s908 = scalar_lea.vmem [#allocation2], 432
  %v909 = vld [vmem:[%s908] ss:$2 sm:$0xff]
  %s910 = scalar_lea.vmem [#allocation2], 480
  %v911 = vld [vmem:[%s910] ss:$2 sm:$0xff]
  %s912 = scalar_lea.vmem [#allocation2], 528
  %v913 = vld [vmem:[%s912] ss:$2 sm:$0xff]
  %s914 = scalar_lea.vmem [#allocation2], 576
  %v915 = vld [vmem:[%s914] ss:$2 sm:$0xff]
  %s916 = scalar_lea.vmem [#allocation2], 624
  %v917 = vld [vmem:[%s916] ss:$2 sm:$0xff]
  %s918 = scalar_lea.vmem [#allocation2], 672
  %v919 = vld [vmem:[%s918] ss:$2 sm:$0xff]
  %s920 = scalar_lea.vmem [#allocation2], 720
  %v921 = vld [vmem:[%s920] ss:$2 sm:$0xff]
  %s922 = scalar_lea.vmem [#allocation2], 768
  %v923 = vld [vmem:[%s922] ss:$2 sm:$0xff]
  %v924 = vpack.c.bf16 %v895, %v893
  %v925 = vpack.c.bf16 %v899, %v897
  %v926 = vpack.c.bf16 %v903, %v901
  %v927 = vpack.c.bf16 %v907, %v905
  %v928 = vpack.c.bf16 %v911, %v909
  %v929 = vpack.c.bf16 %v915, %v913
  %v930 = vpack.c.bf16 %v919, %v917
  %v931 = vpack.c.bf16 %v923, %v921
  %v932 = vld [vmem:[%s4] sm:$0xf]
  %v933 = vld [vmem:[%s4 + $0x4] sm:$0xf]
  %v934 = vld [vmem:[%s4 + $0x8] sm:$0xf]
  %v935 = vld [vmem:[%s4 + $0xc] sm:$0xf]
  %v936 = vld [vmem:[%s4 + $0x10] sm:$0xf]
  %v937 = vld [vmem:[%s4 + $0x14] sm:$0xf]
  %v938 = vld [vmem:[%s4 + $0x18] sm:$0xf]
  %v939 = vld [vmem:[%s4 + $0x1c] sm:$0xf]
  %v940 = vld [vmem:[%s4 + $0x20] sm:$0xf]
  %v941 = vld [vmem:[%s4 + $0x24] sm:$0xf]
  %v942 = vld [vmem:[%s4 + $0x28] sm:$0xf]
  %v943 = vld [vmem:[%s4 + $0x2c] sm:$0xf]
  %v944 = vld [vmem:[%s4 + $0x30] sm:$0xf]
  %v945 = vld [vmem:[%s4 + $0x34] sm:$0xf]
  %v946 = vld [vmem:[%s4 + $0x38] sm:$0xf]
  %v947 = vld [vmem:[%s4 + $0x3c] sm:$0xf]
  %s948 = scalar_lea.vmem [#allocation2], 1
  %v949 = vld [vmem:[%s948] ss:$2 sm:$0xff]
  %s950 = scalar_lea.vmem [#allocation2], 49
  %v951 = vld [vmem:[%s950] ss:$2 sm:$0xff]
  %s952 = scalar_lea.vmem [#allocation2], 97
  %v953 = vld [vmem:[%s952] ss:$2 sm:$0xff]
  %s954 = scalar_lea.vmem [#allocation2], 145
  %v955 = vld [vmem:[%s954] ss:$2 sm:$0xff]
  %s956 = scalar_lea.vmem [#allocation2], 193
  %v957 = vld [vmem:[%s956] ss:$2 sm:$0xff]
  %s958 = scalar_lea.vmem [#allocation2], 241
  %v959 = vld [vmem:[%s958] ss:$2 sm:$0xff]
  %s960 = scalar_lea.vmem [#allocation2], 289
  %v961 = vld [vmem:[%s960] ss:$2 sm:$0xff]
  %s962 = scalar_lea.vmem [#allocation2], 337
  %v963 = vld [vmem:[%s962] ss:$2 sm:$0xff]
  %s964 = scalar_lea.vmem [#allocation2], 433
  %v965 = vld [vmem:[%s964] ss:$2 sm:$0xff]
  %s966 = scalar_lea.vmem [#allocation2], 481
  %v967 = vld [vmem:[%s966] ss:$2 sm:$0xff]
  %s968 = scalar_lea.vmem [#allocation2], 529
  %v969 = vld [vmem:[%s968] ss:$2 sm:$0xff]
  %s970 = scalar_lea.vmem [#allocation2], 577
  %v971 = vld [vmem:[%s970] ss:$2 sm:$0xff]
  %s972 = scalar_lea.vmem [#allocation2], 625
  %v973 = vld [vmem:[%s972] ss:$2 sm:$0xff]
  %s974 = scalar_lea.vmem [#allocation2], 673
  %v975 = vld [vmem:[%s974] ss:$2 sm:$0xff]
  %s976 = scalar_lea.vmem [#allocation2], 721
  %v977 = vld [vmem:[%s976] ss:$2 sm:$0xff]
  %s978 = scalar_lea.vmem [#allocation2], 769
  %v979 = vld [vmem:[%s978] ss:$2 sm:$0xff]
  %v980 = vpack.c.bf16 %v951, %v949
  %v981 = vpack.c.bf16 %v955, %v953
  %v982 = vpack.c.bf16 %v959, %v957
  %v983 = vpack.c.bf16 %v963, %v961
  %v984 = vpack.c.bf16 %v967, %v965
  %v985 = vpack.c.bf16 %v971, %v969
  %v986 = vpack.c.bf16 %v975, %v973
  %v987 = vpack.c.bf16 %v979, %v977
  %s988 = scalar_lea.vmem %s4, 64
  %v989 = vld [vmem:[%s988] sm:$0xf]
  %v990 = vld [vmem:[%s988 + $0x4] sm:$0xf]
  %v991 = vld [vmem:[%s988 + $0x8] sm:$0xf]
  %v992 = vld [vmem:[%s988 + $0xc] sm:$0xf]
  %v993 = vld [vmem:[%s988 + $0x10] sm:$0xf]
  %v994 = vld [vmem:[%s988 + $0x14] sm:$0xf]
  %v995 = vld [vmem:[%s988 + $0x18] sm:$0xf]
  %v996 = vld [vmem:[%s988 + $0x1c] sm:$0xf]
  %v997 = vld [vmem:[%s988 + $0x20] sm:$0xf]
  %v998 = vld [vmem:[%s988 + $0x24] sm:$0xf]
  %v999 = vld [vmem:[%s988 + $0x28] sm:$0xf]
  %v1000 = vld [vmem:[%s988 + $0x2c] sm:$0xf]
  %v1001 = vld [vmem:[%s988 + $0x30] sm:$0xf]
  %v1002 = vld [vmem:[%s988 + $0x34] sm:$0xf]
  %v1003 = vld [vmem:[%s988 + $0x38] sm:$0xf]
  %v1004 = vld [vmem:[%s988 + $0x3c] sm:$0xf]
  %v1021 = vunpack.c.l.b16 %v989
  %v1022 = vunpack.c.l.b16 %v990
  %v1023 = vunpack.c.l.b16 %v991
  %v1024 = vunpack.c.l.b16 %v992
  %v1025 = vunpack.c.l.b16 %v993
  %v1026 = vunpack.c.l.b16 %v994
  %v1027 = vunpack.c.l.b16 %v995
  %v1028 = vunpack.c.l.b16 %v996
  %v1029 = vunpack.c.l.b16 %v997
  %v1030 = vunpack.c.l.b16 %v998
  %v1031 = vunpack.c.l.b16 %v999
  %v1032 = vunpack.c.l.b16 %v1000
  %v1033 = vunpack.c.l.b16 %v1001
  %v1034 = vunpack.c.l.b16 %v1002
  %v1035 = vunpack.c.l.b16 %v1003
  %v1036 = vunpack.c.l.b16 %v1004
  %v1037 = vpack.c.b16 %v1022, %v1021
  %v1038 = vpack.c.b16 %v1024, %v1023
  %v1039 = vpack.c.b16 %v1026, %v1025
  %v1040 = vpack.c.b16 %v1028, %v1027
  %v1041 = vpack.c.b16 %v1030, %v1029
  %v1042 = vpack.c.b16 %v1032, %v1031
  %v1043 = vpack.c.b16 %v1034, %v1033
  %v1044 = vpack.c.b16 %v1036, %v1035
  %1053 = vmatpush.bf16.msra.mxu0 %v1044
  %1054 = vmatpush.bf16.msra.mxu0 %v1043
  %1055 = vmatpush.bf16.msra.mxu0 %v1042
  %1056 = vmatpush.bf16.msra.mxu0 %v1041
  %1057 = vmatpush.bf16.msra.mxu0 %v1040
  %1058 = vmatpush.bf16.msra.mxu0 %v1039
  %1059 = vmatpush.bf16.msra.mxu0 %v1038
  %1060 = vmatpush.bf16.msra.mxu0 %v1037
  %1061 = vmatmul.bf16.gmra.mxu0 %v980
  %v1062 = vpop.f32.mrf.mxu0
  %v1063 = vadd.f32 0.0, %v1062
  %v1064 = vpop.f32.mrf.mxu0
  %v1065 = vadd.f32 0.0, %v1064
  %1066 = vmatmul.bf16.gmra.mxu0 %v981
  %v1067 = vpop.f32.mrf.mxu0
  %v1068 = vadd.f32 0.0, %v1067
  %v1069 = vpop.f32.mrf.mxu0
  %v1070 = vadd.f32 0.0, %v1069
  %1071 = vmatmul.bf16.gmra.mxu0 %v982
  %v1072 = vpop.f32.mrf.mxu0
  %v1073 = vadd.f32 0.0, %v1072
  %v1074 = vpop.f32.mrf.mxu0
  %v1075 = vadd.f32 0.0, %v1074
  %1076 = vmatmul.bf16.gmra.mxu0 %v983
  %v1077 = vpop.f32.mrf.mxu0
  %v1078 = vadd.f32 0.0, %v1077
  %v1079 = vpop.f32.mrf.mxu0
  %v1080 = vadd.f32 0.0, %v1079
  %1081 = vmatmul.bf16.gmra.mxu0 %v984
  %v1082 = vpop.f32.mrf.mxu0
  %v1083 = vadd.f32 0.0, %v1082
  %v1084 = vpop.f32.mrf.mxu0
  %v1085 = vadd.f32 0.0, %v1084
  %1086 = vmatmul.bf16.gmra.mxu0 %v985
  %v1087 = vpop.f32.mrf.mxu0
  %v1088 = vadd.f32 0.0, %v1087
  %v1089 = vpop.f32.mrf.mxu0
  %v1090 = vadd.f32 0.0, %v1089
  %1091 = vmatmul.bf16.gmra.mxu0 %v986
  %v1092 = vpop.f32.mrf.mxu0
  %v1093 = vadd.f32 0.0, %v1092
  %v1094 = vpop.f32.mrf.mxu0
  %v1095 = vadd.f32 0.0, %v1094
  %1096 = vmatmul.bf16.gmra.mxu0 %v987
  %v1097 = vpop.f32.mrf.mxu0
  %v1098 = vadd.f32 0.0, %v1097
  %v1099 = vpop.f32.mrf.mxu0
  %v1100 = vadd.f32 0.0, %v1099
  %1101 = vdwg.mxu0
  %v1118 = vunpack.c.l.b16 %v932
  %v1119 = vunpack.c.l.b16 %v933
  %v1120 = vunpack.c.l.b16 %v934
  %v1121 = vunpack.c.l.b16 %v935
  %v1122 = vunpack.c.l.b16 %v936
  %v1123 = vunpack.c.l.b16 %v937
  %v1124 = vunpack.c.l.b16 %v938
  %v1125 = vunpack.c.l.b16 %v939
  %v1126 = vunpack.c.l.b16 %v940
  %v1127 = vunpack.c.l.b16 %v941
  %v1128 = vunpack.c.l.b16 %v942
  %v1129 = vunpack.c.l.b16 %v943
  %v1130 = vunpack.c.l.b16 %v944
  %v1131 = vunpack.c.l.b16 %v945
  %v1132 = vunpack.c.l.b16 %v946
  %v1133 = vunpack.c.l.b16 %v947
  %v1134 = vpack.c.b16 %v1119, %v1118
  %v1135 = vpack.c.b16 %v1121, %v1120
  %v1136 = vpack.c.b16 %v1123, %v1122
  %v1137 = vpack.c.b16 %v1125, %v1124
  %v1138 = vpack.c.b16 %v1127, %v1126
  %v1139 = vpack.c.b16 %v1129, %v1128
  %v1140 = vpack.c.b16 %v1131, %v1130
  %v1141 = vpack.c.b16 %v1133, %v1132
  %1150 = vmatpush.bf16.msra.mxu0 %v1141
  %1151 = vmatpush.bf16.msra.mxu0 %v1140
  %1152 = vmatpush.bf16.msra.mxu0 %v1139
  %1153 = vmatpush.bf16.msra.mxu0 %v1138
  %1154 = vmatpush.bf16.msra.mxu0 %v1137
  %1155 = vmatpush.bf16.msra.mxu0 %v1136
  %1156 = vmatpush.bf16.msra.mxu0 %v1135
  %1157 = vmatpush.bf16.msra.mxu0 %v1134
  %1158 = vmatmul.bf16.gmra.mxu0 %v924
  %v1159 = vpop.f32.mrf.mxu0
  %v1160 = vadd.f32 %v1063, %v1159
  %v1161 = vpop.f32.mrf.mxu0
  %v1162 = vadd.f32 %v1065, %v1161
  %1163 = vmatmul.bf16.gmra.mxu0 %v925
  %v1164 = vpop.f32.mrf.mxu0
  %v1165 = vadd.f32 %v1068, %v1164
  %v1166 = vpop.f32.mrf.mxu0
  %v1167 = vadd.f32 %v1070, %v1166
  %1168 = vmatmul.bf16.gmra.mxu0 %v926
  %v1169 = vpop.f32.mrf.mxu0
  %v1170 = vadd.f32 %v1073, %v1169
  %v1171 = vpop.f32.mrf.mxu0
  %v1172 = vadd.f32 %v1075, %v1171
  %1173 = vmatmul.bf16.gmra.mxu0 %v927
  %v1174 = vpop.f32.mrf.mxu0
  %v1175 = vadd.f32 %v1078, %v1174
  %v1176 = vpop.f32.mrf.mxu0
  %v1177 = vadd.f32 %v1080, %v1176
  %1178 = vmatmul.bf16.gmra.mxu0 %v928
  %v1179 = vpop.f32.mrf.mxu0
  %v1180 = vadd.f32 %v1083, %v1179
  %v1181 = vpop.f32.mrf.mxu0
  %v1182 = vadd.f32 %v1085, %v1181
  %1183 = vmatmul.bf16.gmra.mxu0 %v929
  %v1184 = vpop.f32.mrf.mxu0
  %v1185 = vadd.f32 %v1088, %v1184
  %v1186 = vpop.f32.mrf.mxu0
  %v1187 = vadd.f32 %v1090, %v1186
  %1188 = vmatmul.bf16.gmra.mxu0 %v930
  %v1189 = vpop.f32.mrf.mxu0
  %v1190 = vadd.f32 %v1093, %v1189
  %v1191 = vpop.f32.mrf.mxu0
  %v1192 = vadd.f32 %v1095, %v1191
  %1193 = vmatmul.bf16.gmra.mxu0 %v931
  %v1194 = vpop.f32.mrf.mxu0
  %v1195 = vadd.f32 %v1098, %v1194
  %v1196 = vpop.f32.mrf.mxu0
  %v1197 = vadd.f32 %v1100, %v1196
  %1198 = vdwg.mxu0
  %s1199 = scalar_lea.vmem [#allocation2], 2
  %v1200 = vld [vmem:[%s1199] ss:$2 sm:$0xff]
  %s1201 = scalar_lea.vmem [#allocation2], 50
  %v1202 = vld [vmem:[%s1201] ss:$2 sm:$0xff]
  %s1203 = scalar_lea.vmem [#allocation2], 98
  %v1204 = vld [vmem:[%s1203] ss:$2 sm:$0xff]
  %s1205 = scalar_lea.vmem [#allocation2], 146
  %v1206 = vld [vmem:[%s1205] ss:$2 sm:$0xff]
  %s1207 = scalar_lea.vmem [#allocation2], 194
  %v1208 = vld [vmem:[%s1207] ss:$2 sm:$0xff]
  %s1209 = scalar_lea.vmem [#allocation2], 242
  %v1210 = vld [vmem:[%s1209] ss:$2 sm:$0xff]
  %s1211 = scalar_lea.vmem [#allocation2], 290
  %v1212 = vld [vmem:[%s1211] ss:$2 sm:$0xff]
  %s1213 = scalar_lea.vmem [#allocation2], 338
  %v1214 = vld [vmem:[%s1213] ss:$2 sm:$0xff]
  %s1215 = scalar_lea.vmem [#allocation2], 434
  %v1216 = vld [vmem:[%s1215] ss:$2 sm:$0xff]
  %s1217 = scalar_lea.vmem [#allocation2], 482
  %v1218 = vld [vmem:[%s1217] ss:$2 sm:$0xff]
  %s1219 = scalar_lea.vmem [#allocation2], 530
  %v1220 = vld [vmem:[%s1219] ss:$2 sm:$0xff]
  %s1221 = scalar_lea.vmem [#allocation2], 578
  %v1222 = vld [vmem:[%s1221] ss:$2 sm:$0xff]
  %s1223 = scalar_lea.vmem [#allocation2], 626
  %v1224 = vld [vmem:[%s1223] ss:$2 sm:$0xff]
  %s1225 = scalar_lea.vmem [#allocation2], 674
  %v1226 = vld [vmem:[%s1225] ss:$2 sm:$0xff]
  %s1227 = scalar_lea.vmem [#allocation2], 722
  %v1228 = vld [vmem:[%s1227] ss:$2 sm:$0xff]
  %s1229 = scalar_lea.vmem [#allocation2], 770
  %v1230 = vld [vmem:[%s1229] ss:$2 sm:$0xff]
  %v1231 = vpack.c.bf16 %v1202, %v1200
  %v1232 = vpack.c.bf16 %v1206, %v1204
  %v1233 = vpack.c.bf16 %v1210, %v1208
  %v1234 = vpack.c.bf16 %v1214, %v1212
  %v1235 = vpack.c.bf16 %v1218, %v1216
  %v1236 = vpack.c.bf16 %v1222, %v1220
  %v1237 = vpack.c.bf16 %v1226, %v1224
  %v1238 = vpack.c.bf16 %v1230, %v1228
  %s1239 = scalar_lea.vmem %s4, 128
  %v1240 = vld [vmem:[%s1239] sm:$0xf]
  %v1241 = vld [vmem:[%s1239 + $0x4] sm:$0xf]
  %v1242 = vld [vmem:[%s1239 + $0x8] sm:$0xf]
  %v1243 = vld [vmem:[%s1239 + $0xc] sm:$0xf]
  %v1244 = vld [vmem:[%s1239 + $0x10] sm:$0xf]
  %v1245 = vld [vmem:[%s1239 + $0x14] sm:$0xf]
  %v1246 = vld [vmem:[%s1239 + $0x18] sm:$0xf]
  %v1247 = vld [vmem:[%s1239 + $0x1c] sm:$0xf]
  %v1248 = vld [vmem:[%s1239 + $0x20] sm:$0xf]
  %v1249 = vld [vmem:[%s1239 + $0x24] sm:$0xf]
  %v1250 = vld [vmem:[%s1239 + $0x28] sm:$0xf]
  %v1251 = vld [vmem:[%s1239 + $0x2c] sm:$0xf]
  %v1252 = vld [vmem:[%s1239 + $0x30] sm:$0xf]
  %v1253 = vld [vmem:[%s1239 + $0x34] sm:$0xf]
  %v1254 = vld [vmem:[%s1239 + $0x38] sm:$0xf]
  %v1255 = vld [vmem:[%s1239 + $0x3c] sm:$0xf]
  %v1272 = vunpack.c.l.b16 %v1240
  %v1273 = vunpack.c.l.b16 %v1241
  %v1274 = vunpack.c.l.b16 %v1242
  %v1275 = vunpack.c.l.b16 %v1243
  %v1276 = vunpack.c.l.b16 %v1244
  %v1277 = vunpack.c.l.b16 %v1245
  %v1278 = vunpack.c.l.b16 %v1246
  %v1279 = vunpack.c.l.b16 %v1247
  %v1280 = vunpack.c.l.b16 %v1248
  %v1281 = vunpack.c.l.b16 %v1249
  %v1282 = vunpack.c.l.b16 %v1250
  %v1283 = vunpack.c.l.b16 %v1251
  %v1284 = vunpack.c.l.b16 %v1252
  %v1285 = vunpack.c.l.b16 %v1253
  %v1286 = vunpack.c.l.b16 %v1254
  %v1287 = vunpack.c.l.b16 %v1255
  %v1288 = vpack.c.b16 %v1273, %v1272
  %v1289 = vpack.c.b16 %v1275, %v1274
  %v1290 = vpack.c.b16 %v1277, %v1276
  %v1291 = vpack.c.b16 %v1279, %v1278
  %v1292 = vpack.c.b16 %v1281, %v1280
  %v1293 = vpack.c.b16 %v1283, %v1282
  %v1294 = vpack.c.b16 %v1285, %v1284
  %v1295 = vpack.c.b16 %v1287, %v1286
  %1304 = vmatpush.bf16.msra.mxu0 %v1295
  %1305 = vmatpush.bf16.msra.mxu0 %v1294
  %1306 = vmatpush.bf16.msra.mxu0 %v1293
  %1307 = vmatpush.bf16.msra.mxu0 %v1292
  %1308 = vmatpush.bf16.msra.mxu0 %v1291
  %1309 = vmatpush.bf16.msra.mxu0 %v1290
  %1310 = vmatpush.bf16.msra.mxu0 %v1289
  %1311 = vmatpush.bf16.msra.mxu0 %v1288
  %1312 = vmatmul.bf16.gmra.mxu0 %v1231
  %v1313 = vpop.f32.mrf.mxu0
  %v1314 = vadd.f32 0.0, %v1313
  %v1315 = vpop.f32.mrf.mxu0
  %v1316 = vadd.f32 0.0, %v1315
  %1317 = vmatmul.bf16.gmra.mxu0 %v1232
  %v1318 = vpop.f32.mrf.mxu0
  %v1319 = vadd.f32 0.0, %v1318
  %v1320 = vpop.f32.mrf.mxu0
  %v1321 = vadd.f32 0.0, %v1320
  %1322 = vmatmul.bf16.gmra.mxu0 %v1233
  %v1323 = vpop.f32.mrf.mxu0
  %v1324 = vadd.f32 0.0, %v1323
  %v1325 = vpop.f32.mrf.mxu0
  %v1326 = vadd.f32 0.0, %v1325
  %1327 = vmatmul.bf16.gmra.mxu0 %v1234
  %v1328 = vpop.f32.mrf.mxu0
  %v1329 = vadd.f32 0.0, %v1328
  %v1330 = vpop.f32.mrf.mxu0
  %v1331 = vadd.f32 0.0, %v1330
  %1332 = vmatmul.bf16.gmra.mxu0 %v1235
  %v1333 = vpop.f32.mrf.mxu0
  %v1334 = vadd.f32 0.0, %v1333
  %v1335 = vpop.f32.mrf.mxu0
  %v1336 = vadd.f32 0.0, %v1335
  %1337 = vmatmul.bf16.gmra.mxu0 %v1236
  %v1338 = vpop.f32.mrf.mxu0
  %v1339 = vadd.f32 0.0, %v1338
  %v1340 = vpop.f32.mrf.mxu0
  %v1341 = vadd.f32 0.0, %v1340
  %1342 = vmatmul.bf16.gmra.mxu0 %v1237
  %v1343 = vpop.f32.mrf.mxu0
  %v1344 = vadd.f32 0.0, %v1343
  %v1345 = vpop.f32.mrf.mxu0
  %v1346 = vadd.f32 0.0, %v1345
  %1347 = vmatmul.bf16.gmra.mxu0 %v1238
  %v1348 = vpop.f32.mrf.mxu0
  %v1349 = vadd.f32 0.0, %v1348
  %v1350 = vpop.f32.mrf.mxu0
  %v1351 = vadd.f32 0.0, %v1350
  %1352 = vdwg.mxu0
  %v1353 = vadd.f32 %v1160, %v1314
  %v1354 = vadd.f32 %v1162, %v1316
  %v1355 = vadd.f32 %v1165, %v1319
  %v1356 = vadd.f32 %v1167, %v1321
  %v1357 = vadd.f32 %v1170, %v1324
  %v1358 = vadd.f32 %v1172, %v1326
  %v1359 = vadd.f32 %v1175, %v1329
  %v1360 = vadd.f32 %v1177, %v1331
  %v1361 = vadd.f32 %v1180, %v1334
  %v1362 = vadd.f32 %v1182, %v1336
  %v1363 = vadd.f32 %v1185, %v1339
  %v1364 = vadd.f32 %v1187, %v1341
  %v1365 = vadd.f32 %v1190, %v1344
  %v1366 = vadd.f32 %v1192, %v1346
  %v1367 = vadd.f32 %v1195, %v1349
  %v1368 = vadd.f32 %v1197, %v1351
  %v1369 = vld [vmem:[%s764] ss:$2 sm:$0xff]
  %s1370 = scalar_lea.vmem %s764, 48 [#allocation2]
  %v1371 = vld [vmem:[%s1370] ss:$2 sm:$0xff]
  %s1372 = scalar_lea.vmem %s764, 96 [#allocation2]
  %v1373 = vld [vmem:[%s1372] ss:$2 sm:$0xff]
  %s1374 = scalar_lea.vmem %s764, 144 [#allocation2]
  %v1375 = vld [vmem:[%s1374] ss:$2 sm:$0xff]
  %s1376 = scalar_lea.vmem %s764, 192 [#allocation2]
  %v1377 = vld [vmem:[%s1376] ss:$2 sm:$0xff]
  %s1378 = scalar_lea.vmem %s764, 240 [#allocation2]
  %v1379 = vld [vmem:[%s1378] ss:$2 sm:$0xff]
  %s1380 = scalar_lea.vmem %s764, 288 [#allocation2]
  %v1381 = vld [vmem:[%s1380] ss:$2 sm:$0xff]
  %s1382 = scalar_lea.vmem %s764, 336 [#allocation2]
  %v1383 = vld [vmem:[%s1382] ss:$2 sm:$0xff]
  %s1384 = scalar_lea.vmem %s764, 432 [#allocation2]
  %v1385 = vld [vmem:[%s1384] ss:$2 sm:$0xff]
  %s1386 = scalar_lea.vmem %s764, 480 [#allocation2]
  %v1387 = vld [vmem:[%s1386] ss:$2 sm:$0xff]
  %s1388 = scalar_lea.vmem %s764, 528 [#allocation2]
  %v1389 = vld [vmem:[%s1388] ss:$2 sm:$0xff]
  %s1390 = scalar_lea.vmem %s764, 576 [#allocation2]
  %v1391 = vld [vmem:[%s1390] ss:$2 sm:$0xff]
  %s1392 = scalar_lea.vmem %s764, 624 [#allocation2]
  %v1393 = vld [vmem:[%s1392] ss:$2 sm:$0xff]
  %s1394 = scalar_lea.vmem %s764, 672 [#allocation2]
  %v1395 = vld [vmem:[%s1394] ss:$2 sm:$0xff]
  %s1396 = scalar_lea.vmem %s764, 720 [#allocation2]
  %v1397 = vld [vmem:[%s1396] ss:$2 sm:$0xff]
  %s1398 = scalar_lea.vmem %s764, 768 [#allocation2]
  %v1399 = vld [vmem:[%s1398] ss:$2 sm:$0xff]
  %v1400 = vpack.c.bf16 %v1371, %v1369
  %v1401 = vpack.c.bf16 %v1375, %v1373
  %v1402 = vpack.c.bf16 %v1379, %v1377
  %v1403 = vpack.c.bf16 %v1383, %v1381
  %v1404 = vpack.c.bf16 %v1387, %v1385
  %v1405 = vpack.c.bf16 %v1391, %v1389
  %v1406 = vpack.c.bf16 %v1395, %v1393
  %v1407 = vpack.c.bf16 %v1399, %v1397
  %s1408 = scalar_lea.vmem %s4, 192
  %v1409 = vld [vmem:[%s1408] sm:$0xf]
  %v1410 = vld [vmem:[%s1408 + $0x4] sm:$0xf]
  %v1411 = vld [vmem:[%s1408 + $0x8] sm:$0xf]
  %v1412 = vld [vmem:[%s1408 + $0xc] sm:$0xf]
  %v1413 = vld [vmem:[%s1408 + $0x10] sm:$0xf]
  %v1414 = vld [vmem:[%s1408 + $0x14] sm:$0xf]
  %v1415 = vld [vmem:[%s1408 + $0x18] sm:$0xf]
  %v1416 = vld [vmem:[%s1408 + $0x1c] sm:$0xf]
  %v1417 = vld [vmem:[%s1408 + $0x20] sm:$0xf]
  %v1418 = vld [vmem:[%s1408 + $0x24] sm:$0xf]
  %v1419 = vld [vmem:[%s1408 + $0x28] sm:$0xf]
  %v1420 = vld [vmem:[%s1408 + $0x2c] sm:$0xf]
  %v1421 = vld [vmem:[%s1408 + $0x30] sm:$0xf]
  %v1422 = vld [vmem:[%s1408 + $0x34] sm:$0xf]
  %v1423 = vld [vmem:[%s1408 + $0x38] sm:$0xf]
  %v1424 = vld [vmem:[%s1408 + $0x3c] sm:$0xf]
  %v1441 = vunpack.c.l.b16 %v1409
  %v1442 = vunpack.c.l.b16 %v1410
  %v1443 = vunpack.c.l.b16 %v1411
  %v1444 = vunpack.c.l.b16 %v1412
  %v1445 = vunpack.c.l.b16 %v1413
  %v1446 = vunpack.c.l.b16 %v1414
  %v1447 = vunpack.c.l.b16 %v1415
  %v1448 = vunpack.c.l.b16 %v1416
  %v1449 = vunpack.c.l.b16 %v1417
  %v1450 = vunpack.c.l.b16 %v1418
  %v1451 = vunpack.c.l.b16 %v1419
  %v1452 = vunpack.c.l.b16 %v1420
  %v1453 = vunpack.c.l.b16 %v1421
  %v1454 = vunpack.c.l.b16 %v1422
  %v1455 = vunpack.c.l.b16 %v1423
  %v1456 = vunpack.c.l.b16 %v1424
  %v1457 = vpack.c.b16 %v1442, %v1441
  %v1458 = vpack.c.b16 %v1444, %v1443
  %v1459 = vpack.c.b16 %v1446, %v1445
  %v1460 = vpack.c.b16 %v1448, %v1447
  %v1461 = vpack.c.b16 %v1450, %v1449
  %v1462 = vpack.c.b16 %v1452, %v1451
  %v1463 = vpack.c.b16 %v1454, %v1453
  %v1464 = vpack.c.b16 %v1456, %v1455
  %1473 = vmatpush.bf16.msra.mxu0 %v1464
  %1474 = vmatpush.bf16.msra.mxu0 %v1463
  %1475 = vmatpush.bf16.msra.mxu0 %v1462
  %1476 = vmatpush.bf16.msra.mxu0 %v1461
  %1477 = vmatpush.bf16.msra.mxu0 %v1460
  %1478 = vmatpush.bf16.msra.mxu0 %v1459
  %1479 = vmatpush.bf16.msra.mxu0 %v1458
  %1480 = vmatpush.bf16.msra.mxu0 %v1457
  %1481 = vmatmul.bf16.gmra.mxu0 %v1400
  %v1482 = vpop.f32.mrf.mxu0
  %v1483 = vadd.f32 0.0, %v1482
  %v1484 = vpop.f32.mrf.mxu0
  %v1485 = vadd.f32 0.0, %v1484
  %1486 = vmatmul.bf16.gmra.mxu0 %v1401
  %v1487 = vpop.f32.mrf.mxu0
  %v1488 = vadd.f32 0.0, %v1487
  %v1489 = vpop.f32.mrf.mxu0
  %v1490 = vadd.f32 0.0, %v1489
  %1491 = vmatmul.bf16.gmra.mxu0 %v1402
  %v1492 = vpop.f32.mrf.mxu0
  %v1493 = vadd.f32 0.0, %v1492
  %v1494 = vpop.f32.mrf.mxu0
  %v1495 = vadd.f32 0.0, %v1494
  %1496 = vmatmul.bf16.gmra.mxu0 %v1403
  %v1497 = vpop.f32.mrf.mxu0
  %v1498 = vadd.f32 0.0, %v1497
  %v1499 = vpop.f32.mrf.mxu0
  %v1500 = vadd.f32 0.0, %v1499
  %1501 = vmatmul.bf16.gmra.mxu0 %v1404
  %v1502 = vpop.f32.mrf.mxu0
  %v1503 = vadd.f32 0.0, %v1502
  %v1504 = vpop.f32.mrf.mxu0
  %v1505 = vadd.f32 0.0, %v1504
  %1506 = vmatmul.bf16.gmra.mxu0 %v1405
  %v1507 = vpop.f32.mrf.mxu0
  %v1508 = vadd.f32 0.0, %v1507
  %v1509 = vpop.f32.mrf.mxu0
  %v1510 = vadd.f32 0.0, %v1509
  %1511 = vmatmul.bf16.gmra.mxu0 %v1406
  %v1512 = vpop.f32.mrf.mxu0
  %v1513 = vadd.f32 0.0, %v1512
  %v1514 = vpop.f32.mrf.mxu0
  %v1515 = vadd.f32 0.0, %v1514
  %1516 = vmatmul.bf16.gmra.mxu0 %v1407
  %v1517 = vpop.f32.mrf.mxu0
  %v1518 = vadd.f32 0.0, %v1517
  %v1519 = vpop.f32.mrf.mxu0
  %v1520 = vadd.f32 0.0, %v1519
  %1521 = vdwg.mxu0
  %v1522 = vadd.f32 %v1353, %v1483
  %v1523 = vadd.f32 %v1354, %v1485
  %v1524 = vadd.f32 %v1355, %v1488
  %v1525 = vadd.f32 %v1356, %v1490
  %v1526 = vadd.f32 %v1357, %v1493
  %v1527 = vadd.f32 %v1358, %v1495
  %v1528 = vadd.f32 %v1359, %v1498
  %v1529 = vadd.f32 %v1360, %v1500
  %v1530 = vadd.f32 %v1361, %v1503
  %v1531 = vadd.f32 %v1362, %v1505
  %v1532 = vadd.f32 %v1363, %v1508
  %v1533 = vadd.f32 %v1364, %v1510
  %v1534 = vadd.f32 %v1365, %v1513
  %v1535 = vadd.f32 %v1366, %v1515
  %v1536 = vadd.f32 %v1367, %v1518
  %v1537 = vadd.f32 %v1368, %v1520
  %s1538 = scalar_lea.vmem %s764, 1 [#allocation2]
  %v1539 = vld [vmem:[%s1538] ss:$2 sm:$0xff]
  %s1540 = scalar_lea.vmem %s764, 49 [#allocation2]
  %v1541 = vld [vmem:[%s1540] ss:$2 sm:$0xff]
  %s1542 = scalar_lea.vmem %s764, 97 [#allocation2]
  %v1543 = vld [vmem:[%s1542] ss:$2 sm:$0xff]
  %s1544 = scalar_lea.vmem %s764, 145 [#allocation2]
  %v1545 = vld [vmem:[%s1544] ss:$2 sm:$0xff]
  %s1546 = scalar_lea.vmem %s764, 193 [#allocation2]
  %v1547 = vld [vmem:[%s1546] ss:$2 sm:$0xff]
  %s1548 = scalar_lea.vmem %s764, 241 [#allocation2]
  %v1549 = vld [vmem:[%s1548] ss:$2 sm:$0xff]
  %s1550 = scalar_lea.vmem %s764, 289 [#allocation2]
  %v1551 = vld [vmem:[%s1550] ss:$2 sm:$0xff]
  %s1552 = scalar_lea.vmem %s764, 337 [#allocation2]
  %v1553 = vld [vmem:[%s1552] ss:$2 sm:$0xff]
  %s1554 = scalar_lea.vmem %s764, 433 [#allocation2]
  %v1555 = vld [vmem:[%s1554] ss:$2 sm:$0xff]
  %s1556 = scalar_lea.vmem %s764, 481 [#allocation2]
  %v1557 = vld [vmem:[%s1556] ss:$2 sm:$0xff]
  %s1558 = scalar_lea.vmem %s764, 529 [#allocation2]
  %v1559 = vld [vmem:[%s1558] ss:$2 sm:$0xff]
  %s1560 = scalar_lea.vmem %s764, 577 [#allocation2]
  %v1561 = vld [vmem:[%s1560] ss:$2 sm:$0xff]
  %s1562 = scalar_lea.vmem %s764, 625 [#allocation2]
  %v1563 = vld [vmem:[%s1562] ss:$2 sm:$0xff]
  %s1564 = scalar_lea.vmem %s764, 673 [#allocation2]
  %v1565 = vld [vmem:[%s1564] ss:$2 sm:$0xff]
  %s1566 = scalar_lea.vmem %s764, 721 [#allocation2]
  %v1567 = vld [vmem:[%s1566] ss:$2 sm:$0xff]
  %s1568 = scalar_lea.vmem %s764, 769 [#allocation2]
  %v1569 = vld [vmem:[%s1568] ss:$2 sm:$0xff]
  %v1570 = vpack.c.bf16 %v1541, %v1539
  %v1571 = vpack.c.bf16 %v1545, %v1543
  %v1572 = vpack.c.bf16 %v1549, %v1547
  %v1573 = vpack.c.bf16 %v1553, %v1551
  %v1574 = vpack.c.bf16 %v1557, %v1555
  %v1575 = vpack.c.bf16 %v1561, %v1559
  %v1576 = vpack.c.bf16 %v1565, %v1563
  %v1577 = vpack.c.bf16 %v1569, %v1567
  %s1578 = scalar_lea.vmem %s4, 256
  %v1579 = vld [vmem:[%s1578] sm:$0xf]
  %v1580 = vld [vmem:[%s1578 + $0x4] sm:$0xf]
  %v1581 = vld [vmem:[%s1578 + $0x8] sm:$0xf]
  %v1582 = vld [vmem:[%s1578 + $0xc] sm:$0xf]
  %v1583 = vld [vmem:[%s1578 + $0x10] sm:$0xf]
  %v1584 = vld [vmem:[%s1578 + $0x14] sm:$0xf]
  %v1585 = vld [vmem:[%s1578 + $0x18] sm:$0xf]
  %v1586 = vld [vmem:[%s1578 + $0x1c] sm:$0xf]
  %v1587 = vld [vmem:[%s1578 + $0x20] sm:$0xf]
  %v1588 = vld [vmem:[%s1578 + $0x24] sm:$0xf]
  %v1589 = vld [vmem:[%s1578 + $0x28] sm:$0xf]
  %v1590 = vld [vmem:[%s1578 + $0x2c] sm:$0xf]
  %v1591 = vld [vmem:[%s1578 + $0x30] sm:$0xf]
  %v1592 = vld [vmem:[%s1578 + $0x34] sm:$0xf]
  %v1593 = vld [vmem:[%s1578 + $0x38] sm:$0xf]
  %v1594 = vld [vmem:[%s1578 + $0x3c] sm:$0xf]
  %v1611 = vunpack.c.l.b16 %v1579
  %v1612 = vunpack.c.l.b16 %v1580
  %v1613 = vunpack.c.l.b16 %v1581
  %v1614 = vunpack.c.l.b16 %v1582
  %v1615 = vunpack.c.l.b16 %v1583
  %v1616 = vunpack.c.l.b16 %v1584
  %v1617 = vunpack.c.l.b16 %v1585
  %v1618 = vunpack.c.l.b16 %v1586
  %v1619 = vunpack.c.l.b16 %v1587
  %v1620 = vunpack.c.l.b16 %v1588
  %v1621 = vunpack.c.l.b16 %v1589
  %v1622 = vunpack.c.l.b16 %v1590
  %v1623 = vunpack.c.l.b16 %v1591
  %v1624 = vunpack.c.l.b16 %v1592
  %v1625 = vunpack.c.l.b16 %v1593
  %v1626 = vunpack.c.l.b16 %v1594
  %v1627 = vpack.c.b16 %v1612, %v1611
  %v1628 = vpack.c.b16 %v1614, %v1613
  %v1629 = vpack.c.b16 %v1616, %v1615
  %v1630 = vpack.c.b16 %v1618, %v1617
  %v1631 = vpack.c.b16 %v1620, %v1619
  %v1632 = vpack.c.b16 %v1622, %v1621
  %v1633 = vpack.c.b16 %v1624, %v1623
  %v1634 = vpack.c.b16 %v1626, %v1625
  %1643 = vmatpush.bf16.msra.mxu0 %v1634
  %1644 = vmatpush.bf16.msra.mxu0 %v1633
  %1645 = vmatpush.bf16.msra.mxu0 %v1632
  %1646 = vmatpush.bf16.msra.mxu0 %v1631
  %1647 = vmatpush.bf16.msra.mxu0 %v1630
  %1648 = vmatpush.bf16.msra.mxu0 %v1629
  %1649 = vmatpush.bf16.msra.mxu0 %v1628
  %1650 = vmatpush.bf16.msra.mxu0 %v1627
  %1651 = vmatmul.bf16.gmra.mxu0 %v1570
  %v1652 = vpop.f32.mrf.mxu0
  %v1653 = vadd.f32 0.0, %v1652
  %v1654 = vpop.f32.mrf.mxu0
  %v1655 = vadd.f32 0.0, %v1654
  %1656 = vmatmul.bf16.gmra.mxu0 %v1571
  %v1657 = vpop.f32.mrf.mxu0
  %v1658 = vadd.f32 0.0, %v1657
  %v1659 = vpop.f32.mrf.mxu0
  %v1660 = vadd.f32 0.0, %v1659
  %1661 = vmatmul.bf16.gmra.mxu0 %v1572
  %v1662 = vpop.f32.mrf.mxu0
  %v1663 = vadd.f32 0.0, %v1662
  %v1664 = vpop.f32.mrf.mxu0
  %v1665 = vadd.f32 0.0, %v1664
  %1666 = vmatmul.bf16.gmra.mxu0 %v1573
  %v1667 = vpop.f32.mrf.mxu0
  %v1668 = vadd.f32 0.0, %v1667
  %v1669 = vpop.f32.mrf.mxu0
  %v1670 = vadd.f32 0.0, %v1669
  %1671 = vmatmul.bf16.gmra.mxu0 %v1574
  %v1672 = vpop.f32.mrf.mxu0
  %v1673 = vadd.f32 0.0, %v1672
  %v1674 = vpop.f32.mrf.mxu0
  %v1675 = vadd.f32 0.0, %v1674
  %1676 = vmatmul.bf16.gmra.mxu0 %v1575
  %v1677 = vpop.f32.mrf.mxu0
  %v1678 = vadd.f32 0.0, %v1677
  %v1679 = vpop.f32.mrf.mxu0
  %v1680 = vadd.f32 0.0, %v1679
  %1681 = vmatmul.bf16.gmra.mxu0 %v1576
  %v1682 = vpop.f32.mrf.mxu0
  %v1683 = vadd.f32 0.0, %v1682
  %v1684 = vpop.f32.mrf.mxu0
  %v1685 = vadd.f32 0.0, %v1684
  %1686 = vmatmul.bf16.gmra.mxu0 %v1577
  %v1687 = vpop.f32.mrf.mxu0
  %v1688 = vadd.f32 0.0, %v1687
  %v1689 = vpop.f32.mrf.mxu0
  %v1690 = vadd.f32 0.0, %v1689
  %1691 = vdwg.mxu0
  %v1692 = vadd.f32 %v1522, %v1653
  %v1693 = vadd.f32 %v1523, %v1655
  %v1694 = vadd.f32 %v1524, %v1658
  %v1695 = vadd.f32 %v1525, %v1660
  %v1696 = vadd.f32 %v1526, %v1663
  %v1697 = vadd.f32 %v1527, %v1665
  %v1698 = vadd.f32 %v1528, %v1668
  %v1699 = vadd.f32 %v1529, %v1670
  %v1700 = vadd.f32 %v1530, %v1673
  %v1701 = vadd.f32 %v1531, %v1675
  %v1702 = vadd.f32 %v1532, %v1678
  %v1703 = vadd.f32 %v1533, %v1680
  %v1704 = vadd.f32 %v1534, %v1683
  %v1705 = vadd.f32 %v1535, %v1685
  %v1706 = vadd.f32 %v1536, %v1688
  %v1707 = vadd.f32 %v1537, %v1690
  %s1708 = scalar_lea.vmem %s764, 2 [#allocation2]
  %v1709 = vld [vmem:[%s1708] ss:$2 sm:$0xff]
  %s1710 = scalar_lea.vmem %s764, 50 [#allocation2]
  %v1711 = vld [vmem:[%s1710] ss:$2 sm:$0xff]
  %s1712 = scalar_lea.vmem %s764, 98 [#allocation2]
  %v1713 = vld [vmem:[%s1712] ss:$2 sm:$0xff]
  %s1714 = scalar_lea.vmem %s764, 146 [#allocation2]
  %v1715 = vld [vmem:[%s1714] ss:$2 sm:$0xff]
  %s1716 = scalar_lea.vmem %s764, 194 [#allocation2]
  %v1717 = vld [vmem:[%s1716] ss:$2 sm:$0xff]
  %s1718 = scalar_lea.vmem %s764, 242 [#allocation2]
  %v1719 = vld [vmem:[%s1718] ss:$2 sm:$0xff]
  %s1720 = scalar_lea.vmem %s764, 290 [#allocation2]
  %v1721 = vld [vmem:[%s1720] ss:$2 sm:$0xff]
  %s1722 = scalar_lea.vmem %s764, 338 [#allocation2]
  %v1723 = vld [vmem:[%s1722] ss:$2 sm:$0xff]
  %s1724 = scalar_lea.vmem %s764, 434 [#allocation2]
  %v1725 = vld [vmem:[%s1724] ss:$2 sm:$0xff]
  %s1726 = scalar_lea.vmem %s764, 482 [#allocation2]
  %v1727 = vld [vmem:[%s1726] ss:$2 sm:$0xff]
  %s1728 = scalar_lea.vmem %s764, 530 [#allocation2]
  %v1729 = vld [vmem:[%s1728] ss:$2 sm:$0xff]
  %s1730 = scalar_lea.vmem %s764, 578 [#allocation2]
  %v1731 = vld [vmem:[%s1730] ss:$2 sm:$0xff]
  %s1732 = scalar_lea.vmem %s764, 626 [#allocation2]
  %v1733 = vld [vmem:[%s1732] ss:$2 sm:$0xff]
  %s1734 = scalar_lea.vmem %s764, 674 [#allocation2]
  %v1735 = vld [vmem:[%s1734] ss:$2 sm:$0xff]
  %s1736 = scalar_lea.vmem %s764, 722 [#allocation2]
  %v1737 = vld [vmem:[%s1736] ss:$2 sm:$0xff]
  %s1738 = scalar_lea.vmem %s764, 770 [#allocation2]
  %v1739 = vld [vmem:[%s1738] ss:$2 sm:$0xff]
  %v1740 = vpack.c.bf16 %v1711, %v1709
  %v1741 = vpack.c.bf16 %v1715, %v1713
  %v1742 = vpack.c.bf16 %v1719, %v1717
  %v1743 = vpack.c.bf16 %v1723, %v1721
  %v1744 = vpack.c.bf16 %v1727, %v1725
  %v1745 = vpack.c.bf16 %v1731, %v1729
  %v1746 = vpack.c.bf16 %v1735, %v1733
  %v1747 = vpack.c.bf16 %v1739, %v1737
  %s1748 = scalar_lea.vmem %s4, 320
  %v1749 = vld [vmem:[%s1748] sm:$0xf]
  %v1750 = vld [vmem:[%s1748 + $0x4] sm:$0xf]
  %v1751 = vld [vmem:[%s1748 + $0x8] sm:$0xf]
  %v1752 = vld [vmem:[%s1748 + $0xc] sm:$0xf]
  %v1753 = vld [vmem:[%s1748 + $0x10] sm:$0xf]
  %v1754 = vld [vmem:[%s1748 + $0x14] sm:$0xf]
  %v1755 = vld [vmem:[%s1748 + $0x18] sm:$0xf]
  %v1756 = vld [vmem:[%s1748 + $0x1c] sm:$0xf]
  %v1757 = vld [vmem:[%s1748 + $0x20] sm:$0xf]
  %v1758 = vld [vmem:[%s1748 + $0x24] sm:$0xf]
  %v1759 = vld [vmem:[%s1748 + $0x28] sm:$0xf]
  %v1760 = vld [vmem:[%s1748 + $0x2c] sm:$0xf]
  %v1761 = vld [vmem:[%s1748 + $0x30] sm:$0xf]
  %v1762 = vld [vmem:[%s1748 + $0x34] sm:$0xf]
  %v1763 = vld [vmem:[%s1748 + $0x38] sm:$0xf]
  %v1764 = vld [vmem:[%s1748 + $0x3c] sm:$0xf]
  %v1781 = vunpack.c.l.b16 %v1749
  %v1782 = vunpack.c.l.b16 %v1750
  %v1783 = vunpack.c.l.b16 %v1751
  %v1784 = vunpack.c.l.b16 %v1752
  %v1785 = vunpack.c.l.b16 %v1753
  %v1786 = vunpack.c.l.b16 %v1754
  %v1787 = vunpack.c.l.b16 %v1755
  %v1788 = vunpack.c.l.b16 %v1756
  %v1789 = vunpack.c.l.b16 %v1757
  %v1790 = vunpack.c.l.b16 %v1758
  %v1791 = vunpack.c.l.b16 %v1759
  %v1792 = vunpack.c.l.b16 %v1760
  %v1793 = vunpack.c.l.b16 %v1761
  %v1794 = vunpack.c.l.b16 %v1762
  %v1795 = vunpack.c.l.b16 %v1763
  %v1796 = vunpack.c.l.b16 %v1764
  %v1797 = vpack.c.b16 %v1782, %v1781
  %v1798 = vpack.c.b16 %v1784, %v1783
  %v1799 = vpack.c.b16 %v1786, %v1785
  %v1800 = vpack.c.b16 %v1788, %v1787
  %v1801 = vpack.c.b16 %v1790, %v1789
  %v1802 = vpack.c.b16 %v1792, %v1791
  %v1803 = vpack.c.b16 %v1794, %v1793
  %v1804 = vpack.c.b16 %v1796, %v1795
  %1813 = vmatpush.bf16.msra.mxu0 %v1804
  %1814 = vmatpush.bf16.msra.mxu0 %v1803
  %1815 = vmatpush.bf16.msra.mxu0 %v1802
  %1816 = vmatpush.bf16.msra.mxu0 %v1801
  %1817 = vmatpush.bf16.msra.mxu0 %v1800
  %1818 = vmatpush.bf16.msra.mxu0 %v1799
  %1819 = vmatpush.bf16.msra.mxu0 %v1798
  %1820 = vmatpush.bf16.msra.mxu0 %v1797
  %1821 = vmatmul.bf16.gmra.mxu0 %v1740
  %v1822 = vpop.f32.mrf.mxu0
  %v1823 = vadd.f32 0.0, %v1822
  %v1824 = vpop.f32.mrf.mxu0
  %v1825 = vadd.f32 0.0, %v1824
  %1826 = vmatmul.bf16.gmra.mxu0 %v1741
  %v1827 = vpop.f32.mrf.mxu0
  %v1828 = vadd.f32 0.0, %v1827
  %v1829 = vpop.f32.mrf.mxu0
  %v1830 = vadd.f32 0.0, %v1829
  %1831 = vmatmul.bf16.gmra.mxu0 %v1742
  %v1832 = vpop.f32.mrf.mxu0
  %v1833 = vadd.f32 0.0, %v1832
  %v1834 = vpop.f32.mrf.mxu0
  %v1835 = vadd.f32 0.0, %v1834
  %1836 = vmatmul.bf16.gmra.mxu0 %v1743
  %v1837 = vpop.f32.mrf.mxu0
  %v1838 = vadd.f32 0.0, %v1837
  %v1839 = vpop.f32.mrf.mxu0
  %v1840 = vadd.f32 0.0, %v1839
  %1841 = vmatmul.bf16.gmra.mxu0 %v1744
  %v1842 = vpop.f32.mrf.mxu0
  %v1843 = vadd.f32 0.0, %v1842
  %v1844 = vpop.f32.mrf.mxu0
  %v1845 = vadd.f32 0.0, %v1844
  %1846 = vmatmul.bf16.gmra.mxu0 %v1745
  %v1847 = vpop.f32.mrf.mxu0
  %v1848 = vadd.f32 0.0, %v1847
  %v1849 = vpop.f32.mrf.mxu0
  %v1850 = vadd.f32 0.0, %v1849
  %1851 = vmatmul.bf16.gmra.mxu0 %v1746
  %v1852 = vpop.f32.mrf.mxu0
  %v1853 = vadd.f32 0.0, %v1852
  %v1854 = vpop.f32.mrf.mxu0
  %v1855 = vadd.f32 0.0, %v1854
  %1856 = vmatmul.bf16.gmra.mxu0 %v1747
  %v1857 = vpop.f32.mrf.mxu0
  %v1858 = vadd.f32 0.0, %v1857
  %v1859 = vpop.f32.mrf.mxu0
  %v1860 = vadd.f32 0.0, %v1859
  %1861 = vdwg.mxu0
  %v1862 = vadd.f32 %v1692, %v1823
  %v1863 = vadd.f32 %v1693, %v1825
  %v1864 = vadd.f32 %v1694, %v1828
  %v1865 = vadd.f32 %v1695, %v1830
  %v1866 = vadd.f32 %v1696, %v1833
  %v1867 = vadd.f32 %v1697, %v1835
  %v1868 = vadd.f32 %v1698, %v1838
  %v1869 = vadd.f32 %v1699, %v1840
  %v1870 = vadd.f32 %v1700, %v1843
  %v1871 = vadd.f32 %v1701, %v1845
  %v1872 = vadd.f32 %v1702, %v1848
  %v1873 = vadd.f32 %v1703, %v1850
  %v1874 = vadd.f32 %v1704, %v1853
  %v1875 = vadd.f32 %v1705, %v1855
  %v1876 = vadd.f32 %v1706, %v1858
  %v1877 = vadd.f32 %v1707, %v1860
  %s1878 = scalar_lea.vmem [#allocation2], 48
  %v1879 = vld [vmem:[%s1878] ss:$2 sm:$0xff]
  %s1880 = scalar_lea.vmem %s1878, 48 [#allocation2]
  %v1881 = vld [vmem:[%s1880] ss:$2 sm:$0xff]
  %s1882 = scalar_lea.vmem %s1878, 96 [#allocation2]
  %v1883 = vld [vmem:[%s1882] ss:$2 sm:$0xff]
  %s1884 = scalar_lea.vmem %s1878, 144 [#allocation2]
  %v1885 = vld [vmem:[%s1884] ss:$2 sm:$0xff]
  %s1886 = scalar_lea.vmem %s1878, 192 [#allocation2]
  %v1887 = vld [vmem:[%s1886] ss:$2 sm:$0xff]
  %s1888 = scalar_lea.vmem %s1878, 240 [#allocation2]
  %v1889 = vld [vmem:[%s1888] ss:$2 sm:$0xff]
  %s1890 = scalar_lea.vmem %s1878, 288 [#allocation2]
  %v1891 = vld [vmem:[%s1890] ss:$2 sm:$0xff]
  %s1892 = scalar_lea.vmem %s1878, 336 [#allocation2]
  %v1893 = vld [vmem:[%s1892] ss:$2 sm:$0xff]
  %s1894 = scalar_lea.vmem %s1878, 432 [#allocation2]
  %v1895 = vld [vmem:[%s1894] ss:$2 sm:$0xff]
  %s1896 = scalar_lea.vmem %s1878, 480 [#allocation2]
  %v1897 = vld [vmem:[%s1896] ss:$2 sm:$0xff]
  %s1898 = scalar_lea.vmem %s1878, 528 [#allocation2]
  %v1899 = vld [vmem:[%s1898] ss:$2 sm:$0xff]
  %s1900 = scalar_lea.vmem %s1878, 576 [#allocation2]
  %v1901 = vld [vmem:[%s1900] ss:$2 sm:$0xff]
  %s1902 = scalar_lea.vmem %s1878, 624 [#allocation2]
  %v1903 = vld [vmem:[%s1902] ss:$2 sm:$0xff]
  %s1904 = scalar_lea.vmem %s1878, 672 [#allocation2]
  %v1905 = vld [vmem:[%s1904] ss:$2 sm:$0xff]
  %s1906 = scalar_lea.vmem %s1878, 720 [#allocation2]
  %v1907 = vld [vmem:[%s1906] ss:$2 sm:$0xff]
  %s1908 = scalar_lea.vmem %s1878, 768 [#allocation2]
  %v1909 = vld [vmem:[%s1908] ss:$2 sm:$0xff]
  %v1910 = vpack.c.bf16 %v1881, %v1879
  %v1911 = vpack.c.bf16 %v1885, %v1883
  %v1912 = vpack.c.bf16 %v1889, %v1887
  %v1913 = vpack.c.bf16 %v1893, %v1891
  %v1914 = vpack.c.bf16 %v1897, %v1895
  %v1915 = vpack.c.bf16 %v1901, %v1899
  %v1916 = vpack.c.bf16 %v1905, %v1903
  %v1917 = vpack.c.bf16 %v1909, %v1907
  %s1918 = scalar_lea.vmem %s4, 384
  %v1919 = vld [vmem:[%s1918] sm:$0xf]
  %v1920 = vld [vmem:[%s1918 + $0x4] sm:$0xf]
  %v1921 = vld [vmem:[%s1918 + $0x8] sm:$0xf]
  %v1922 = vld [vmem:[%s1918 + $0xc] sm:$0xf]
  %v1923 = vld [vmem:[%s1918 + $0x10] sm:$0xf]
  %v1924 = vld [vmem:[%s1918 + $0x14] sm:$0xf]
  %v1925 = vld [vmem:[%s1918 + $0x18] sm:$0xf]
  %v1926 = vld [vmem:[%s1918 + $0x1c] sm:$0xf]
  %v1927 = vld [vmem:[%s1918 + $0x20] sm:$0xf]
  %v1928 = vld [vmem:[%s1918 + $0x24] sm:$0xf]
  %v1929 = vld [vmem:[%s1918 + $0x28] sm:$0xf]
  %v1930 = vld [vmem:[%s1918 + $0x2c] sm:$0xf]
  %v1931 = vld [vmem:[%s1918 + $0x30] sm:$0xf]
  %v1932 = vld [vmem:[%s1918 + $0x34] sm:$0xf]
  %v1933 = vld [vmem:[%s1918 + $0x38] sm:$0xf]
  %v1934 = vld [vmem:[%s1918 + $0x3c] sm:$0xf]
  %v1951 = vunpack.c.l.b16 %v1919
  %v1952 = vunpack.c.l.b16 %v1920
  %v1953 = vunpack.c.l.b16 %v1921
  %v1954 = vunpack.c.l.b16 %v1922
  %v1955 = vunpack.c.l.b16 %v1923
  %v1956 = vunpack.c.l.b16 %v1924
  %v1957 = vunpack.c.l.b16 %v1925
  %v1958 = vunpack.c.l.b16 %v1926
  %v1959 = vunpack.c.l.b16 %v1927
  %v1960 = vunpack.c.l.b16 %v1928
  %v1961 = vunpack.c.l.b16 %v1929
  %v1962 = vunpack.c.l.b16 %v1930
  %v1963 = vunpack.c.l.b16 %v1931
  %v1964 = vunpack.c.l.b16 %v1932
  %v1965 = vunpack.c.l.b16 %v1933
  %v1966 = vunpack.c.l.b16 %v1934
  %v1967 = vpack.c.b16 %v1952, %v1951
  %v1968 = vpack.c.b16 %v1954, %v1953
  %v1969 = vpack.c.b16 %v1956, %v1955
  %v1970 = vpack.c.b16 %v1958, %v1957
  %v1971 = vpack.c.b16 %v1960, %v1959
  %v1972 = vpack.c.b16 %v1962, %v1961
  %v1973 = vpack.c.b16 %v1964, %v1963
  %v1974 = vpack.c.b16 %v1966, %v1965
  %1983 = vmatpush.bf16.msra.mxu0 %v1974
  %1984 = vmatpush.bf16.msra.mxu0 %v1973
  %1985 = vmatpush.bf16.msra.mxu0 %v1972
  %1986 = vmatpush.bf16.msra.mxu0 %v1971
  %1987 = vmatpush.bf16.msra.mxu0 %v1970
  %1988 = vmatpush.bf16.msra.mxu0 %v1969
  %1989 = vmatpush.bf16.msra.mxu0 %v1968
  %1990 = vmatpush.bf16.msra.mxu0 %v1967
  %1991 = vmatmul.bf16.gmra.mxu0 %v1910
  %v1992 = vpop.f32.mrf.mxu0
  %v1993 = vadd.f32 0.0, %v1992
  %v1994 = vpop.f32.mrf.mxu0
  %v1995 = vadd.f32 0.0, %v1994
  %1996 = vmatmul.bf16.gmra.mxu0 %v1911
  %v1997 = vpop.f32.mrf.mxu0
  %v1998 = vadd.f32 0.0, %v1997
  %v1999 = vpop.f32.mrf.mxu0
  %v2000 = vadd.f32 0.0, %v1999
  %2001 = vmatmul.bf16.gmra.mxu0 %v1912
  %v2002 = vpop.f32.mrf.mxu0
  %v2003 = vadd.f32 0.0, %v2002
  %v2004 = vpop.f32.mrf.mxu0
  %v2005 = vadd.f32 0.0, %v2004
  %2006 = vmatmul.bf16.gmra.mxu0 %v1913
  %v2007 = vpop.f32.mrf.mxu0
  %v2008 = vadd.f32 0.0, %v2007
  %v2009 = vpop.f32.mrf.mxu0
  %v2010 = vadd.f32 0.0, %v2009
  %2011 = vmatmul.bf16.gmra.mxu0 %v1914
  %v2012 = vpop.f32.mrf.mxu0
  %v2013 = vadd.f32 0.0, %v2012
  %v2014 = vpop.f32.mrf.mxu0
  %v2015 = vadd.f32 0.0, %v2014
  %2016 = vmatmul.bf16.gmra.mxu0 %v1915
  %v2017 = vpop.f32.mrf.mxu0
  %v2018 = vadd.f32 0.0, %v2017
  %v2019 = vpop.f32.mrf.mxu0
  %v2020 = vadd.f32 0.0, %v2019
  %2021 = vmatmul.bf16.gmra.mxu0 %v1916
  %v2022 = vpop.f32.mrf.mxu0
  %v2023 = vadd.f32 0.0, %v2022
  %v2024 = vpop.f32.mrf.mxu0
  %v2025 = vadd.f32 0.0, %v2024
  %2026 = vmatmul.bf16.gmra.mxu0 %v1917
  %v2027 = vpop.f32.mrf.mxu0
  %v2028 = vadd.f32 0.0, %v2027
  %v2029 = vpop.f32.mrf.mxu0
  %v2030 = vadd.f32 0.0, %v2029
  %2031 = vdwg.mxu0
  %v2032 = vadd.f32 %v1862, %v1993
  %v2033 = vadd.f32 %v1863, %v1995
  %v2034 = vadd.f32 %v1864, %v1998
  %v2035 = vadd.f32 %v1865, %v2000
  %v2036 = vadd.f32 %v1866, %v2003
  %v2037 = vadd.f32 %v1867, %v2005
  %v2038 = vadd.f32 %v1868, %v2008
  %v2039 = vadd.f32 %v1869, %v2010
  %v2040 = vadd.f32 %v1870, %v2013
  %v2041 = vadd.f32 %v1871, %v2015
  %v2042 = vadd.f32 %v1872, %v2018
  %v2043 = vadd.f32 %v1873, %v2020
  %v2044 = vadd.f32 %v1874, %v2023
  %v2045 = vadd.f32 %v1875, %v2025
  %v2046 = vadd.f32 %v1876, %v2028
  %v2047 = vadd.f32 %v1877, %v2030
  %s2048 = scalar_lea.vmem %s1878, 1 [#allocation2]
  %v2049 = vld [vmem:[%s2048] ss:$2 sm:$0xff]
  %s2050 = scalar_lea.vmem %s1878, 49 [#allocation2]
  %v2051 = vld [vmem:[%s2050] ss:$2 sm:$0xff]
  %s2052 = scalar_lea.vmem %s1878, 97 [#allocation2]
  %v2053 = vld [vmem:[%s2052] ss:$2 sm:$0xff]
  %s2054 = scalar_lea.vmem %s1878, 145 [#allocation2]
  %v2055 = vld [vmem:[%s2054] ss:$2 sm:$0xff]
  %s2056 = scalar_lea.vmem %s1878, 193 [#allocation2]
  %v2057 = vld [vmem:[%s2056] ss:$2 sm:$0xff]
  %s2058 = scalar_lea.vmem %s1878, 241 [#allocation2]
  %v2059 = vld [vmem:[%s2058] ss:$2 sm:$0xff]
  %s2060 = scalar_lea.vmem %s1878, 289 [#allocation2]
  %v2061 = vld [vmem:[%s2060] ss:$2 sm:$0xff]
  %s2062 = scalar_lea.vmem %s1878, 337 [#allocation2]
  %v2063 = vld [vmem:[%s2062] ss:$2 sm:$0xff]
  %s2064 = scalar_lea.vmem %s1878, 433 [#allocation2]
  %v2065 = vld [vmem:[%s2064] ss:$2 sm:$0xff]
  %s2066 = scalar_lea.vmem %s1878, 481 [#allocation2]
  %v2067 = vld [vmem:[%s2066] ss:$2 sm:$0xff]
  %s2068 = scalar_lea.vmem %s1878, 529 [#allocation2]
  %v2069 = vld [vmem:[%s2068] ss:$2 sm:$0xff]
  %s2070 = scalar_lea.vmem %s1878, 577 [#allocation2]
  %v2071 = vld [vmem:[%s2070] ss:$2 sm:$0xff]
  %s2072 = scalar_lea.vmem %s1878, 625 [#allocation2]
  %v2073 = vld [vmem:[%s2072] ss:$2 sm:$0xff]
  %s2074 = scalar_lea.vmem %s1878, 673 [#allocation2]
  %v2075 = vld [vmem:[%s2074] ss:$2 sm:$0xff]
  %s2076 = scalar_lea.vmem %s1878, 721 [#allocation2]
  %v2077 = vld [vmem:[%s2076] ss:$2 sm:$0xff]
  %s2078 = scalar_lea.vmem %s1878, 769 [#allocation2]
  %v2079 = vld [vmem:[%s2078] ss:$2 sm:$0xff]
  %v2080 = vpack.c.bf16 %v2051, %v2049
  %v2081 = vpack.c.bf16 %v2055, %v2053
  %v2082 = vpack.c.bf16 %v2059, %v2057
  %v2083 = vpack.c.bf16 %v2063, %v2061
  %v2084 = vpack.c.bf16 %v2067, %v2065
  %v2085 = vpack.c.bf16 %v2071, %v2069
  %v2086 = vpack.c.bf16 %v2075, %v2073
  %v2087 = vpack.c.bf16 %v2079, %v2077
  %s2088 = scalar_lea.vmem %s4, 448
  %v2089 = vld [vmem:[%s2088] sm:$0xf]
  %v2090 = vld [vmem:[%s2088 + $0x4] sm:$0xf]
  %v2091 = vld [vmem:[%s2088 + $0x8] sm:$0xf]
  %v2092 = vld [vmem:[%s2088 + $0xc] sm:$0xf]
  %v2093 = vld [vmem:[%s2088 + $0x10] sm:$0xf]
  %v2094 = vld [vmem:[%s2088 + $0x14] sm:$0xf]
  %v2095 = vld [vmem:[%s2088 + $0x18] sm:$0xf]
  %v2096 = vld [vmem:[%s2088 + $0x1c] sm:$0xf]
  %v2097 = vld [vmem:[%s2088 + $0x20] sm:$0xf]
  %v2098 = vld [vmem:[%s2088 + $0x24] sm:$0xf]
  %v2099 = vld [vmem:[%s2088 + $0x28] sm:$0xf]
  %v2100 = vld [vmem:[%s2088 + $0x2c] sm:$0xf]
  %v2101 = vld [vmem:[%s2088 + $0x30] sm:$0xf]
  %v2102 = vld [vmem:[%s2088 + $0x34] sm:$0xf]
  %v2103 = vld [vmem:[%s2088 + $0x38] sm:$0xf]
  %v2104 = vld [vmem:[%s2088 + $0x3c] sm:$0xf]
  %v2121 = vunpack.c.l.b16 %v2089
  %v2122 = vunpack.c.l.b16 %v2090
  %v2123 = vunpack.c.l.b16 %v2091
  %v2124 = vunpack.c.l.b16 %v2092
  %v2125 = vunpack.c.l.b16 %v2093
  %v2126 = vunpack.c.l.b16 %v2094
  %v2127 = vunpack.c.l.b16 %v2095
  %v2128 = vunpack.c.l.b16 %v2096
  %v2129 = vunpack.c.l.b16 %v2097
  %v2130 = vunpack.c.l.b16 %v2098
  %v2131 = vunpack.c.l.b16 %v2099
  %v2132 = vunpack.c.l.b16 %v2100
  %v2133 = vunpack.c.l.b16 %v2101
  %v2134 = vunpack.c.l.b16 %v2102
  %v2135 = vunpack.c.l.b16 %v2103
  %v2136 = vunpack.c.l.b16 %v2104
  %v2137 = vpack.c.b16 %v2122, %v2121
  %v2138 = vpack.c.b16 %v2124, %v2123
  %v2139 = vpack.c.b16 %v2126, %v2125
  %v2140 = vpack.c.b16 %v2128, %v2127
  %v2141 = vpack.c.b16 %v2130, %v2129
  %v2142 = vpack.c.b16 %v2132, %v2131
  %v2143 = vpack.c.b16 %v2134, %v2133
  %v2144 = vpack.c.b16 %v2136, %v2135
  %2153 = vmatpush.bf16.msra.mxu0 %v2144
  %2154 = vmatpush.bf16.msra.mxu0 %v2143
  %2155 = vmatpush.bf16.msra.mxu0 %v2142
  %2156 = vmatpush.bf16.msra.mxu0 %v2141
  %2157 = vmatpush.bf16.msra.mxu0 %v2140
  %2158 = vmatpush.bf16.msra.mxu0 %v2139
  %2159 = vmatpush.bf16.msra.mxu0 %v2138
  %2160 = vmatpush.bf16.msra.mxu0 %v2137
  %2161 = vmatmul.bf16.gmra.mxu0 %v2080
  %v2162 = vpop.f32.mrf.mxu0
  %v2163 = vadd.f32 0.0, %v2162
  %v2164 = vpop.f32.mrf.mxu0
  %v2165 = vadd.f32 0.0, %v2164
  %2166 = vmatmul.bf16.gmra.mxu0 %v2081
  %v2167 = vpop.f32.mrf.mxu0
  %v2168 = vadd.f32 0.0, %v2167
  %v2169 = vpop.f32.mrf.mxu0
  %v2170 = vadd.f32 0.0, %v2169
  %2171 = vmatmul.bf16.gmra.mxu0 %v2082
  %v2172 = vpop.f32.mrf.mxu0
  %v2173 = vadd.f32 0.0, %v2172
  %v2174 = vpop.f32.mrf.mxu0
  %v2175 = vadd.f32 0.0, %v2174
  %2176 = vmatmul.bf16.gmra.mxu0 %v2083
  %v2177 = vpop.f32.mrf.mxu0
  %v2178 = vadd.f32 0.0, %v2177
  %v2179 = vpop.f32.mrf.mxu0
  %v2180 = vadd.f32 0.0, %v2179
  %2181 = vmatmul.bf16.gmra.mxu0 %v2084
  %v2182 = vpop.f32.mrf.mxu0
  %v2183 = vadd.f32 0.0, %v2182
  %v2184 = vpop.f32.mrf.mxu0
  %v2185 = vadd.f32 0.0, %v2184
  %2186 = vmatmul.bf16.gmra.mxu0 %v2085
  %v2187 = vpop.f32.mrf.mxu0
  %v2188 = vadd.f32 0.0, %v2187
  %v2189 = vpop.f32.mrf.mxu0
  %v2190 = vadd.f32 0.0, %v2189
  %2191 = vmatmul.bf16.gmra.mxu0 %v2086
  %v2192 = vpop.f32.mrf.mxu0
  %v2193 = vadd.f32 0.0, %v2192
  %v2194 = vpop.f32.mrf.mxu0
  %v2195 = vadd.f32 0.0, %v2194
  %2196 = vmatmul.bf16.gmra.mxu0 %v2087
  %v2197 = vpop.f32.mrf.mxu0
  %v2198 = vadd.f32 0.0, %v2197
  %v2199 = vpop.f32.mrf.mxu0
  %v2200 = vadd.f32 0.0, %v2199
  %2201 = vdwg.mxu0
  %v2202 = vadd.f32 %v2032, %v2163
  %v2203 = vadd.f32 %v2033, %v2165
  %v2204 = vadd.f32 %v2034, %v2168
  %v2205 = vadd.f32 %v2035, %v2170
  %v2206 = vadd.f32 %v2036, %v2173
  %v2207 = vadd.f32 %v2037, %v2175
  %v2208 = vadd.f32 %v2038, %v2178
  %v2209 = vadd.f32 %v2039, %v2180
  %v2210 = vadd.f32 %v2040, %v2183
  %v2211 = vadd.f32 %v2041, %v2185
  %v2212 = vadd.f32 %v2042, %v2188
  %v2213 = vadd.f32 %v2043, %v2190
  %v2214 = vadd.f32 %v2044, %v2193
  %v2215 = vadd.f32 %v2045, %v2195
  %v2216 = vadd.f32 %v2046, %v2198
  %v2217 = vadd.f32 %v2047, %v2200
  %s2218 = scalar_lea.vmem %s1878, 2 [#allocation2]
  %v2219 = vld [vmem:[%s2218] ss:$2 sm:$0xff]
  %s2220 = scalar_lea.vmem %s1878, 50 [#allocation2]
  %v2221 = vld [vmem:[%s2220] ss:$2 sm:$0xff]
  %s2222 = scalar_lea.vmem %s1878, 98 [#allocation2]
  %v2223 = vld [vmem:[%s2222] ss:$2 sm:$0xff]
  %s2224 = scalar_lea.vmem %s1878, 146 [#allocation2]
  %v2225 = vld [vmem:[%s2224] ss:$2 sm:$0xff]
  %s2226 = scalar_lea.vmem %s1878, 194 [#allocation2]
  %v2227 = vld [vmem:[%s2226] ss:$2 sm:$0xff]
  %s2228 = scalar_lea.vmem %s1878, 242 [#allocation2]
  %v2229 = vld [vmem:[%s2228] ss:$2 sm:$0xff]
  %s2230 = scalar_lea.vmem %s1878, 290 [#allocation2]
  %v2231 = vld [vmem:[%s2230] ss:$2 sm:$0xff]
  %s2232 = scalar_lea.vmem %s1878, 338 [#allocation2]
  %v2233 = vld [vmem:[%s2232] ss:$2 sm:$0xff]
  %s2234 = scalar_lea.vmem %s1878, 434 [#allocation2]
  %v2235 = vld [vmem:[%s2234] ss:$2 sm:$0xff]
  %s2236 = scalar_lea.vmem %s1878, 482 [#allocation2]
  %v2237 = vld [vmem:[%s2236] ss:$2 sm:$0xff]
  %s2238 = scalar_lea.vmem %s1878, 530 [#allocation2]
  %v2239 = vld [vmem:[%s2238] ss:$2 sm:$0xff]
  %s2240 = scalar_lea.vmem %s1878, 578 [#allocation2]
  %v2241 = vld [vmem:[%s2240] ss:$2 sm:$0xff]
  %s2242 = scalar_lea.vmem %s1878, 626 [#allocation2]
  %v2243 = vld [vmem:[%s2242] ss:$2 sm:$0xff]
  %s2244 = scalar_lea.vmem %s1878, 674 [#allocation2]
  %v2245 = vld [vmem:[%s2244] ss:$2 sm:$0xff]
  %s2246 = scalar_lea.vmem %s1878, 722 [#allocation2]
  %v2247 = vld [vmem:[%s2246] ss:$2 sm:$0xff]
  %s2248 = scalar_lea.vmem %s1878, 770 [#allocation2]
  %v2249 = vld [vmem:[%s2248] ss:$2 sm:$0xff]
  %v2250 = vpack.c.bf16 %v2221, %v2219
  %v2251 = vpack.c.bf16 %v2225, %v2223
  %v2252 = vpack.c.bf16 %v2229, %v2227
  %v2253 = vpack.c.bf16 %v2233, %v2231
  %v2254 = vpack.c.bf16 %v2237, %v2235
  %v2255 = vpack.c.bf16 %v2241, %v2239
  %v2256 = vpack.c.bf16 %v2245, %v2243
  %v2257 = vpack.c.bf16 %v2249, %v2247
  %s2258 = scalar_lea.vmem %s4, 512
  %v2259 = vld [vmem:[%s2258] sm:$0xf]
  %v2260 = vld [vmem:[%s2258 + $0x4] sm:$0xf]
  %v2261 = vld [vmem:[%s2258 + $0x8] sm:$0xf]
  %v2262 = vld [vmem:[%s2258 + $0xc] sm:$0xf]
  %v2263 = vld [vmem:[%s2258 + $0x10] sm:$0xf]
  %v2264 = vld [vmem:[%s2258 + $0x14] sm:$0xf]
  %v2265 = vld [vmem:[%s2258 + $0x18] sm:$0xf]
  %v2266 = vld [vmem:[%s2258 + $0x1c] sm:$0xf]
  %v2267 = vld [vmem:[%s2258 + $0x20] sm:$0xf]
  %v2268 = vld [vmem:[%s2258 + $0x24] sm:$0xf]
  %v2269 = vld [vmem:[%s2258 + $0x28] sm:$0xf]
  %v2270 = vld [vmem:[%s2258 + $0x2c] sm:$0xf]
  %v2271 = vld [vmem:[%s2258 + $0x30] sm:$0xf]
  %v2272 = vld [vmem:[%s2258 + $0x34] sm:$0xf]
  %v2273 = vld [vmem:[%s2258 + $0x38] sm:$0xf]
  %v2274 = vld [vmem:[%s2258 + $0x3c] sm:$0xf]
  %v2291 = vunpack.c.l.b16 %v2259
  %v2292 = vunpack.c.l.b16 %v2260
  %v2293 = vunpack.c.l.b16 %v2261
  %v2294 = vunpack.c.l.b16 %v2262
  %v2295 = vunpack.c.l.b16 %v2263
  %v2296 = vunpack.c.l.b16 %v2264
  %v2297 = vunpack.c.l.b16 %v2265
  %v2298 = vunpack.c.l.b16 %v2266
  %v2299 = vunpack.c.l.b16 %v2267
  %v2300 = vunpack.c.l.b16 %v2268
  %v2301 = vunpack.c.l.b16 %v2269
  %v2302 = vunpack.c.l.b16 %v2270
  %v2303 = vunpack.c.l.b16 %v2271
  %v2304 = vunpack.c.l.b16 %v2272
  %v2305 = vunpack.c.l.b16 %v2273
  %v2306 = vunpack.c.l.b16 %v2274
  %v2307 = vpack.c.b16 %v2292, %v2291
  %v2308 = vpack.c.b16 %v2294, %v2293
  %v2309 = vpack.c.b16 %v2296, %v2295
  %v2310 = vpack.c.b16 %v2298, %v2297
  %v2311 = vpack.c.b16 %v2300, %v2299
  %v2312 = vpack.c.b16 %v2302, %v2301
  %v2313 = vpack.c.b16 %v2304, %v2303
  %v2314 = vpack.c.b16 %v2306, %v2305
  %2323 = vmatpush.bf16.msra.mxu0 %v2314
  %2324 = vmatpush.bf16.msra.mxu0 %v2313
  %2325 = vmatpush.bf16.msra.mxu0 %v2312
  %2326 = vmatpush.bf16.msra.mxu0 %v2311
  %2327 = vmatpush.bf16.msra.mxu0 %v2310
  %2328 = vmatpush.bf16.msra.mxu0 %v2309
  %2329 = vmatpush.bf16.msra.mxu0 %v2308
  %2330 = vmatpush.bf16.msra.mxu0 %v2307
  %2331 = vmatmul.bf16.gmra.mxu0 %v2250
  %v2332 = vpop.f32.mrf.mxu0
  %v2333 = vadd.f32 0.0, %v2332
  %v2334 = vpop.f32.mrf.mxu0
  %v2335 = vadd.f32 0.0, %v2334
  %2336 = vmatmul.bf16.gmra.mxu0 %v2251
  %v2337 = vpop.f32.mrf.mxu0
  %v2338 = vadd.f32 0.0, %v2337
  %v2339 = vpop.f32.mrf.mxu0
  %v2340 = vadd.f32 0.0, %v2339
  %2341 = vmatmul.bf16.gmra.mxu0 %v2252
  %v2342 = vpop.f32.mrf.mxu0
  %v2343 = vadd.f32 0.0, %v2342
  %v2344 = vpop.f32.mrf.mxu0
  %v2345 = vadd.f32 0.0, %v2344
  %2346 = vmatmul.bf16.gmra.mxu0 %v2253
  %v2347 = vpop.f32.mrf.mxu0
  %v2348 = vadd.f32 0.0, %v2347
  %v2349 = vpop.f32.mrf.mxu0
  %v2350 = vadd.f32 0.0, %v2349
  %2351 = vmatmul.bf16.gmra.mxu0 %v2254
  %v2352 = vpop.f32.mrf.mxu0
  %v2353 = vadd.f32 0.0, %v2352
  %v2354 = vpop.f32.mrf.mxu0
  %v2355 = vadd.f32 0.0, %v2354
  %2356 = vmatmul.bf16.gmra.mxu0 %v2255
  %v2357 = vpop.f32.mrf.mxu0
  %v2358 = vadd.f32 0.0, %v2357
  %v2359 = vpop.f32.mrf.mxu0
  %v2360 = vadd.f32 0.0, %v2359
  %2361 = vmatmul.bf16.gmra.mxu0 %v2256
  %v2362 = vpop.f32.mrf.mxu0
  %v2363 = vadd.f32 0.0, %v2362
  %v2364 = vpop.f32.mrf.mxu0
  %v2365 = vadd.f32 0.0, %v2364
  %2366 = vmatmul.bf16.gmra.mxu0 %v2257
  %v2367 = vpop.f32.mrf.mxu0
  %v2368 = vadd.f32 0.0, %v2367
  %v2369 = vpop.f32.mrf.mxu0
  %v2370 = vadd.f32 0.0, %v2369
  %2371 = vdwg.mxu0
  %v2372 = vadd.f32 %v2202, %v2333
  %v2373 = vadd.f32 %v2203, %v2335
  %v2374 = vadd.f32 %v2204, %v2338
  %v2375 = vadd.f32 %v2205, %v2340
  %v2376 = vadd.f32 %v2206, %v2343
  %v2377 = vadd.f32 %v2207, %v2345
  %v2378 = vadd.f32 %v2208, %v2348
  %v2379 = vadd.f32 %v2209, %v2350
  %v2380 = vadd.f32 %v2210, %v2353
  %v2381 = vadd.f32 %v2211, %v2355
  %v2382 = vadd.f32 %v2212, %v2358
  %v2383 = vadd.f32 %v2213, %v2360
  %v2384 = vadd.f32 %v2214, %v2363
  %v2385 = vadd.f32 %v2215, %v2365
  %v2386 = vadd.f32 %v2216, %v2368
  %v2387 = vadd.f32 %v2217, %v2370
  %v2388 = vld [vmem:[%s5] sm:$0x1]
  %v2390 = vperm.slane %v2388, 0
  %v2392 = vmul.f32 %v2372, %v2390
  %v2393 = vmul.f32 %v2373, %v2390
  %v2394 = vmul.f32 %v2374, %v2390
  %v2395 = vmul.f32 %v2375, %v2390
  %v2396 = vmul.f32 %v2376, %v2390
  %v2397 = vmul.f32 %v2377, %v2390
  %v2398 = vmul.f32 %v2378, %v2390
  %v2399 = vmul.f32 %v2379, %v2390
  %v2400 = vmul.f32 %v2380, %v2390
  %v2401 = vmul.f32 %v2381, %v2390
  %v2402 = vmul.f32 %v2382, %v2390
  %v2403 = vmul.f32 %v2383, %v2390
  %v2404 = vmul.f32 %v2384, %v2390
  %v2405 = vmul.f32 %v2385, %v2390
  %v2406 = vmul.f32 %v2386, %v2390
  %v2407 = vmul.f32 %v2387, %v2390
  %v2408 = vld [vmem:[%s6] sm:$0x1]
  %v2410 = vperm.slane %v2408, 0
  %v2412 = vadd.f32 %v2392, %v2410
  %v2413 = vadd.f32 %v2393, %v2410
  %v2414 = vadd.f32 %v2394, %v2410
  %v2415 = vadd.f32 %v2395, %v2410
  %v2416 = vadd.f32 %v2396, %v2410
  %v2417 = vadd.f32 %v2397, %v2410
  %v2418 = vadd.f32 %v2398, %v2410
  %v2419 = vadd.f32 %v2399, %v2410
  %v2420 = vadd.f32 %v2400, %v2410
  %v2421 = vadd.f32 %v2401, %v2410
  %v2422 = vadd.f32 %v2402, %v2410
  %v2423 = vadd.f32 %v2403, %v2410
  %v2424 = vadd.f32 %v2404, %v2410
  %v2425 = vadd.f32 %v2405, %v2410
  %v2426 = vadd.f32 %v2406, %v2410
  %v2427 = vadd.f32 %v2407, %v2410
  %vm2428 = vcmp.ge.f32.partialorder %v2412, 0.0
  %vm2429 = vcmp.ge.f32.partialorder %v2413, 0.0
  %vm2430 = vcmp.ge.f32.partialorder %v2414, 0.0
  %vm2431 = vcmp.ge.f32.partialorder %v2415, 0.0
  %vm2432 = vcmp.ge.f32.partialorder %v2416, 0.0
  %vm2433 = vcmp.ge.f32.partialorder %v2417, 0.0
  %vm2434 = vcmp.ge.f32.partialorder %v2418, 0.0
  %vm2435 = vcmp.ge.f32.partialorder %v2419, 0.0
  %vm2436 = vcmp.ge.f32.partialorder %v2420, 0.0
  %vm2437 = vcmp.ge.f32.partialorder %v2421, 0.0
  %vm2438 = vcmp.ge.f32.partialorder %v2422, 0.0
  %vm2439 = vcmp.ge.f32.partialorder %v2423, 0.0
  %vm2440 = vcmp.ge.f32.partialorder %v2424, 0.0
  %vm2441 = vcmp.ge.f32.partialorder %v2425, 0.0
  %vm2442 = vcmp.ge.f32.partialorder %v2426, 0.0
  %vm2443 = vcmp.ge.f32.partialorder %v2427, 0.0
  %v2444 = vmul.f32 %v2412, 0.01
  %v2445 = vmul.f32 %v2413, 0.01
  %v2446 = vmul.f32 %v2414, 0.01
  %v2447 = vmul.f32 %v2415, 0.01
  %v2448 = vmul.f32 %v2416, 0.01
  %v2449 = vmul.f32 %v2417, 0.01
  %v2450 = vmul.f32 %v2418, 0.01
  %v2451 = vmul.f32 %v2419, 0.01
  %v2452 = vmul.f32 %v2420, 0.01
  %v2453 = vmul.f32 %v2421, 0.01
  %v2454 = vmul.f32 %v2422, 0.01
  %v2455 = vmul.f32 %v2423, 0.01
  %v2456 = vmul.f32 %v2424, 0.01
  %v2457 = vmul.f32 %v2425, 0.01
  %v2458 = vmul.f32 %v2426, 0.01
  %v2459 = vmul.f32 %v2427, 0.01
  %v2460 = vsel %vm2428, %v2412, %v2444
  %v2461 = vsel %vm2429, %v2413, %v2445
  %v2462 = vsel %vm2430, %v2414, %v2446
  %v2463 = vsel %vm2431, %v2415, %v2447
  %v2464 = vsel %vm2432, %v2416, %v2448
  %v2465 = vsel %vm2433, %v2417, %v2449
  %v2466 = vsel %vm2434, %v2418, %v2450
  %v2467 = vsel %vm2435, %v2419, %v2451
  %v2468 = vsel %vm2436, %v2420, %v2452
  %v2469 = vsel %vm2437, %v2421, %v2453
  %v2470 = vsel %vm2438, %v2422, %v2454
  %v2471 = vsel %vm2439, %v2423, %v2455
  %v2472 = vsel %vm2440, %v2424, %v2456
  %v2473 = vsel %vm2441, %v2425, %v2457
  %v2474 = vsel %vm2442, %v2426, %v2458
  %v2475 = vsel %vm2443, %v2427, %v2459
  %v2476 = vld [vmem:[%s0] ss:$2 sm:$0xff]
  %s2477 = scalar_lea.vmem %s0, 32
  %v2478 = vld [vmem:[%s2477] ss:$2 sm:$0xff]
  %s2479 = scalar_lea.vmem %s0, 64
  %v2480 = vld [vmem:[%s2479] ss:$2 sm:$0xff]
  %s2481 = scalar_lea.vmem %s0, 96
  %v2482 = vld [vmem:[%s2481] ss:$2 sm:$0xff]
  %s2483 = scalar_lea.vmem %s0, 128
  %v2484 = vld [vmem:[%s2483] ss:$2 sm:$0xff]
  %s2485 = scalar_lea.vmem %s0, 160
  %v2486 = vld [vmem:[%s2485] ss:$2 sm:$0xff]
  %s2487 = scalar_lea.vmem %s0, 192
  %v2488 = vld [vmem:[%s2487] ss:$2 sm:$0xff]
  %s2489 = scalar_lea.vmem %s0, 224
  %v2490 = vld [vmem:[%s2489] ss:$2 sm:$0xff]
  %s2491 = scalar_lea.vmem %s0, 256
  %v2492 = vld [vmem:[%s2491] ss:$2 sm:$0xff]
  %s2493 = scalar_lea.vmem %s0, 288
  %v2494 = vld [vmem:[%s2493] ss:$2 sm:$0xff]
  %s2495 = scalar_lea.vmem %s0, 320
  %v2496 = vld [vmem:[%s2495] ss:$2 sm:$0xff]
  %s2497 = scalar_lea.vmem %s0, 352
  %v2498 = vld [vmem:[%s2497] ss:$2 sm:$0xff]
  %s2499 = scalar_lea.vmem %s0, 384
  %v2500 = vld [vmem:[%s2499] ss:$2 sm:$0xff]
  %s2501 = scalar_lea.vmem %s0, 416
  %v2502 = vld [vmem:[%s2501] ss:$2 sm:$0xff]
  %s2503 = scalar_lea.vmem %s0, 448
  %v2504 = vld [vmem:[%s2503] ss:$2 sm:$0xff]
  %s2505 = scalar_lea.vmem %s0, 480
  %v2506 = vld [vmem:[%s2505] ss:$2 sm:$0xff]
  %v2507 = vpack.c.bf16 %v2478, %v2476
  %v2508 = vpack.c.bf16 %v2482, %v2480
  %v2509 = vpack.c.bf16 %v2486, %v2484
  %v2510 = vpack.c.bf16 %v2490, %v2488
  %v2511 = vpack.c.bf16 %v2494, %v2492
  %v2512 = vpack.c.bf16 %v2498, %v2496
  %v2513 = vpack.c.bf16 %v2502, %v2500
  %v2514 = vpack.c.bf16 %v2506, %v2504
  %v2515 = vld [vmem:[%s10] sm:$0xf]
  %v2516 = vld [vmem:[%s10 + $0x4] sm:$0xf]
  %v2517 = vld [vmem:[%s10 + $0x8] sm:$0xf]
  %v2518 = vld [vmem:[%s10 + $0xc] sm:$0xf]
  %v2523 = vunpack.c.l.b16 %v2515
  %v2524 = vunpack.c.l.b16 %v2516
  %v2525 = vunpack.c.l.b16 %v2517
  %v2526 = vunpack.c.l.b16 %v2518
  %v2527 = vpack.c.b16 %v2524, %v2523
  %v2528 = vpack.c.b16 %v2526, %v2525
  %v2532 = vsel %vm157, %v2507, 0
  %v2535 = vsel %vm157, %v2508, 0
  %v2538 = vsel %vm157, %v2509, 0
  %v2541 = vsel %vm157, %v2510, 0
  %v2544 = vsel %vm157, %v2511, 0
  %v2547 = vsel %vm157, %v2512, 0
  %v2550 = vsel %vm157, %v2513, 0
  %v2553 = vsel %vm157, %v2514, 0
  %2555 = vmatpush.bf16.msra.mxu0 0
  %2556 = vmatpush.bf16.msra.mxu0 0
  %2557 = vmatpush.bf16.msra.mxu0 0
  %2558 = vmatpush.bf16.msra.mxu0 0
  %2559 = vmatpush.bf16.msra.mxu0 0
  %2560 = vmatpush.bf16.msra.mxu0 0
  %2561 = vmatpush.bf16.msra.mxu0 %v2528
  %2562 = vmatpush.bf16.msra.mxu0 %v2527
  %2563 = vmatmul.bf16.gmra.mxu0 %v2532
  %v2564 = vpop.f32.mrf.mxu0
  %v2565 = vadd.f32 0.0, %v2564
  %v2566 = vpop.f32.mrf.mxu0
  %v2567 = vadd.f32 0.0, %v2566
  %2568 = vmatmul.bf16.gmra.mxu0 %v2535
  %v2569 = vpop.f32.mrf.mxu0
  %v2570 = vadd.f32 0.0, %v2569
  %v2571 = vpop.f32.mrf.mxu0
  %v2572 = vadd.f32 0.0, %v2571
  %2573 = vmatmul.bf16.gmra.mxu0 %v2538
  %v2574 = vpop.f32.mrf.mxu0
  %v2575 = vadd.f32 0.0, %v2574
  %v2576 = vpop.f32.mrf.mxu0
  %v2577 = vadd.f32 0.0, %v2576
  %2578 = vmatmul.bf16.gmra.mxu0 %v2541
  %v2579 = vpop.f32.mrf.mxu0
  %v2580 = vadd.f32 0.0, %v2579
  %v2581 = vpop.f32.mrf.mxu0
  %v2582 = vadd.f32 0.0, %v2581
  %2583 = vmatmul.bf16.gmra.mxu0 %v2544
  %v2584 = vpop.f32.mrf.mxu0
  %v2585 = vadd.f32 0.0, %v2584
  %v2586 = vpop.f32.mrf.mxu0
  %v2587 = vadd.f32 0.0, %v2586
  %2588 = vmatmul.bf16.gmra.mxu0 %v2547
  %v2589 = vpop.f32.mrf.mxu0
  %v2590 = vadd.f32 0.0, %v2589
  %v2591 = vpop.f32.mrf.mxu0
  %v2592 = vadd.f32 0.0, %v2591
  %2593 = vmatmul.bf16.gmra.mxu0 %v2550
  %v2594 = vpop.f32.mrf.mxu0
  %v2595 = vadd.f32 0.0, %v2594
  %v2596 = vpop.f32.mrf.mxu0
  %v2597 = vadd.f32 0.0, %v2596
  %2598 = vmatmul.bf16.gmra.mxu0 %v2553
  %v2599 = vpop.f32.mrf.mxu0
  %v2600 = vadd.f32 0.0, %v2599
  %v2601 = vpop.f32.mrf.mxu0
  %v2602 = vadd.f32 0.0, %v2601
  %2603 = vdwg.mxu0
  %v2604 = vld [vmem:[%s11] sm:$0x1]
  %v2606 = vperm.slane %v2604, 0
  %v2608 = vmul.f32 %v2565, %v2606
  %v2609 = vmul.f32 %v2567, %v2606
  %v2610 = vmul.f32 %v2570, %v2606
  %v2611 = vmul.f32 %v2572, %v2606
  %v2612 = vmul.f32 %v2575, %v2606
  %v2613 = vmul.f32 %v2577, %v2606
  %v2614 = vmul.f32 %v2580, %v2606
  %v2615 = vmul.f32 %v2582, %v2606
  %v2616 = vmul.f32 %v2585, %v2606
  %v2617 = vmul.f32 %v2587, %v2606
  %v2618 = vmul.f32 %v2590, %v2606
  %v2619 = vmul.f32 %v2592, %v2606
  %v2620 = vmul.f32 %v2595, %v2606
  %v2621 = vmul.f32 %v2597, %v2606
  %v2622 = vmul.f32 %v2600, %v2606
  %v2623 = vmul.f32 %v2602, %v2606
  %v2624 = vld [vmem:[%s12] sm:$0x1]
  %v2626 = vperm.slane %v2624, 0
  %v2628 = vadd.f32 %v2608, %v2626
  %v2629 = vadd.f32 %v2609, %v2626
  %v2630 = vadd.f32 %v2610, %v2626
  %v2631 = vadd.f32 %v2611, %v2626
  %v2632 = vadd.f32 %v2612, %v2626
  %v2633 = vadd.f32 %v2613, %v2626
  %v2634 = vadd.f32 %v2614, %v2626
  %v2635 = vadd.f32 %v2615, %v2626
  %v2636 = vadd.f32 %v2616, %v2626
  %v2637 = vadd.f32 %v2617, %v2626
  %v2638 = vadd.f32 %v2618, %v2626
  %v2639 = vadd.f32 %v2619, %v2626
  %v2640 = vadd.f32 %v2620, %v2626
  %v2641 = vadd.f32 %v2621, %v2626
  %v2642 = vadd.f32 %v2622, %v2626
  %v2643 = vadd.f32 %v2623, %v2626
  %v2644 = vpack.c.bf16 %v2461, %v2460
  %v2645 = vpack.c.bf16 %v2463, %v2462
  %v2646 = vpack.c.bf16 %v2465, %v2464
  %v2647 = vpack.c.bf16 %v2467, %v2466
  %v2648 = vpack.c.bf16 %v2469, %v2468
  %v2649 = vpack.c.bf16 %v2471, %v2470
  %v2650 = vpack.c.bf16 %v2473, %v2472
  %v2651 = vpack.c.bf16 %v2475, %v2474
  %v2652 = vld [vmem:[%s7] sm:$0xf]
  %v2653 = vld [vmem:[%s7 + $0x4] sm:$0xf]
  %v2654 = vld [vmem:[%s7 + $0x8] sm:$0xf]
  %v2655 = vld [vmem:[%s7 + $0xc] sm:$0xf]
  %v2656 = vld [vmem:[%s7 + $0x10] sm:$0xf]
  %v2657 = vld [vmem:[%s7 + $0x14] sm:$0xf]
  %v2658 = vld [vmem:[%s7 + $0x18] sm:$0xf]
  %v2659 = vld [vmem:[%s7 + $0x1c] sm:$0xf]
  %v2660 = vld [vmem:[%s7 + $0x20] sm:$0xf]
  %v2661 = vld [vmem:[%s7 + $0x24] sm:$0xf]
  %v2662 = vld [vmem:[%s7 + $0x28] sm:$0xf]
  %v2663 = vld [vmem:[%s7 + $0x2c] sm:$0xf]
  %v2664 = vld [vmem:[%s7 + $0x30] sm:$0xf]
  %v2665 = vld [vmem:[%s7 + $0x34] sm:$0xf]
  %v2666 = vld [vmem:[%s7 + $0x38] sm:$0xf]
  %v2667 = vld [vmem:[%s7 + $0x3c] sm:$0xf]
  %v2684 = vunpack.c.l.b16 %v2652
  %v2685 = vunpack.c.l.b16 %v2653
  %v2686 = vunpack.c.l.b16 %v2654
  %v2687 = vunpack.c.l.b16 %v2655
  %v2688 = vunpack.c.l.b16 %v2656
  %v2689 = vunpack.c.l.b16 %v2657
  %v2690 = vunpack.c.l.b16 %v2658
  %v2691 = vunpack.c.l.b16 %v2659
  %v2692 = vunpack.c.l.b16 %v2660
  %v2693 = vunpack.c.l.b16 %v2661
  %v2694 = vunpack.c.l.b16 %v2662
  %v2695 = vunpack.c.l.b16 %v2663
  %v2696 = vunpack.c.l.b16 %v2664
  %v2697 = vunpack.c.l.b16 %v2665
  %v2698 = vunpack.c.l.b16 %v2666
  %v2699 = vunpack.c.l.b16 %v2667
  %v2700 = vpack.c.b16 %v2685, %v2684
  %v2701 = vpack.c.b16 %v2687, %v2686
  %v2702 = vpack.c.b16 %v2689, %v2688
  %v2703 = vpack.c.b16 %v2691, %v2690
  %v2704 = vpack.c.b16 %v2693, %v2692
  %v2705 = vpack.c.b16 %v2695, %v2694
  %v2706 = vpack.c.b16 %v2697, %v2696
  %v2707 = vpack.c.b16 %v2699, %v2698
  %2716 = vmatpush.bf16.msra.mxu0 %v2707
  %2717 = vmatpush.bf16.msra.mxu0 %v2706
  %2718 = vmatpush.bf16.msra.mxu0 %v2705
  %2719 = vmatpush.bf16.msra.mxu0 %v2704
  %2720 = vmatpush.bf16.msra.mxu0 %v2703
  %2721 = vmatpush.bf16.msra.mxu0 %v2702
  %2722 = vmatpush.bf16.msra.mxu0 %v2701
  %2723 = vmatpush.bf16.msra.mxu0 %v2700
  %2724 = vmatmul.bf16.gmra.mxu0 %v2644
  %v2725 = vpop.f32.mrf.mxu0
  %v2726 = vadd.f32 0.0, %v2725
  %v2727 = vpop.f32.mrf.mxu0
  %v2728 = vadd.f32 0.0, %v2727
  %2729 = vmatmul.bf16.gmra.mxu0 %v2645
  %v2730 = vpop.f32.mrf.mxu0
  %v2731 = vadd.f32 0.0, %v2730
  %v2732 = vpop.f32.mrf.mxu0
  %v2733 = vadd.f32 0.0, %v2732
  %2734 = vmatmul.bf16.gmra.mxu0 %v2646
  %v2735 = vpop.f32.mrf.mxu0
  %v2736 = vadd.f32 0.0, %v2735
  %v2737 = vpop.f32.mrf.mxu0
  %v2738 = vadd.f32 0.0, %v2737
  %2739 = vmatmul.bf16.gmra.mxu0 %v2647
  %v2740 = vpop.f32.mrf.mxu0
  %v2741 = vadd.f32 0.0, %v2740
  %v2742 = vpop.f32.mrf.mxu0
  %v2743 = vadd.f32 0.0, %v2742
  %2744 = vmatmul.bf16.gmra.mxu0 %v2648
  %v2745 = vpop.f32.mrf.mxu0
  %v2746 = vadd.f32 0.0, %v2745
  %v2747 = vpop.f32.mrf.mxu0
  %v2748 = vadd.f32 0.0, %v2747
  %2749 = vmatmul.bf16.gmra.mxu0 %v2649
  %v2750 = vpop.f32.mrf.mxu0
  %v2751 = vadd.f32 0.0, %v2750
  %v2752 = vpop.f32.mrf.mxu0
  %v2753 = vadd.f32 0.0, %v2752
  %2754 = vmatmul.bf16.gmra.mxu0 %v2650
  %v2755 = vpop.f32.mrf.mxu0
  %v2756 = vadd.f32 0.0, %v2755
  %v2757 = vpop.f32.mrf.mxu0
  %v2758 = vadd.f32 0.0, %v2757
  %2759 = vmatmul.bf16.gmra.mxu0 %v2651
  %v2760 = vpop.f32.mrf.mxu0
  %v2761 = vadd.f32 0.0, %v2760
  %v2762 = vpop.f32.mrf.mxu0
  %v2763 = vadd.f32 0.0, %v2762
  %2764 = vdwg.mxu0
  %v2765 = vld [vmem:[%s8] sm:$0x1]
  %v2767 = vperm.slane %v2765, 0
  %v2769 = vmul.f32 %v2726, %v2767
  %v2770 = vmul.f32 %v2728, %v2767
  %v2771 = vmul.f32 %v2731, %v2767
  %v2772 = vmul.f32 %v2733, %v2767
  %v2773 = vmul.f32 %v2736, %v2767
  %v2774 = vmul.f32 %v2738, %v2767
  %v2775 = vmul.f32 %v2741, %v2767
  %v2776 = vmul.f32 %v2743, %v2767
  %v2777 = vmul.f32 %v2746, %v2767
  %v2778 = vmul.f32 %v2748, %v2767
  %v2779 = vmul.f32 %v2751, %v2767
  %v2780 = vmul.f32 %v2753, %v2767
  %v2781 = vmul.f32 %v2756, %v2767
  %v2782 = vmul.f32 %v2758, %v2767
  %v2783 = vmul.f32 %v2761, %v2767
  %v2784 = vmul.f32 %v2763, %v2767
  %v2785 = vld [vmem:[%s9] sm:$0x1]
  %v2787 = vperm.slane %v2785, 0
  %v2789 = vadd.f32 %v2769, %v2787
  %v2790 = vadd.f32 %v2770, %v2787
  %v2791 = vadd.f32 %v2771, %v2787
  %v2792 = vadd.f32 %v2772, %v2787
  %v2793 = vadd.f32 %v2773, %v2787
  %v2794 = vadd.f32 %v2774, %v2787
  %v2795 = vadd.f32 %v2775, %v2787
  %v2796 = vadd.f32 %v2776, %v2787
  %v2797 = vadd.f32 %v2777, %v2787
  %v2798 = vadd.f32 %v2778, %v2787
  %v2799 = vadd.f32 %v2779, %v2787
  %v2800 = vadd.f32 %v2780, %v2787
  %v2801 = vadd.f32 %v2781, %v2787
  %v2802 = vadd.f32 %v2782, %v2787
  %v2803 = vadd.f32 %v2783, %v2787
  %v2804 = vadd.f32 %v2784, %v2787
  %v2805 = vadd.f32 %v2789, %v2628
  %v2806 = vadd.f32 %v2790, %v2629
  %v2807 = vadd.f32 %v2791, %v2630
  %v2808 = vadd.f32 %v2792, %v2631
  %v2809 = vadd.f32 %v2793, %v2632
  %v2810 = vadd.f32 %v2794, %v2633
  %v2811 = vadd.f32 %v2795, %v2634
  %v2812 = vadd.f32 %v2796, %v2635
  %v2813 = vadd.f32 %v2797, %v2636
  %v2814 = vadd.f32 %v2798, %v2637
  %v2815 = vadd.f32 %v2799, %v2638
  %v2816 = vadd.f32 %v2800, %v2639
  %v2817 = vadd.f32 %v2801, %v2640
  %v2818 = vadd.f32 %v2802, %v2641
  %v2819 = vadd.f32 %v2803, %v2642
  %v2820 = vadd.f32 %v2804, %v2643
  %vm2821 = vcmp.ge.f32.partialorder %v2805, 0.0
  %vm2822 = vcmp.ge.f32.partialorder %v2806, 0.0
  %vm2823 = vcmp.ge.f32.partialorder %v2807, 0.0
  %vm2824 = vcmp.ge.f32.partialorder %v2808, 0.0
  %vm2825 = vcmp.ge.f32.partialorder %v2809, 0.0
  %vm2826 = vcmp.ge.f32.partialorder %v2810, 0.0
  %vm2827 = vcmp.ge.f32.partialorder %v2811, 0.0
  %vm2828 = vcmp.ge.f32.partialorder %v2812, 0.0
  %vm2829 = vcmp.ge.f32.partialorder %v2813, 0.0
  %vm2830 = vcmp.ge.f32.partialorder %v2814, 0.0
  %vm2831 = vcmp.ge.f32.partialorder %v2815, 0.0
  %vm2832 = vcmp.ge.f32.partialorder %v2816, 0.0
  %vm2833 = vcmp.ge.f32.partialorder %v2817, 0.0
  %vm2834 = vcmp.ge.f32.partialorder %v2818, 0.0
  %vm2835 = vcmp.ge.f32.partialorder %v2819, 0.0
  %vm2836 = vcmp.ge.f32.partialorder %v2820, 0.0
  %v2837 = vmul.f32 %v2805, 0.01
  %v2838 = vmul.f32 %v2806, 0.01
  %v2839 = vmul.f32 %v2807, 0.01
  %v2840 = vmul.f32 %v2808, 0.01
  %v2841 = vmul.f32 %v2809, 0.01
  %v2842 = vmul.f32 %v2810, 0.01
  %v2843 = vmul.f32 %v2811, 0.01
  %v2844 = vmul.f32 %v2812, 0.01
  %v2845 = vmul.f32 %v2813, 0.01
  %v2846 = vmul.f32 %v2814, 0.01
  %v2847 = vmul.f32 %v2815, 0.01
  %v2848 = vmul.f32 %v2816, 0.01
  %v2849 = vmul.f32 %v2817, 0.01
  %v2850 = vmul.f32 %v2818, 0.01
  %v2851 = vmul.f32 %v2819, 0.01
  %v2852 = vmul.f32 %v2820, 0.01
  %v2853 = vsel %vm2821, %v2805, %v2837
  %v2854 = vsel %vm2822, %v2806, %v2838
  %v2855 = vsel %vm2823, %v2807, %v2839
  %v2856 = vsel %vm2824, %v2808, %v2840
  %v2857 = vsel %vm2825, %v2809, %v2841
  %v2858 = vsel %vm2826, %v2810, %v2842
  %v2859 = vsel %vm2827, %v2811, %v2843
  %v2860 = vsel %vm2828, %v2812, %v2844
  %v2861 = vsel %vm2829, %v2813, %v2845
  %v2862 = vsel %vm2830, %v2814, %v2846
  %v2863 = vsel %vm2831, %v2815, %v2847
  %v2864 = vsel %vm2832, %v2816, %v2848
  %v2865 = vsel %vm2833, %v2817, %v2849
  %v2866 = vsel %vm2834, %v2818, %v2850
  %v2867 = vsel %vm2835, %v2819, %v2851
  %v2868 = vsel %vm2836, %v2820, %v2852
  %2869 = vst [vmem:[%s13] sm:$0xff] %v2853
  %2870 = vst [vmem:[%s13 + $0x8] sm:$0xff] %v2854
  %2871 = vst [vmem:[%s13 + $0x10] sm:$0xff] %v2855
  %2872 = vst [vmem:[%s13 + $0x18] sm:$0xff] %v2856
  %2873 = vst [vmem:[%s13 + $0x20] sm:$0xff] %v2857
  %2874 = vst [vmem:[%s13 + $0x28] sm:$0xff] %v2858
  %2875 = vst [vmem:[%s13 + $0x30] sm:$0xff] %v2859
  %2876 = vst [vmem:[%s13 + $0x38] sm:$0xff] %v2860
  %2877 = vst [vmem:[%s13 + $0x40] sm:$0xff] %v2861
  %2878 = vst [vmem:[%s13 + $0x48] sm:$0xff] %v2862
  %2879 = vst [vmem:[%s13 + $0x50] sm:$0xff] %v2863
  %2880 = vst [vmem:[%s13 + $0x58] sm:$0xff] %v2864
  %2881 = vst [vmem:[%s13 + $0x60] sm:$0xff] %v2865
  %2882 = vst [vmem:[%s13 + $0x68] sm:$0xff] %v2866
  %2883 = vst [vmem:[%s13 + $0x70] sm:$0xff] %v2867
  %2884 = vst [vmem:[%s13 + $0x78] sm:$0xff] %v2868
  // Predicated region
  $region54: #{resnext_bottleneck_forward.1} parent=0 // pred_check
    _
  $region55: #{resnext_bottleneck_forward.1} parent=0 // pred_check_branch
    %2886 = sbr.rel (0) target = $region57
  $region56: #{resnext_bottleneck_forward.1} parent=0 // pred_region
    _
  $region57: #{resnext_bottleneck_forward.1} parent=0 // pred_fallthru
    _
  // Predicated region
  $region58: #{resnext_bottleneck_forward.1} parent=0 // pred_check
    _
  $region59: #{resnext_bottleneck_forward.1} parent=0 // pred_check_branch
    %2888 = sbr.rel (0) target = $region61
  $region60: #{resnext_bottleneck_forward.1} parent=0 // pred_region
    _
  $region61: #{resnext_bottleneck_forward.1} parent=0 // pred_fallthru
    _

</llo_original>
